<compile_context>
chip_gen: v7x
topology: tpu7x:2x2x1
jax: 0.10.0
libtpu: 0.0.40
codegen_flags: <defaults>
</compile_context>

<pallas_src>
import jax
import jax.numpy as jnp
from jax.experimental import pallas as pl
from jax.experimental.pallas import tpu as pltpu


def _upsample_concat_kernel(w_ref, b_ref, e_ref, x_ref, f_ref, o_ref):
    """One (batch, row-tile) grid step.

    w_ref : (Cout, C)      SMEM   1x1 conv weight (PyTorch (out, in) layout)
    b_ref : (Cout,)        SMEM   bias
    e_ref : (T, 4T)        VMEM   nearest 2x2 expansion operator (0/1), resident
    x_ref : (1, C, T)      VMEM   input tile, spatial flattened on the lane axis
    f_ref : (1, Cout, 4T)  VMEM   skip feature-map tile (already 2x resolution)
    o_ref : (1, C, 4T)     VMEM   output tile (conv channels ++ skip channels)
    """
    cout, cin = w_ref.shape
    t = x_ref.shape[-1]

    xb = x_ref[0]                                            # (C, T)

    # 1x1 conv, channels-first.  For tiny C/Cout the MXU is wasted, so do an
    # unrolled VPU broadcast-multiply-accumulate with the scalar weights in SMEM.
    # TODO(synk): for C, Cout >= 128 switch to an MXU path
    #             (jnp.dot(w_vmem, xb), bf16 operands on v6e/v7x).
    rows = []
    for co in range(cout):
        acc = jnp.zeros((1, t), jnp.float32) + b_ref[co]
        for c in range(cin):
            acc = acc + w_ref[co, c] * xb[c:c + 1, :]
        rows.append(acc)
    conv = jnp.concatenate(rows, axis=0)                     # (Cout, T) f32

    # Fused nearest 2x2 upsample: one matmul against the constant 0/1 expansion
    # operator.  The result slab is lane-dense (4T is a multiple of 128), so the
    # stores are full-width vst rather than masked partial stores.
    up = jnp.dot(conv, e_ref[...],
                 preferred_element_type=jnp.float32,
                 precision=jax.lax.Precision.HIGHEST)        # (Cout, 4T)

    o_ref[0, :cout, :] = up.astype(o_ref.dtype)
    # Fused channel concat: copy the skip feature map into channels [Cout:).
    o_ref[0, cout:, :] = f_ref[0].astype(o_ref.dtype)


def _pick_row_tile(H, W, max_lanes=512):
    """Rows of x handled per grid step.  th*W is the lane extent of the x block;
    prefer multiples of 128 (dense loads/stores) within a modest VMEM budget.
    (Budget is conservative so the same config also fits v7x's 64 MiB VMEM.)"""
    divs = [t for t in range(1, H + 1) if H % t == 0]
    good = [t for t in divs if (t * W) % 128 == 0 and t * W <= max_lanes]
    if good:
        return max(good)
    good = [t for t in divs if (t * W) % 128 == 0]
    if good:
        return min(good)
    return H  # full spatial extent always satisfies the block-shape rules


def upsample_forward(x, feature_map, w, b):
    """Pallas equivalent of UpSample.forward (NCHW, nearest 2x, 1x1 conv, concat).

    x:           (N, C, H, W)
    feature_map: (N, C//2, 2H, 2W)
    w:           (C//2, C)     PyTorch Conv2d weight (out, in), 1x1 squeezed
    b:           (C//2,)
    returns:     (N, C, 2H, 2W)
    """
    N, C, H, W = x.shape
    Cout = C // 2
    assert w.shape == (Cout, C) and b.shape == (Cout,)
    assert feature_map.shape == (N, Cout, 2 * H, 2 * W)

    th = _pick_row_tile(H, W)
    t = th * W                                   # input lanes per tile
    grid = (N, H // th)                          # both axes parallel (megacore)

    # Free, layout-preserving views: flatten spatial onto the lane axis.
    x_flat = x.reshape(N, C, H * W)
    f_flat = feature_map.reshape(N, Cout, 4 * H * W)

    # Nearest 2x2 expansion operator in the flattened-spatial domain:
    #   E[r*W + w, (2r+dh)*2W + 2w + dw] = 1   for dh, dw in {0, 1}
    row_dup = jnp.repeat(jnp.eye(th, dtype=x.dtype), 2, axis=1)   # (th, 2th)
    col_dup = jnp.repeat(jnp.eye(W, dtype=x.dtype), 2, axis=1)    # (W, 2W)
    expand = jnp.kron(row_dup, col_dup)                           # (t, 4t)

    m = N * H * W
    cost = pl.CostEstimate(
        flops=2 * m * C * Cout + 8 * m * Cout * t,
        transcendentals=0,
        bytes_accessed=4 * (m * C + 4 * m * Cout + 4 * m * C + 4 * t * t),
    )

    out_flat = pl.pallas_call(
        _upsample_concat_kernel,
        out_shape=jax.ShapeDtypeStruct((N, C, 4 * H * W), x.dtype),
        grid_spec=pltpu.PrefetchScalarGridSpec(
            num_scalar_prefetch=0,
            grid=grid,
            in_specs=[
                pl.BlockSpec(memory_space=pltpu.MemorySpace.SMEM),        # w
                pl.BlockSpec(memory_space=pltpu.MemorySpace.SMEM),        # b
                pl.BlockSpec((t, 4 * t), lambda n, i: (0, 0)),            # expand (resident)
                pl.BlockSpec((1, C, t), lambda n, i: (n, 0, i)),          # x tile
                pl.BlockSpec((1, Cout, 4 * t), lambda n, i: (n, 0, i)),   # skip tile
            ],
            out_specs=pl.BlockSpec((1, C, 4 * t), lambda n, i: (n, 0, i)),
        ),
        compiler_params=pltpu.CompilerParams(
            dimension_semantics=("parallel", "parallel")),
        cost_estimate=cost,
    )(w, b, expand, x_flat, f_flat)

    return out_flat.reshape(N, C, 2 * H, 2 * W)


if __name__ == "__main__":
    key = jax.random.PRNGKey(0)
    k_x, k_f, k_w, k_b = jax.random.split(key, 4)

    N, C, H, W = 2, 4, 16, 16
    Cout = C // 2

    x = jax.random.normal(k_x, (N, C, H, W), dtype=jnp.float32)
    feature_map = jax.random.normal(k_f, (N, Cout, 2 * H, 2 * W), dtype=jnp.float32)
    w = jax.random.normal(k_w, (Cout, C), dtype=jnp.float32) * 0.1   # Conv2d (out, in)
    b = jax.random.normal(k_b, (Cout,), dtype=jnp.float32) * 0.1

    out = jax.jit(upsample_forward)(x, feature_map, w, b)
    out = jax.block_until_ready(out)

    # Pure-JAX reference: nearest 2x upsample -> 1x1 conv -> channel concat.
    up_ref = jnp.repeat(jnp.repeat(x, 2, axis=2), 2, axis=3)
    conv_ref = jnp.einsum("nchw,oc->nohw", up_ref, w,
                          precision=jax.lax.Precision.HIGHEST)
    conv_ref = conv_ref + b[None, :, None, None]
    ref = jnp.concatenate([conv_ref, feature_map], axis=1)

    assert out.shape == (N, C, 2 * H, 2 * W)
    assert jnp.allclose(out, ref, atol=1e-5, rtol=1e-5)
    print("KERNEL_OK")
</pallas_src>

<mosaic_0001>
module attributes {stable_mosaic.version = 11 : i64} {
  func.func @_upsample_concat_kernel(%arg0: i32, %arg1: i32, %arg2: memref<2x4xf32, #tpu.memory_space<smem>>, %arg3: memref<2xf32, #tpu.memory_space<smem>>, %arg4: memref<256x1024xf32, #tpu.memory_space<vmem>>, %arg5: memref<1x4x256xf32, #tpu.memory_space<vmem>>, %arg6: memref<1x2x1024xf32, #tpu.memory_space<vmem>>, %arg7: memref<1x4x1024xf32, #tpu.memory_space<vmem>>) attributes {dimension_semantics = [#tpu.dimension_semantics<parallel>, #tpu.dimension_semantics<parallel>], iteration_bounds = array<i64: 2, 1>, scalar_prefetch = 0 : i64, scratch_operands = 0 : i64, tpu.core_type = #tpu.core_type<tc>, window_params = [{transform_indices = @transform_0, window_bounds = array<i64: 2, 4>}, {transform_indices = @transform_1, window_bounds = array<i64: 2>}, {pipeline_mode = #tpu.pipeline_mode<synchronous>, transform_indices = @transform_2, window_bounds = array<i64: 256, 1024>}, {transform_indices = @transform_3, window_bounds = array<i64: 1, 4, 256>}, {transform_indices = @transform_4, window_bounds = array<i64: 1, 2, 1024>}, {transform_indices = @transform_5, window_bounds = array<i64: 1, 4, 1024>}]} {
    %c0 = arith.constant 0 : index
    %c0_0 = arith.constant 0 : index
    %c0_1 = arith.constant 0 : index
    %0 = vector.load %arg5[%c0, %c0_0, %c0_1] : memref<1x4x256xf32, #tpu.memory_space<vmem>>, vector<1x4x256xf32>
    %1 = vector.shape_cast %0 : vector<1x4x256xf32> to vector<4x256xf32>
    %cst = arith.constant 0.000000e+00 : f32
    %2 = vector.broadcast %cst : f32 to vector<1x256xf32>
    %c0_2 = arith.constant 0 : index
    %3 = memref.load %arg3[%c0_2] : memref<2xf32, #tpu.memory_space<smem>>
    %4 = vector.broadcast %3 : f32 to vector<1x256xf32>
    %5 = arith.addf %2, %4 : vector<1x256xf32>
    %c0_3 = arith.constant 0 : index
    %c0_4 = arith.constant 0 : index
    %6 = memref.load %arg2[%c0_3, %c0_4] : memref<2x4xf32, #tpu.memory_space<smem>>
    %7 = vector.extract_strided_slice %1 {offsets = [0, 0], sizes = [1, 256], strides = [1, 1]} : vector<4x256xf32> to vector<1x256xf32>
    %8 = vector.broadcast %6 : f32 to vector<1x256xf32>
    %9 = arith.mulf %8, %7 : vector<1x256xf32>
    %10 = arith.addf %5, %9 : vector<1x256xf32>
    %c0_5 = arith.constant 0 : index
    %c1 = arith.constant 1 : index
    %11 = memref.load %arg2[%c0_5, %c1] : memref<2x4xf32, #tpu.memory_space<smem>>
    %12 = vector.extract_strided_slice %1 {offsets = [1, 0], sizes = [1, 256], strides = [1, 1]} : vector<4x256xf32> to vector<1x256xf32>
    %13 = vector.broadcast %11 : f32 to vector<1x256xf32>
    %14 = arith.mulf %13, %12 : vector<1x256xf32>
    %15 = arith.addf %10, %14 : vector<1x256xf32>
    %c0_6 = arith.constant 0 : index
    %c2 = arith.constant 2 : index
    %16 = memref.load %arg2[%c0_6, %c2] : memref<2x4xf32, #tpu.memory_space<smem>>
    %17 = vector.extract_strided_slice %1 {offsets = [2, 0], sizes = [1, 256], strides = [1, 1]} : vector<4x256xf32> to vector<1x256xf32>
    %18 = vector.broadcast %16 : f32 to vector<1x256xf32>
    %19 = arith.mulf %18, %17 : vector<1x256xf32>
    %20 = arith.addf %15, %19 : vector<1x256xf32>
    %c0_7 = arith.constant 0 : index
    %c3 = arith.constant 3 : index
    %21 = memref.load %arg2[%c0_7, %c3] : memref<2x4xf32, #tpu.memory_space<smem>>
    %22 = vector.extract_strided_slice %1 {offsets = [3, 0], sizes = [1, 256], strides = [1, 1]} : vector<4x256xf32> to vector<1x256xf32>
    %23 = vector.broadcast %21 : f32 to vector<1x256xf32>
    %24 = arith.mulf %23, %22 : vector<1x256xf32>
    %25 = arith.addf %20, %24 : vector<1x256xf32>
    %cst_8 = arith.constant 0.000000e+00 : f32
    %26 = vector.broadcast %cst_8 : f32 to vector<1x256xf32>
    %c1_9 = arith.constant 1 : index
    %27 = memref.load %arg3[%c1_9] : memref<2xf32, #tpu.memory_space<smem>>
    %28 = vector.broadcast %27 : f32 to vector<1x256xf32>
    %29 = arith.addf %26, %28 : vector<1x256xf32>
    %c1_10 = arith.constant 1 : index
    %c0_11 = arith.constant 0 : index
    %30 = memref.load %arg2[%c1_10, %c0_11] : memref<2x4xf32, #tpu.memory_space<smem>>
    %31 = vector.extract_strided_slice %1 {offsets = [0, 0], sizes = [1, 256], strides = [1, 1]} : vector<4x256xf32> to vector<1x256xf32>
    %32 = vector.broadcast %30 : f32 to vector<1x256xf32>
    %33 = arith.mulf %32, %31 : vector<1x256xf32>
    %34 = arith.addf %29, %33 : vector<1x256xf32>
    %c1_12 = arith.constant 1 : index
    %c1_13 = arith.constant 1 : index
    %35 = memref.load %arg2[%c1_12, %c1_13] : memref<2x4xf32, #tpu.memory_space<smem>>
    %36 = vector.extract_strided_slice %1 {offsets = [1, 0], sizes = [1, 256], strides = [1, 1]} : vector<4x256xf32> to vector<1x256xf32>
    %37 = vector.broadcast %35 : f32 to vector<1x256xf32>
    %38 = arith.mulf %37, %36 : vector<1x256xf32>
    %39 = arith.addf %34, %38 : vector<1x256xf32>
    %c1_14 = arith.constant 1 : index
    %c2_15 = arith.constant 2 : index
    %40 = memref.load %arg2[%c1_14, %c2_15] : memref<2x4xf32, #tpu.memory_space<smem>>
    %41 = vector.extract_strided_slice %1 {offsets = [2, 0], sizes = [1, 256], strides = [1, 1]} : vector<4x256xf32> to vector<1x256xf32>
    %42 = vector.broadcast %40 : f32 to vector<1x256xf32>
    %43 = arith.mulf %42, %41 : vector<1x256xf32>
    %44 = arith.addf %39, %43 : vector<1x256xf32>
    %c1_16 = arith.constant 1 : index
    %c3_17 = arith.constant 3 : index
    %45 = memref.load %arg2[%c1_16, %c3_17] : memref<2x4xf32, #tpu.memory_space<smem>>
    %46 = vector.extract_strided_slice %1 {offsets = [3, 0], sizes = [1, 256], strides = [1, 1]} : vector<4x256xf32> to vector<1x256xf32>
    %47 = vector.broadcast %45 : f32 to vector<1x256xf32>
    %48 = arith.mulf %47, %46 : vector<1x256xf32>
    %49 = arith.addf %44, %48 : vector<1x256xf32>
    %50 = tpu.concatenate %25, %49 in 0 : vector<1x256xf32>, vector<1x256xf32> -> vector<2x256xf32>
    %c0_18 = arith.constant 0 : index
    %c0_19 = arith.constant 0 : index
    %51 = vector.load %arg4[%c0_18, %c0_19] : memref<256x1024xf32, #tpu.memory_space<vmem>>, vector<256x1024xf32>
    %cst_20 = arith.constant dense<0.000000e+00> : vector<2x1024xf32>
    %52 = tpu.matmul %50, %51, %cst_20 {dimension_numbers = #tpu.dot_dimension_numbers<[1], [0], [0], [1], [0, 0, 1, 1], [], []>, precision = #tpu.contract_precision<fp32>} : vector<2x256xf32>, vector<256x1024xf32>, vector<2x1024xf32> -> vector<2x1024xf32>
    %c0_21 = arith.constant 0 : index
    %c0_22 = arith.constant 0 : index
    %c0_23 = arith.constant 0 : index
    %53 = vector.load %arg7[%c0_21, %c0_22, %c0_23] : memref<1x4x1024xf32, #tpu.memory_space<vmem>>, vector<1x2x1024xf32>
    %54 = vector.shape_cast %53 : vector<1x2x1024xf32> to vector<2x1024xf32>
    %55 = vector.shape_cast %52 : vector<2x1024xf32> to vector<1x2x1024xf32>
    tpu.vector_store %arg7[%c0_21, %c0_22, %c0_23], %55 {strides = array<i32>} : memref<1x4x1024xf32, #tpu.memory_space<vmem>>, vector<1x2x1024xf32>,
    %c0_24 = arith.constant 0 : index
    %c0_25 = arith.constant 0 : index
    %c0_26 = arith.constant 0 : index
    %56 = vector.load %arg6[%c0_24, %c0_25, %c0_26] : memref<1x2x1024xf32, #tpu.memory_space<vmem>>, vector<1x2x1024xf32>
    %57 = vector.shape_cast %56 : vector<1x2x1024xf32> to vector<2x1024xf32>
    %c0_27 = arith.constant 0 : index
    %c2_28 = arith.constant 2 : index
    %c0_29 = arith.constant 0 : index
    %58 = vector.load %arg7[%c0_27, %c2_28, %c0_29] : memref<1x4x1024xf32, #tpu.memory_space<vmem>>, vector<1x2x1024xf32>
    %59 = vector.shape_cast %58 : vector<1x2x1024xf32> to vector<2x1024xf32>
    %60 = vector.shape_cast %57 : vector<2x1024xf32> to vector<1x2x1024xf32>
    tpu.vector_store %arg7[%c0_27, %c2_28, %c0_29], %60 {strides = array<i32>} : memref<1x4x1024xf32, #tpu.memory_space<vmem>>, vector<1x2x1024xf32>,
    return
  }
  func.func @transform_0(%arg0: i32, %arg1: i32) -> (i32, i32) {
    %c0_i32 = arith.constant 0 : i32
    %c0_i32_0 = arith.constant 0 : i32
    %c0_i32_1 = arith.constant 0 : i32
    return %c0_i32, %c0_i32_0 : i32, i32
  }
  func.func @transform_1(%arg0: i32, %arg1: i32) -> i32 {
    %c0_i32 = arith.constant 0 : i32
    %c0_i32_0 = arith.constant 0 : i32
    return %c0_i32 : i32
  }
  func.func @transform_2(%arg0: i32, %arg1: i32) -> (i32, i32) {
    %c0_i32 = arith.constant 0 : i32
    %c0_i32_0 = arith.constant 0 : i32
    %c0_i32_1 = arith.constant 0 : i32
    return %c0_i32, %c0_i32_0 : i32, i32
  }
  func.func @transform_3(%arg0: i32, %arg1: i32) -> (i32, i32, i32) {
    %c0_i32 = arith.constant 0 : i32
    %c0_i32_0 = arith.constant 0 : i32
    return %arg0, %c0_i32, %arg1 : i32, i32, i32
  }
  func.func @transform_4(%arg0: i32, %arg1: i32) -> (i32, i32, i32) {
    %c0_i32 = arith.constant 0 : i32
    %c0_i32_0 = arith.constant 0 : i32
    return %arg0, %c0_i32, %arg1 : i32, i32, i32
  }
  func.func @transform_5(%arg0: i32, %arg1: i32) -> (i32, i32, i32) {
    %c0_i32 = arith.constant 0 : i32
    %c0_i32_0 = arith.constant 0 : i32
    return %arg0, %c0_i32, %arg1 : i32, i32, i32
  }
}

</mosaic_0001>

<llo_original>
// kernel: upsample_forward.1
$region0: #{upsample_forward.1}
  #allocation0 [shape = 'u32[]', space=smem, size = 0x4, offset = 0x4, fixed_abs, tag = 'smem constant byte address 0x4 - core index']
  #allocation1 [shape = 'u32[144,128]{1,0:T(1,128)}', space=vmem, size = 0x12000, scoped, tag = 'internal scratch']
  %s0 = inlined_call_operand.vmem [shape: f32[2,4], index: 0, kind: input, shape index: {}]
  %s1 = inlined_call_operand.vmem [shape: f32[2], index: 1, kind: input, shape index: {}]
  %s2 = inlined_call_operand.vmem [shape: f32[256,1024], index: 2, kind: input, shape index: {}]
  %s3 = inlined_call_operand.vmem [shape: f32[2,4,256], index: 3, kind: input, shape index: {}]
  %s4 = inlined_call_operand.vmem [shape: f32[2,2,1024], index: 4, kind: input, shape index: {}]
  %s5 = inlined_call_operand.vmem [shape: f32[2,4,1024], index: 5, kind: output, shape index: {}]
  %s6 = sld [smem:[#allocation0]]
  $region61: #{upsample_forward.1} parent=0
    _
  %s8 = ssub.s32 1, %s6
  %s9 = scalar_select 0, %s8, %s6
  $region1: #{upsample_forward.1} parent=0
    #allocation2 [shape = 'u8[1024]{0}', space=smem, size = 0x400, scoped, tag = 'input window, operand 0, single buffered']
    #allocation3 [shape = 's32[2]{0}', space=sflag, size = 0x8, scoped, tag = 'scoped memory for upsample_forward.1']
    #allocation4 [shape = 'u8[512]{0}', space=smem, size = 0x200, scoped, tag = 'input window, operand 1, single buffered']
    #allocation5 [shape = 's32[1]{0}', space=sflag, size = 0x4, scoped, tag = 'scoped memory for upsample_forward.1']
    %10 = vsyncpa [#allocation3], 0
    %11 = vsyncpa [#allocation5], 0
    loop: start=0, step=1, limit=4
    $region2: #{upsample_forward.1} parent=1 // loop_pre_header
      _
    $region3: #{upsample_forward.1} parent=1 // loop_header
      %s13 = sphi 0, %s17
      %p14 = scmp.ge.s32.totalorder %s13, 4
      %s20 = sphi 0, %s32
      %s21 = sphi 0, %s28
      %s22 = sphi 0, %s20
      %s23 = sphi 0, %s21
      %s24 = sphi 0, %s22
      %s25 = sphi 0, %s23
      %s33 = sphi 0, %s33
      %s35 = sphi 0, %s33
      %s36 = sphi 0, %s35
      %s50 = sphi 0, %s36
      %s54 = sphi 0, %s54
      %s56 = sphi 0, %s54
      %s57 = sphi 0, %s56
      %s71 = sphi 0, %s57
      %s75 = sphi 0, %s75
      %s77 = sphi 0, %s75
      %s78 = sphi 0, %s77
      %s92 = sphi 0, %s78
      %s100 = sphi 0, %s102
      %s103 = sphi 0, %s100
      %s104 = sphi 0, %s103
      %s120 = sphi 0, %s104
      %s128 = sphi 0, %s130
      %s131 = sphi 0, %s128
      %s132 = sphi 0, %s131
      %s148 = sphi 0, %s132
      %s156 = sphi 0, %s158
      %s159 = sphi 0, %s156
      %s160 = sphi 0, %s159
      %s176 = sphi 0, %s160
    $region4: #{upsample_forward.1} parent=1 // loop_header_branch
      %16 = sbr.rel (%p14) target = $region8
    $region5: #{upsample_forward.1} parent=1 // loop_body
      %s18 = ssub.s32 %s13, 1
      %s19 = ssub.s32 %s13, 2
      %s26 = sadd.s32 1, %s21
      %p27 = scmp.ge.s32.totalorder %s26, 1
      %s28 = scalar_select %p27, 0, %s26
      %s29 = sadd.s32 1, %s20
      %s30 = scalar_select %p27, %s29, %s20
      %p31 = scmp.ge.s32.totalorder %s30, 2
      %s32 = scalar_select %p31, 0, %s30
      %s34 = sadd.s32 %s33, 1
      %p37 = scmp.eq.s32.totalorder %s13, 1
      %p38 = scmp.ne.s32.totalorder %s33, %s35
      %p39 = scmp.eq.s32.totalorder %s13, 0
      %p40 = por %p38, %p39
      %p41 = scmp.ne.s32.totalorder %s33, %s35
      %p42 = scmp.eq.s32.totalorder %s18, 1
      %p43 = por %p41, %p42
      %p44 = scmp.ne.s32.totalorder %s35, %s36
      %p45 = scmp.eq.s32.totalorder %s18, 0
      %p46 = por %p44, %p45
      %p47 = scmp.ne.s32.totalorder %s35, %s36
      %p48 = scmp.eq.s32.totalorder %s19, 1
      %p49 = por %p47, %p48
      %p51 = scmp.ne.s32.totalorder %s36, %s50
      %p52 = scmp.eq.s32.totalorder %s19, 0
      %p53 = por %p51, %p52
      %s55 = sadd.s32 %s54, 1
      %p58 = scmp.eq.s32.totalorder %s13, 1
      %p59 = scmp.ne.s32.totalorder %s54, %s56
      %p60 = scmp.eq.s32.totalorder %s13, 0
      %p61 = por %p59, %p60
      %p62 = scmp.ne.s32.totalorder %s54, %s56
      %p63 = scmp.eq.s32.totalorder %s18, 1
      %p64 = por %p62, %p63
      %p65 = scmp.ne.s32.totalorder %s56, %s57
      %p66 = scmp.eq.s32.totalorder %s18, 0
      %p67 = por %p65, %p66
      %p68 = scmp.ne.s32.totalorder %s56, %s57
      %p69 = scmp.eq.s32.totalorder %s19, 1
      %p70 = por %p68, %p69
      %p72 = scmp.ne.s32.totalorder %s57, %s71
      %p73 = scmp.eq.s32.totalorder %s19, 0
      %p74 = por %p72, %p73
      %s76 = sadd.s32 %s75, 1
      %p79 = scmp.eq.s32.totalorder %s13, 1
      %p80 = scmp.ne.s32.totalorder %s75, %s77
      %p81 = scmp.eq.s32.totalorder %s13, 0
      %p82 = por %p80, %p81
      %p83 = scmp.ne.s32.totalorder %s75, %s77
      %p84 = scmp.eq.s32.totalorder %s18, 1
      %p85 = por %p83, %p84
      %p86 = scmp.ne.s32.totalorder %s77, %s78
      %p87 = scmp.eq.s32.totalorder %s18, 0
      %p88 = por %p86, %p87
      %p89 = scmp.ne.s32.totalorder %s77, %s78
      %p90 = scmp.eq.s32.totalorder %s19, 1
      %p91 = por %p89, %p90
      %p93 = scmp.ne.s32.totalorder %s78, %s92
      %p94 = scmp.eq.s32.totalorder %s19, 0
      %p95 = por %p93, %p94
      %s96 = ssub.s32 %s20, %s32
      %s97 = ssub.s32 %s21, %s28
      %s98 = sor.u32 %s96, %s97
      %p99 = scmp.eq.s32.totalorder %s98, 0
      %s101 = sadd.s32 %s100, 1
      %s102 = scalar_select %p99, %s100, %s101
      %p105 = pneg %p99
      %p106 = scmp.eq.s32.totalorder %s13, 1
      %p107 = por %p105, %p106
      %p108 = scmp.ne.s32.totalorder %s100, %s103
      %p109 = scmp.eq.s32.totalorder %s13, 0
      %p110 = por %p108, %p109
      %p111 = scmp.ne.s32.totalorder %s100, %s103
      %p112 = scmp.eq.s32.totalorder %s18, 1
      %p113 = por %p111, %p112
      %p114 = scmp.ne.s32.totalorder %s103, %s104
      %p115 = scmp.eq.s32.totalorder %s18, 0
      %p116 = por %p114, %p115
      %p117 = scmp.ne.s32.totalorder %s103, %s104
      %p118 = scmp.eq.s32.totalorder %s19, 1
      %p119 = por %p117, %p118
      %p121 = scmp.ne.s32.totalorder %s104, %s120
      %p122 = scmp.eq.s32.totalorder %s19, 0
      %p123 = por %p121, %p122
      %s124 = ssub.s32 %s20, %s32
      %s125 = ssub.s32 %s21, %s28
      %s126 = sor.u32 %s124, %s125
      %p127 = scmp.eq.s32.totalorder %s126, 0
      %s129 = sadd.s32 %s128, 1
      %s130 = scalar_select %p127, %s128, %s129
      %p133 = pneg %p127
      %p134 = scmp.eq.s32.totalorder %s13, 1
      %p135 = por %p133, %p134
      %p136 = scmp.ne.s32.totalorder %s128, %s131
      %p137 = scmp.eq.s32.totalorder %s13, 0
      %p138 = por %p136, %p137
      %p139 = scmp.ne.s32.totalorder %s128, %s131
      %p140 = scmp.eq.s32.totalorder %s18, 1
      %p141 = por %p139, %p140
      %p142 = scmp.ne.s32.totalorder %s131, %s132
      %p143 = scmp.eq.s32.totalorder %s18, 0
      %p144 = por %p142, %p143
      %p145 = scmp.ne.s32.totalorder %s131, %s132
      %p146 = scmp.eq.s32.totalorder %s19, 1
      %p147 = por %p145, %p146
      %p149 = scmp.ne.s32.totalorder %s132, %s148
      %p150 = scmp.eq.s32.totalorder %s19, 0
      %p151 = por %p149, %p150
      %s152 = ssub.s32 %s20, %s32
      %s153 = ssub.s32 %s21, %s28
      %s154 = sor.u32 %s152, %s153
      %p155 = scmp.eq.s32.totalorder %s154, 0
      %s157 = sadd.s32 %s156, 1
      %s158 = scalar_select %p155, %s156, %s157
      %p161 = pneg %p155
      %p162 = scmp.eq.s32.totalorder %s13, 1
      %p163 = por %p161, %p162
      %p164 = scmp.ne.s32.totalorder %s156, %s159
      %p165 = scmp.eq.s32.totalorder %s13, 0
      %p166 = por %p164, %p165
      %p167 = scmp.ne.s32.totalorder %s156, %s159
      %p168 = scmp.eq.s32.totalorder %s18, 1
      %p169 = por %p167, %p168
      %p170 = scmp.ne.s32.totalorder %s159, %s160
      %p171 = scmp.eq.s32.totalorder %s18, 0
      %p172 = por %p170, %p171
      %p173 = scmp.ne.s32.totalorder %s159, %s160
      %p174 = scmp.eq.s32.totalorder %s19, 1
      %p175 = por %p173, %p174
      %p177 = scmp.ne.s32.totalorder %s160, %s176
      %p178 = scmp.eq.s32.totalorder %s19, 0
      %p179 = por %p177, %p178
      %p180 = scmp.le.s32.totalorder 1, %s13
      %p181 = scmp.lt.s32.totalorder %s13, 3
      %p182 = pnand %p180, %p181
      %p183 = pneg %p182
      // Predicated region
      $region9: #{upsample_forward.1} parent=5 // pred_check
        _
      $region10: #{upsample_forward.1} parent=5 // pred_check_branch
        %185 = sbr.rel (%p182) target = $region12
      $region11: #{upsample_forward.1} parent=5 // pred_region
        %s186 = ssub.s32 %s13, 1
        // Predicated region
        $region13: #{upsample_forward.1} parent=11 // pred_check
          %p187 = pneg %p46
        $region14: #{upsample_forward.1} parent=11 // pred_check_branch
          %189 = sbr.rel (%p187) target = $region16
        $region15: #{upsample_forward.1} parent=11 // pred_region
          %s191 = ssub.s32 32, 32
          %192 = vsyncadd [#allocation3], %s191
          %s194 = sshll.u32 %s0, 4
          %s195 = int_to_ptr.vmem [resolvable:$true] %s194
          %197 = dma.vmem_to_smem %s195, 32, [#allocation2], [#allocation3]
        $region16: #{upsample_forward.1} parent=11 // pred_fallthru
          _
        // Predicated region
        $region17: #{upsample_forward.1} parent=11 // pred_check
          %p198 = pneg %p67
        $region18: #{upsample_forward.1} parent=11 // pred_check_branch
          %200 = sbr.rel (%p198) target = $region20
        $region19: #{upsample_forward.1} parent=11 // pred_region
          %s202 = ssub.s32 16, 16
          %203 = vsyncadd [#allocation5], %s202
          %s205 = sshll.u32 %s1, 4
          %s206 = int_to_ptr.vmem [resolvable:$true] %s205
          %208 = dma.vmem_to_smem %s206, 16, [#allocation4], [#allocation5]
        $region20: #{upsample_forward.1} parent=11 // pred_fallthru
          _
        // Predicated region
        $region21: #{upsample_forward.1} parent=11 // pred_check
          %p209 = pneg %p88
        $region22: #{upsample_forward.1} parent=11 // pred_check_branch
          %211 = sbr.rel (%p209) target = $region24
        $region23: #{upsample_forward.1} parent=11 // pred_region
          _
        $region24: #{upsample_forward.1} parent=11 // pred_fallthru
          _
      $region12: #{upsample_forward.1} parent=5 // pred_fallthru
        _
      %p212 = scmp.lt.s32.totalorder %s13, 2
      // Predicated region
      $region25: #{upsample_forward.1} parent=5 // pred_check
        %p213 = pneg %p212
      $region26: #{upsample_forward.1} parent=5 // pred_check_branch
        %215 = sbr.rel (%p213) target = $region28
      $region27: #{upsample_forward.1} parent=5 // pred_region
        // Predicated region
        $region29: #{upsample_forward.1} parent=27 // pred_check
          %p216 = pneg %p110
        $region30: #{upsample_forward.1} parent=27 // pred_check_branch
          %218 = sbr.rel (%p216) target = $region32
        $region31: #{upsample_forward.1} parent=27 // pred_region
          %s219 = smul.u32 2, %s21
          %p220 = scmp.lt.s32.totalorder %s20, 1
          %s221 = scalar_select %p220, %s20, 1
          %p222 = scmp.lt.s32.totalorder %s219, 1
          %s223 = scalar_select %p222, %s219, 1
          %s224 = smul.addr %s221, 2
          %s225 = sadd.s32 %s223, %s224
          %s226 = smul.addr %s225, 4
          %s227 = scalar_lea.vmem %s3, %s226
          %s228 = smul.u32 2, %s21
        $region32: #{upsample_forward.1} parent=27 // pred_fallthru
          _
        // Predicated region
        $region33: #{upsample_forward.1} parent=27 // pred_check
          %p229 = pneg %p138
        $region34: #{upsample_forward.1} parent=27 // pred_check_branch
          %231 = sbr.rel (%p229) target = $region36
        $region35: #{upsample_forward.1} parent=27 // pred_region
          %s232 = smul.u32 8, %s21
          %p233 = scmp.lt.s32.totalorder %s20, 1
          %s234 = scalar_select %p233, %s20, 1
          %p235 = scmp.lt.s32.totalorder %s232, 7
          %s236 = scalar_select %p235, %s232, 7
          %s237 = smul.addr %s234, 8
          %s238 = sadd.s32 %s236, %s237
          %s239 = smul.addr %s238, 2
          %s240 = scalar_lea.vmem %s4, %s239
          %s241 = smul.u32 8, %s21
        $region36: #{upsample_forward.1} parent=27 // pred_fallthru
          _
      $region28: #{upsample_forward.1} parent=5 // pred_fallthru
        _
      %p242 = scmp.le.s32.totalorder 1, %s13
      %p243 = scmp.lt.s32.totalorder %s13, 3
      %p244 = pnand %p242, %p243
      %p245 = pneg %p244
      // Predicated region
      $region37: #{upsample_forward.1} parent=5 // pred_check
        _
      $region38: #{upsample_forward.1} parent=5 // pred_check_branch
        %247 = sbr.rel (%p244) target = $region40
      $region39: #{upsample_forward.1} parent=5 // pred_region
        %s248 = ssub.s32 %s13, 1
        // Predicated region
        $region41: #{upsample_forward.1} parent=39 // pred_check
          %p249 = pneg %p46
        $region42: #{upsample_forward.1} parent=39 // pred_check_branch
          %251 = sbr.rel (%p249) target = $region44
        $region43: #{upsample_forward.1} parent=39 // pred_region
          %252 = dma.done [#allocation3], 32
        $region44: #{upsample_forward.1} parent=39 // pred_fallthru
          _
        // Predicated region
        $region45: #{upsample_forward.1} parent=39 // pred_check
          %p253 = pneg %p67
        $region46: #{upsample_forward.1} parent=39 // pred_check_branch
          %255 = sbr.rel (%p253) target = $region48
        $region47: #{upsample_forward.1} parent=39 // pred_region
          %256 = dma.done [#allocation5], 16
        $region48: #{upsample_forward.1} parent=39 // pred_fallthru
          _
        %257 = sfence
        %p258 = pneg %p46
        %p259 = pneg %p43
        %p260 = pneg %p67
        %p261 = pneg %p64
        %p262 = pneg %p88
        %p263 = pneg %p85
        %s264 = smul.u32 2, %s23
        %p265 = scmp.lt.s32.totalorder %s22, 1
        %s266 = scalar_select %p265, %s22, 1
        %p267 = scmp.lt.s32.totalorder %s264, 1
        %s268 = scalar_select %p267, %s264, 1
        %s269 = smul.addr %s266, 2
        %s270 = sadd.s32 %s268, %s269
        %s271 = smul.addr %s270, 4
        %s272 = scalar_lea.vmem %s3, %s271
        %p273 = pneg %p116
        %p274 = pneg %p113
        %s275 = smul.u32 8, %s23
        %p276 = scmp.lt.s32.totalorder %s22, 1
        %s277 = scalar_select %p276, %s22, 1
        %p278 = scmp.lt.s32.totalorder %s275, 7
        %s279 = scalar_select %p278, %s275, 7
        %s280 = smul.addr %s277, 8
        %s281 = sadd.s32 %s279, %s280
        %s282 = smul.addr %s281, 2
        %s283 = scalar_lea.vmem %s4, %s282
        %p284 = pneg %p144
        %p285 = pneg %p141
        %p286 = pneg %p172
        %p287 = pneg %p169
        %s288 = smul.u32 8, %s23
        %p289 = scmp.lt.s32.totalorder %s22, 1
        %s290 = scalar_select %p289, %s22, 1
        %p291 = scmp.lt.s32.totalorder %s288, 7
        %s292 = scalar_select %p291, %s288, 7
        %s293 = smul.addr %s290, 8
        %s294 = sadd.s32 %s292, %s293
        %s295 = smul.addr %s294, 4
        %s296 = scalar_lea.vmem %s5, %s295
        %s297 = smul.u32 2, %s23
        %p298 = scmp.lt.s32.totalorder %s22, 1
        %s299 = scalar_select %p298, %s22, 1
        %p300 = scmp.lt.s32.totalorder %s297, 1
        %s301 = scalar_select %p300, %s297, 1
        %s302 = smul.addr %s299, 2
        %s303 = sadd.s32 %s301, %s302
        %s304 = smul.addr %s303, 4
        %s305 = scalar_lea.vmem %s3, %s304
        %s306 = smul.u32 2, %s23
        %s307 = smul.u32 8, %s23
        %p308 = scmp.lt.s32.totalorder %s22, 1
        %s309 = scalar_select %p308, %s22, 1
        %p310 = scmp.lt.s32.totalorder %s307, 7
        %s311 = scalar_select %p310, %s307, 7
        %s312 = smul.addr %s309, 8
        %s313 = sadd.s32 %s311, %s312
        %s314 = smul.addr %s313, 2
        %s315 = scalar_lea.vmem %s4, %s314
        %s316 = smul.u32 8, %s23
        %s317 = smul.u32 8, %s23
        %p318 = scmp.lt.s32.totalorder %s22, 1
        %s319 = scalar_select %p318, %s22, 1
        %p320 = scmp.lt.s32.totalorder %s317, 7
        %s321 = scalar_select %p320, %s317, 7
        %s322 = smul.addr %s319, 8
        %s323 = sadd.s32 %s321, %s322
        %s324 = smul.addr %s323, 4
        %s325 = scalar_lea.vmem %s5, %s324
        %s326 = smul.u32 8, %s23
        %v327 = vld [vmem:[%s305] sm:$0xff]
        %s328 = sld [smem:[#allocation4]]
        %v329 = vstv %s328
        %v330 = vadd.f32 %v329, 0.0
        %s331 = sld [smem:[#allocation2]]
        %v332 = vstv %s331
        %v333 = vmul.f32 %v332, %v327
        %v334 = vadd.f32 %v330, %v333
        %s335 = sld [smem:[#allocation2 + $0x1]]
        %v336 = vstv %s335
        %v337 = vmul.f32 %v336, %v327
        %v339 = vrot.slane %v337, 5
        %v340 = vrot.slane %v339, 4
        %v342 = vadd.f32 %v334, %v340
        %s343 = sld [smem:[#allocation2 + $0x2]]
        %v344 = vstv %s343
        %v345 = vmul.f32 %v344, %v327
        %v347 = vrot.slane %v345, 6
        %v348 = vrot.slane %v347, 4
        %v350 = vadd.f32 %v342, %v348
        %s351 = sld [smem:[#allocation2 + $0x3]]
        %v352 = vstv %s351
        %v353 = vmul.f32 %v352, %v327
        %v355 = vrot.slane %v353, 7
        %v356 = vrot.slane %v355, 4
        %v358 = vadd.f32 %v350, %v356
        %s359 = sld [smem:[#allocation4 + $0x1]]
        %v360 = vstv %s359
        %v361 = vadd.f32 %v360, 0.0
        %s362 = sld [smem:[#allocation2 + $0x80]]
        %v363 = vstv %s362
        %v364 = vmul.f32 %v363, %v327
        %v365 = vadd.f32 %v361, %v364
        %s366 = sld [smem:[#allocation2 + $0x81]]
        %v367 = vstv %s366
        %v368 = vmul.f32 %v367, %v327
        %v370 = vrot.slane %v368, 5
        %v371 = vrot.slane %v370, 4
        %v373 = vadd.f32 %v365, %v371
        %s374 = sld [smem:[#allocation2 + $0x82]]
        %v375 = vstv %s374
        %v376 = vmul.f32 %v375, %v327
        %v378 = vrot.slane %v376, 6
        %v379 = vrot.slane %v378, 4
        %v381 = vadd.f32 %v373, %v379
        %s382 = sld [smem:[#allocation2 + $0x83]]
        %v383 = vstv %s382
        %v384 = vmul.f32 %v383, %v327
        %v386 = vrot.slane %v384, 7
        %v387 = vrot.slane %v386, 4
        %v389 = vadd.f32 %v381, %v387
        %v391 = vlaneseq
        %v392 = vshrl.u32 %v391, 7
        %v393 = vsub.s32 0, %v392
        %v394 = vrot.slane %v358, %v393
        %v395 = vlaneseq
        %v396 = vshrl.u32 %v395, 7
        %v397 = vsub.s32 4, %v396
        %v398 = vrot.slane %v358, %v397
        %v402 = vlaneseq
        %v403 = vshrl.u32 %v402, 7
        %v404 = vsub.s32 0, %v403
        %v405 = vrot.slane %v389, %v404
        %v406 = vlaneseq
        %v407 = vshrl.u32 %v406, 7
        %v408 = vsub.s32 4, %v407
        %v409 = vrot.slane %v389, %v408
        %vm412 = vcmask 1040384
        %v413 = vsel %vm412, %v394, %v405
        %v414 = vsel %vm412, %v398, %v409
        %v415 = vld [vmem:[%s2] sm:$0xff]
        %v416 = vld [vmem:[%s2 + $0x8] sm:$0xff]
        %v417 = vld [vmem:[%s2 + $0x10] sm:$0xff]
        %v418 = vld [vmem:[%s2 + $0x18] sm:$0xff]
        %v419 = vld [vmem:[%s2 + $0x20] sm:$0xff]
        %v420 = vld [vmem:[%s2 + $0x28] sm:$0xff]
        %v421 = vld [vmem:[%s2 + $0x30] sm:$0xff]
        %v422 = vld [vmem:[%s2 + $0x38] sm:$0xff]
        %v423 = vld [vmem:[%s2 + $0x40] sm:$0xff]
        %v424 = vld [vmem:[%s2 + $0x48] sm:$0xff]
        %v425 = vld [vmem:[%s2 + $0x50] sm:$0xff]
        %v426 = vld [vmem:[%s2 + $0x58] sm:$0xff]
        %v427 = vld [vmem:[%s2 + $0x60] sm:$0xff]
        %v428 = vld [vmem:[%s2 + $0x68] sm:$0xff]
        %v429 = vld [vmem:[%s2 + $0x70] sm:$0xff]
        %v430 = vld [vmem:[%s2 + $0x78] sm:$0xff]
        %v431 = vld [vmem:[%s2 + $0x80] sm:$0xff]
        %v432 = vld [vmem:[%s2 + $0x88] sm:$0xff]
        %v433 = vld [vmem:[%s2 + $0x90] sm:$0xff]
        %v434 = vld [vmem:[%s2 + $0x98] sm:$0xff]
        %v435 = vld [vmem:[%s2 + $0xa0] sm:$0xff]
        %v436 = vld [vmem:[%s2 + $0xa8] sm:$0xff]
        %v437 = vld [vmem:[%s2 + $0xb0] sm:$0xff]
        %v438 = vld [vmem:[%s2 + $0xb8] sm:$0xff]
        %v439 = vld [vmem:[%s2 + $0xc0] sm:$0xff]
        %v440 = vld [vmem:[%s2 + $0xc8] sm:$0xff]
        %v441 = vld [vmem:[%s2 + $0xd0] sm:$0xff]
        %v442 = vld [vmem:[%s2 + $0xd8] sm:$0xff]
        %v443 = vld [vmem:[%s2 + $0xe0] sm:$0xff]
        %v444 = vld [vmem:[%s2 + $0xe8] sm:$0xff]
        %v445 = vld [vmem:[%s2 + $0xf0] sm:$0xff]
        %v446 = vld [vmem:[%s2 + $0xf8] sm:$0xff]
        %v447 = vld [vmem:[%s2 + $0x100] sm:$0xff]
        %v448 = vld [vmem:[%s2 + $0x108] sm:$0xff]
        %v449 = vld [vmem:[%s2 + $0x110] sm:$0xff]
        %v450 = vld [vmem:[%s2 + $0x118] sm:$0xff]
        %v451 = vld [vmem:[%s2 + $0x120] sm:$0xff]
        %v452 = vld [vmem:[%s2 + $0x128] sm:$0xff]
        %v453 = vld [vmem:[%s2 + $0x130] sm:$0xff]
        %v454 = vld [vmem:[%s2 + $0x138] sm:$0xff]
        %v455 = vld [vmem:[%s2 + $0x140] sm:$0xff]
        %v456 = vld [vmem:[%s2 + $0x148] sm:$0xff]
        %v457 = vld [vmem:[%s2 + $0x150] sm:$0xff]
        %v458 = vld [vmem:[%s2 + $0x158] sm:$0xff]
        %v459 = vld [vmem:[%s2 + $0x160] sm:$0xff]
        %v460 = vld [vmem:[%s2 + $0x168] sm:$0xff]
        %v461 = vld [vmem:[%s2 + $0x170] sm:$0xff]
        %v462 = vld [vmem:[%s2 + $0x178] sm:$0xff]
        %v463 = vld [vmem:[%s2 + $0x180] sm:$0xff]
        %v464 = vld [vmem:[%s2 + $0x188] sm:$0xff]
        %v465 = vld [vmem:[%s2 + $0x190] sm:$0xff]
        %v466 = vld [vmem:[%s2 + $0x198] sm:$0xff]
        %v467 = vld [vmem:[%s2 + $0x1a0] sm:$0xff]
        %v468 = vld [vmem:[%s2 + $0x1a8] sm:$0xff]
        %v469 = vld [vmem:[%s2 + $0x1b0] sm:$0xff]
        %v470 = vld [vmem:[%s2 + $0x1b8] sm:$0xff]
        %v471 = vld [vmem:[%s2 + $0x1c0] sm:$0xff]
        %v472 = vld [vmem:[%s2 + $0x1c8] sm:$0xff]
        %v473 = vld [vmem:[%s2 + $0x1d0] sm:$0xff]
        %v474 = vld [vmem:[%s2 + $0x1d8] sm:$0xff]
        %v475 = vld [vmem:[%s2 + $0x1e0] sm:$0xff]
        %v476 = vld [vmem:[%s2 + $0x1e8] sm:$0xff]
        %v477 = vld [vmem:[%s2 + $0x1f0] sm:$0xff]
        %v478 = vld [vmem:[%s2 + $0x1f8] sm:$0xff]
        %v479 = vld [vmem:[%s2 + $0x200] sm:$0xff]
        %v480 = vld [vmem:[%s2 + $0x208] sm:$0xff]
        %v481 = vld [vmem:[%s2 + $0x210] sm:$0xff]
        %v482 = vld [vmem:[%s2 + $0x218] sm:$0xff]
        %v483 = vld [vmem:[%s2 + $0x220] sm:$0xff]
        %v484 = vld [vmem:[%s2 + $0x228] sm:$0xff]
        %v485 = vld [vmem:[%s2 + $0x230] sm:$0xff]
        %v486 = vld [vmem:[%s2 + $0x238] sm:$0xff]
        %v487 = vld [vmem:[%s2 + $0x240] sm:$0xff]
        %v488 = vld [vmem:[%s2 + $0x248] sm:$0xff]
        %v489 = vld [vmem:[%s2 + $0x250] sm:$0xff]
        %v490 = vld [vmem:[%s2 + $0x258] sm:$0xff]
        %v491 = vld [vmem:[%s2 + $0x260] sm:$0xff]
        %v492 = vld [vmem:[%s2 + $0x268] sm:$0xff]
        %v493 = vld [vmem:[%s2 + $0x270] sm:$0xff]
        %v494 = vld [vmem:[%s2 + $0x278] sm:$0xff]
        %v495 = vld [vmem:[%s2 + $0x280] sm:$0xff]
        %v496 = vld [vmem:[%s2 + $0x288] sm:$0xff]
        %v497 = vld [vmem:[%s2 + $0x290] sm:$0xff]
        %v498 = vld [vmem:[%s2 + $0x298] sm:$0xff]
        %v499 = vld [vmem:[%s2 + $0x2a0] sm:$0xff]
        %v500 = vld [vmem:[%s2 + $0x2a8] sm:$0xff]
        %v501 = vld [vmem:[%s2 + $0x2b0] sm:$0xff]
        %v502 = vld [vmem:[%s2 + $0x2b8] sm:$0xff]
        %v503 = vld [vmem:[%s2 + $0x2c0] sm:$0xff]
        %v504 = vld [vmem:[%s2 + $0x2c8] sm:$0xff]
        %v505 = vld [vmem:[%s2 + $0x2d0] sm:$0xff]
        %v506 = vld [vmem:[%s2 + $0x2d8] sm:$0xff]
        %v507 = vld [vmem:[%s2 + $0x2e0] sm:$0xff]
        %v508 = vld [vmem:[%s2 + $0x2e8] sm:$0xff]
        %v509 = vld [vmem:[%s2 + $0x2f0] sm:$0xff]
        %v510 = vld [vmem:[%s2 + $0x2f8] sm:$0xff]
        %v511 = vld [vmem:[%s2 + $0x300] sm:$0xff]
        %v512 = vld [vmem:[%s2 + $0x308] sm:$0xff]
        %v513 = vld [vmem:[%s2 + $0x310] sm:$0xff]
        %v514 = vld [vmem:[%s2 + $0x318] sm:$0xff]
        %v515 = vld [vmem:[%s2 + $0x320] sm:$0xff]
        %v516 = vld [vmem:[%s2 + $0x328] sm:$0xff]
        %v517 = vld [vmem:[%s2 + $0x330] sm:$0xff]
        %v518 = vld [vmem:[%s2 + $0x338] sm:$0xff]
        %v519 = vld [vmem:[%s2 + $0x340] sm:$0xff]
        %v520 = vld [vmem:[%s2 + $0x348] sm:$0xff]
        %v521 = vld [vmem:[%s2 + $0x350] sm:$0xff]
        %v522 = vld [vmem:[%s2 + $0x358] sm:$0xff]
        %v523 = vld [vmem:[%s2 + $0x360] sm:$0xff]
        %v524 = vld [vmem:[%s2 + $0x368] sm:$0xff]
        %v525 = vld [vmem:[%s2 + $0x370] sm:$0xff]
        %v526 = vld [vmem:[%s2 + $0x378] sm:$0xff]
        %v527 = vld [vmem:[%s2 + $0x380] sm:$0xff]
        %v528 = vld [vmem:[%s2 + $0x388] sm:$0xff]
        %v529 = vld [vmem:[%s2 + $0x390] sm:$0xff]
        %v530 = vld [vmem:[%s2 + $0x398] sm:$0xff]
        %v531 = vld [vmem:[%s2 + $0x3a0] sm:$0xff]
        %v532 = vld [vmem:[%s2 + $0x3a8] sm:$0xff]
        %v533 = vld [vmem:[%s2 + $0x3b0] sm:$0xff]
        %v534 = vld [vmem:[%s2 + $0x3b8] sm:$0xff]
        %v535 = vld [vmem:[%s2 + $0x3c0] sm:$0xff]
        %v536 = vld [vmem:[%s2 + $0x3c8] sm:$0xff]
        %v537 = vld [vmem:[%s2 + $0x3d0] sm:$0xff]
        %v538 = vld [vmem:[%s2 + $0x3d8] sm:$0xff]
        %v539 = vld [vmem:[%s2 + $0x3e0] sm:$0xff]
        %v540 = vld [vmem:[%s2 + $0x3e8] sm:$0xff]
        %v541 = vld [vmem:[%s2 + $0x3f0] sm:$0xff]
        %v542 = vld [vmem:[%s2 + $0x3f8] sm:$0xff]
        %v543 = vld [vmem:[%s2 + $0x400] sm:$0xff]
        %v544 = vld [vmem:[%s2 + $0x408] sm:$0xff]
        %v545 = vld [vmem:[%s2 + $0x410] sm:$0xff]
        %v546 = vld [vmem:[%s2 + $0x418] sm:$0xff]
        %v547 = vld [vmem:[%s2 + $0x420] sm:$0xff]
        %v548 = vld [vmem:[%s2 + $0x428] sm:$0xff]
        %v549 = vld [vmem:[%s2 + $0x430] sm:$0xff]
        %v550 = vld [vmem:[%s2 + $0x438] sm:$0xff]
        %v551 = vld [vmem:[%s2 + $0x440] sm:$0xff]
        %v552 = vld [vmem:[%s2 + $0x448] sm:$0xff]
        %v553 = vld [vmem:[%s2 + $0x450] sm:$0xff]
        %v554 = vld [vmem:[%s2 + $0x458] sm:$0xff]
        %v555 = vld [vmem:[%s2 + $0x460] sm:$0xff]
        %v556 = vld [vmem:[%s2 + $0x468] sm:$0xff]
        %v557 = vld [vmem:[%s2 + $0x470] sm:$0xff]
        %v558 = vld [vmem:[%s2 + $0x478] sm:$0xff]
        %v559 = vld [vmem:[%s2 + $0x480] sm:$0xff]
        %v560 = vld [vmem:[%s2 + $0x488] sm:$0xff]
        %v561 = vld [vmem:[%s2 + $0x490] sm:$0xff]
        %v562 = vld [vmem:[%s2 + $0x498] sm:$0xff]
        %v563 = vld [vmem:[%s2 + $0x4a0] sm:$0xff]
        %v564 = vld [vmem:[%s2 + $0x4a8] sm:$0xff]
        %v565 = vld [vmem:[%s2 + $0x4b0] sm:$0xff]
        %v566 = vld [vmem:[%s2 + $0x4b8] sm:$0xff]
        %v567 = vld [vmem:[%s2 + $0x4c0] sm:$0xff]
        %v568 = vld [vmem:[%s2 + $0x4c8] sm:$0xff]
        %v569 = vld [vmem:[%s2 + $0x4d0] sm:$0xff]
        %v570 = vld [vmem:[%s2 + $0x4d8] sm:$0xff]
        %v571 = vld [vmem:[%s2 + $0x4e0] sm:$0xff]
        %v572 = vld [vmem:[%s2 + $0x4e8] sm:$0xff]
        %v573 = vld [vmem:[%s2 + $0x4f0] sm:$0xff]
        %v574 = vld [vmem:[%s2 + $0x4f8] sm:$0xff]
        %v575 = vld [vmem:[%s2 + $0x500] sm:$0xff]
        %v576 = vld [vmem:[%s2 + $0x508] sm:$0xff]
        %v577 = vld [vmem:[%s2 + $0x510] sm:$0xff]
        %v578 = vld [vmem:[%s2 + $0x518] sm:$0xff]
        %v579 = vld [vmem:[%s2 + $0x520] sm:$0xff]
        %v580 = vld [vmem:[%s2 + $0x528] sm:$0xff]
        %v581 = vld [vmem:[%s2 + $0x530] sm:$0xff]
        %v582 = vld [vmem:[%s2 + $0x538] sm:$0xff]
        %v583 = vld [vmem:[%s2 + $0x540] sm:$0xff]
        %v584 = vld [vmem:[%s2 + $0x548] sm:$0xff]
        %v585 = vld [vmem:[%s2 + $0x550] sm:$0xff]
        %v586 = vld [vmem:[%s2 + $0x558] sm:$0xff]
        %v587 = vld [vmem:[%s2 + $0x560] sm:$0xff]
        %v588 = vld [vmem:[%s2 + $0x568] sm:$0xff]
        %v589 = vld [vmem:[%s2 + $0x570] sm:$0xff]
        %v590 = vld [vmem:[%s2 + $0x578] sm:$0xff]
        %v591 = vld [vmem:[%s2 + $0x580] sm:$0xff]
        %v592 = vld [vmem:[%s2 + $0x588] sm:$0xff]
        %v593 = vld [vmem:[%s2 + $0x590] sm:$0xff]
        %v594 = vld [vmem:[%s2 + $0x598] sm:$0xff]
        %v595 = vld [vmem:[%s2 + $0x5a0] sm:$0xff]
        %v596 = vld [vmem:[%s2 + $0x5a8] sm:$0xff]
        %v597 = vld [vmem:[%s2 + $0x5b0] sm:$0xff]
        %v598 = vld [vmem:[%s2 + $0x5b8] sm:$0xff]
        %v599 = vld [vmem:[%s2 + $0x5c0] sm:$0xff]
        %v600 = vld [vmem:[%s2 + $0x5c8] sm:$0xff]
        %v601 = vld [vmem:[%s2 + $0x5d0] sm:$0xff]
        %v602 = vld [vmem:[%s2 + $0x5d8] sm:$0xff]
        %v603 = vld [vmem:[%s2 + $0x5e0] sm:$0xff]
        %v604 = vld [vmem:[%s2 + $0x5e8] sm:$0xff]
        %v605 = vld [vmem:[%s2 + $0x5f0] sm:$0xff]
        %v606 = vld [vmem:[%s2 + $0x5f8] sm:$0xff]
        %v607 = vld [vmem:[%s2 + $0x600] sm:$0xff]
        %v608 = vld [vmem:[%s2 + $0x608] sm:$0xff]
        %v609 = vld [vmem:[%s2 + $0x610] sm:$0xff]
        %v610 = vld [vmem:[%s2 + $0x618] sm:$0xff]
        %v611 = vld [vmem:[%s2 + $0x620] sm:$0xff]
        %v612 = vld [vmem:[%s2 + $0x628] sm:$0xff]
        %v613 = vld [vmem:[%s2 + $0x630] sm:$0xff]
        %v614 = vld [vmem:[%s2 + $0x638] sm:$0xff]
        %v615 = vld [vmem:[%s2 + $0x640] sm:$0xff]
        %v616 = vld [vmem:[%s2 + $0x648] sm:$0xff]
        %v617 = vld [vmem:[%s2 + $0x650] sm:$0xff]
        %v618 = vld [vmem:[%s2 + $0x658] sm:$0xff]
        %v619 = vld [vmem:[%s2 + $0x660] sm:$0xff]
        %v620 = vld [vmem:[%s2 + $0x668] sm:$0xff]
        %v621 = vld [vmem:[%s2 + $0x670] sm:$0xff]
        %v622 = vld [vmem:[%s2 + $0x678] sm:$0xff]
        %v623 = vld [vmem:[%s2 + $0x680] sm:$0xff]
        %v624 = vld [vmem:[%s2 + $0x688] sm:$0xff]
        %v625 = vld [vmem:[%s2 + $0x690] sm:$0xff]
        %v626 = vld [vmem:[%s2 + $0x698] sm:$0xff]
        %v627 = vld [vmem:[%s2 + $0x6a0] sm:$0xff]
        %v628 = vld [vmem:[%s2 + $0x6a8] sm:$0xff]
        %v629 = vld [vmem:[%s2 + $0x6b0] sm:$0xff]
        %v630 = vld [vmem:[%s2 + $0x6b8] sm:$0xff]
        %v631 = vld [vmem:[%s2 + $0x6c0] sm:$0xff]
        %v632 = vld [vmem:[%s2 + $0x6c8] sm:$0xff]
        %v633 = vld [vmem:[%s2 + $0x6d0] sm:$0xff]
        %v634 = vld [vmem:[%s2 + $0x6d8] sm:$0xff]
        %v635 = vld [vmem:[%s2 + $0x6e0] sm:$0xff]
        %v636 = vld [vmem:[%s2 + $0x6e8] sm:$0xff]
        %v637 = vld [vmem:[%s2 + $0x6f0] sm:$0xff]
        %v638 = vld [vmem:[%s2 + $0x6f8] sm:$0xff]
        %v639 = vld [vmem:[%s2 + $0x700] sm:$0xff]
        %v640 = vld [vmem:[%s2 + $0x708] sm:$0xff]
        %v641 = vld [vmem:[%s2 + $0x710] sm:$0xff]
        %v642 = vld [vmem:[%s2 + $0x718] sm:$0xff]
        %v643 = vld [vmem:[%s2 + $0x720] sm:$0xff]
        %v644 = vld [vmem:[%s2 + $0x728] sm:$0xff]
        %v645 = vld [vmem:[%s2 + $0x730] sm:$0xff]
        %v646 = vld [vmem:[%s2 + $0x738] sm:$0xff]
        %v647 = vld [vmem:[%s2 + $0x740] sm:$0xff]
        %v648 = vld [vmem:[%s2 + $0x748] sm:$0xff]
        %v649 = vld [vmem:[%s2 + $0x750] sm:$0xff]
        %v650 = vld [vmem:[%s2 + $0x758] sm:$0xff]
        %v651 = vld [vmem:[%s2 + $0x760] sm:$0xff]
        %v652 = vld [vmem:[%s2 + $0x768] sm:$0xff]
        %v653 = vld [vmem:[%s2 + $0x770] sm:$0xff]
        %v654 = vld [vmem:[%s2 + $0x778] sm:$0xff]
        %v655 = vld [vmem:[%s2 + $0x780] sm:$0xff]
        %v656 = vld [vmem:[%s2 + $0x788] sm:$0xff]
        %v657 = vld [vmem:[%s2 + $0x790] sm:$0xff]
        %v658 = vld [vmem:[%s2 + $0x798] sm:$0xff]
        %v659 = vld [vmem:[%s2 + $0x7a0] sm:$0xff]
        %v660 = vld [vmem:[%s2 + $0x7a8] sm:$0xff]
        %v661 = vld [vmem:[%s2 + $0x7b0] sm:$0xff]
        %v662 = vld [vmem:[%s2 + $0x7b8] sm:$0xff]
        %v663 = vld [vmem:[%s2 + $0x7c0] sm:$0xff]
        %v664 = vld [vmem:[%s2 + $0x7c8] sm:$0xff]
        %v665 = vld [vmem:[%s2 + $0x7d0] sm:$0xff]
        %v666 = vld [vmem:[%s2 + $0x7d8] sm:$0xff]
        %v667 = vld [vmem:[%s2 + $0x7e0] sm:$0xff]
        %v668 = vld [vmem:[%s2 + $0x7e8] sm:$0xff]
        %v669 = vld [vmem:[%s2 + $0x7f0] sm:$0xff]
        %v670 = vld [vmem:[%s2 + $0x7f8] sm:$0xff]
        %v671 = vand.u32 %v416, 4294901760
        %672 = vmatprep.subr.mxu0 %v671
        %v673 = vand.u32 %v415, 4294901760
        %674 = vmatpush1.msra.mxu0 %v673
        %v675 = vand.u32 %v424, 4294901760
        %676 = vmatprep.subr.mxu0 %v675
        %v677 = vand.u32 %v423, 4294901760
        %678 = vmatpush1.msra.mxu0 %v677
        %v679 = vand.u32 %v432, 4294901760
        %680 = vmatprep.subr.mxu0 %v679
        %v681 = vand.u32 %v431, 4294901760
        %682 = vmatpush1.msra.mxu0 %v681
        %v683 = vand.u32 %v440, 4294901760
        %684 = vmatprep.subr.mxu0 %v683
        %v685 = vand.u32 %v439, 4294901760
        %686 = vmatpush1.msra.mxu0 %v685
        %v687 = vand.u32 %v448, 4294901760
        %688 = vmatprep.subr.mxu0 %v687
        %v689 = vand.u32 %v447, 4294901760
        %690 = vmatpush1.msra.mxu0 %v689
        %v691 = vand.u32 %v456, 4294901760
        %692 = vmatprep.subr.mxu0 %v691
        %v693 = vand.u32 %v455, 4294901760
        %694 = vmatpush1.msra.mxu0 %v693
        %v695 = vand.u32 %v464, 4294901760
        %696 = vmatprep.subr.mxu0 %v695
        %v697 = vand.u32 %v463, 4294901760
        %698 = vmatpush1.msra.mxu0 %v697
        %v699 = vand.u32 %v472, 4294901760
        %700 = vmatprep.subr.mxu0 %v699
        %v701 = vand.u32 %v471, 4294901760
        %702 = vmatpush1.msra.mxu0 %v701
        %v703 = vand.u32 %v480, 4294901760
        %704 = vmatprep.subr.mxu0 %v703
        %v705 = vand.u32 %v479, 4294901760
        %706 = vmatpush1.msra.mxu0 %v705
        %v707 = vand.u32 %v488, 4294901760
        %708 = vmatprep.subr.mxu0 %v707
        %v709 = vand.u32 %v487, 4294901760
        %710 = vmatpush1.msra.mxu0 %v709
        %v711 = vand.u32 %v496, 4294901760
        %712 = vmatprep.subr.mxu0 %v711
        %v713 = vand.u32 %v495, 4294901760
        %714 = vmatpush1.msra.mxu0 %v713
        %v715 = vand.u32 %v504, 4294901760
        %716 = vmatprep.subr.mxu0 %v715
        %v717 = vand.u32 %v503, 4294901760
        %718 = vmatpush1.msra.mxu0 %v717
        %v719 = vand.u32 %v512, 4294901760
        %720 = vmatprep.subr.mxu0 %v719
        %v721 = vand.u32 %v511, 4294901760
        %722 = vmatpush1.msra.mxu0 %v721
        %v723 = vand.u32 %v520, 4294901760
        %724 = vmatprep.subr.mxu0 %v723
        %v725 = vand.u32 %v519, 4294901760
        %726 = vmatpush1.msra.mxu0 %v725
        %v727 = vand.u32 %v528, 4294901760
        %728 = vmatprep.subr.mxu0 %v727
        %v729 = vand.u32 %v527, 4294901760
        %730 = vmatpush1.msra.mxu0 %v729
        %v731 = vand.u32 %v536, 4294901760
        %732 = vmatprep.subr.mxu0 %v731
        %v733 = vand.u32 %v535, 4294901760
        %734 = vmatpush1.msra.mxu0 %v733
        %v735 = vand.u32 %v544, 4294901760
        %736 = vmatprep.subr.mxu0 %v735
        %v737 = vand.u32 %v543, 4294901760
        %738 = vmatpush1.msra.mxu0 %v737
        %v739 = vand.u32 %v552, 4294901760
        %740 = vmatprep.subr.mxu0 %v739
        %v741 = vand.u32 %v551, 4294901760
        %742 = vmatpush1.msra.mxu0 %v741
        %v743 = vand.u32 %v560, 4294901760
        %744 = vmatprep.subr.mxu0 %v743
        %v745 = vand.u32 %v559, 4294901760
        %746 = vmatpush1.msra.mxu0 %v745
        %v747 = vand.u32 %v568, 4294901760
        %748 = vmatprep.subr.mxu0 %v747
        %v749 = vand.u32 %v567, 4294901760
        %750 = vmatpush1.msra.mxu0 %v749
        %v751 = vand.u32 %v576, 4294901760
        %752 = vmatprep.subr.mxu0 %v751
        %v753 = vand.u32 %v575, 4294901760
        %754 = vmatpush1.msra.mxu0 %v753
        %v755 = vand.u32 %v584, 4294901760
        %756 = vmatprep.subr.mxu0 %v755
        %v757 = vand.u32 %v583, 4294901760
        %758 = vmatpush1.msra.mxu0 %v757
        %v759 = vand.u32 %v592, 4294901760
        %760 = vmatprep.subr.mxu0 %v759
        %v761 = vand.u32 %v591, 4294901760
        %762 = vmatpush1.msra.mxu0 %v761
        %v763 = vand.u32 %v600, 4294901760
        %764 = vmatprep.subr.mxu0 %v763
        %v765 = vand.u32 %v599, 4294901760
        %766 = vmatpush1.msra.mxu0 %v765
        %v767 = vand.u32 %v608, 4294901760
        %768 = vmatprep.subr.mxu0 %v767
        %v769 = vand.u32 %v607, 4294901760
        %770 = vmatpush1.msra.mxu0 %v769
        %v771 = vand.u32 %v616, 4294901760
        %772 = vmatprep.subr.mxu0 %v771
        %v773 = vand.u32 %v615, 4294901760
        %774 = vmatpush1.msra.mxu0 %v773
        %v775 = vand.u32 %v624, 4294901760
        %776 = vmatprep.subr.mxu0 %v775
        %v777 = vand.u32 %v623, 4294901760
        %778 = vmatpush1.msra.mxu0 %v777
        %v779 = vand.u32 %v632, 4294901760
        %780 = vmatprep.subr.mxu0 %v779
        %v781 = vand.u32 %v631, 4294901760
        %782 = vmatpush1.msra.mxu0 %v781
        %v783 = vand.u32 %v640, 4294901760
        %784 = vmatprep.subr.mxu0 %v783
        %v785 = vand.u32 %v639, 4294901760
        %786 = vmatpush1.msra.mxu0 %v785
        %v787 = vand.u32 %v648, 4294901760
        %788 = vmatprep.subr.mxu0 %v787
        %v789 = vand.u32 %v647, 4294901760
        %790 = vmatpush1.msra.mxu0 %v789
        %v791 = vand.u32 %v656, 4294901760
        %792 = vmatprep.subr.mxu0 %v791
        %v793 = vand.u32 %v655, 4294901760
        %794 = vmatpush1.msra.mxu0 %v793
        %v795 = vand.u32 %v664, 4294901760
        %796 = vmatprep.subr.mxu0 %v795
        %v797 = vand.u32 %v663, 4294901760
        %798 = vmatpush1.msra.mxu0 %v797
        %v799 = vand.u32 %v414, 4294901760
        %v800 = vsub.f32 %v414, %v799
        %v801 = vand.u32 %v800, 4294901760
        %v802 = vsub.f32 %v800, %v801
        %v803 = vand.u32 %v802, 4294901760
        %804 = vmatprep.mubr.f32.mxu0 %v803
        %v805 = vand.u32 %v413, 4294901760
        %v806 = vsub.f32 %v413, %v805
        %v807 = vand.u32 %v806, 4294901760
        %v808 = vsub.f32 %v806, %v807
        %v809 = vand.u32 %v808, 4294901760
        %810 = vmatmul.mubr.f32.gmra.mrb[0].mxu0 %v809
        %v811 = vpop.f32.mrb[0].mxu0
        %v812 = vadd.f32 0.0, %v811
        %v813 = vpop.f32.mrb[0].mxu0
        %v814 = vadd.f32 0.0, %v813
        %815 = vdwg.mxu0
        %v816 = vand.u32 %v416, 4294901760
        %v817 = vsub.f32 %v416, %v816
        %v818 = vand.u32 %v817, 4294901760
        %v819 = vsub.f32 %v817, %v818
        %v820 = vand.u32 %v819, 4294901760
        %821 = vmatprep.subr.mxu0 %v820
        %v822 = vand.u32 %v415, 4294901760
        %v823 = vsub.f32 %v415, %v822
        %v824 = vand.u32 %v823, 4294901760
        %v825 = vsub.f32 %v823, %v824
        %v826 = vand.u32 %v825, 4294901760
        %827 = vmatpush1.msra.mxu0 %v826
        %v828 = vand.u32 %v424, 4294901760
        %v829 = vsub.f32 %v424, %v828
        %v830 = vand.u32 %v829, 4294901760
        %v831 = vsub.f32 %v829, %v830
        %v832 = vand.u32 %v831, 4294901760
        %833 = vmatprep.subr.mxu0 %v832
        %v834 = vand.u32 %v423, 4294901760
        %v835 = vsub.f32 %v423, %v834
        %v836 = vand.u32 %v835, 4294901760
        %v837 = vsub.f32 %v835, %v836
        %v838 = vand.u32 %v837, 4294901760
        %839 = vmatpush1.msra.mxu0 %v838
        %v840 = vand.u32 %v432, 4294901760
        %v841 = vsub.f32 %v432, %v840
        %v842 = vand.u32 %v841, 4294901760
        %v843 = vsub.f32 %v841, %v842
        %v844 = vand.u32 %v843, 4294901760
        %845 = vmatprep.subr.mxu0 %v844
        %v846 = vand.u32 %v431, 4294901760
        %v847 = vsub.f32 %v431, %v846
        %v848 = vand.u32 %v847, 4294901760
        %v849 = vsub.f32 %v847, %v848
        %v850 = vand.u32 %v849, 4294901760
        %851 = vmatpush1.msra.mxu0 %v850
        %v852 = vand.u32 %v440, 4294901760
        %v853 = vsub.f32 %v440, %v852
        %v854 = vand.u32 %v853, 4294901760
        %v855 = vsub.f32 %v853, %v854
        %v856 = vand.u32 %v855, 4294901760
        %857 = vmatprep.subr.mxu0 %v856
        %v858 = vand.u32 %v439, 4294901760
        %v859 = vsub.f32 %v439, %v858
        %v860 = vand.u32 %v859, 4294901760
        %v861 = vsub.f32 %v859, %v860
        %v862 = vand.u32 %v861, 4294901760
        %863 = vmatpush1.msra.mxu0 %v862
        %v864 = vand.u32 %v448, 4294901760
        %v865 = vsub.f32 %v448, %v864
        %v866 = vand.u32 %v865, 4294901760
        %v867 = vsub.f32 %v865, %v866
        %v868 = vand.u32 %v867, 4294901760
        %869 = vmatprep.subr.mxu0 %v868
        %v870 = vand.u32 %v447, 4294901760
        %v871 = vsub.f32 %v447, %v870
        %v872 = vand.u32 %v871, 4294901760
        %v873 = vsub.f32 %v871, %v872
        %v874 = vand.u32 %v873, 4294901760
        %875 = vmatpush1.msra.mxu0 %v874
        %v876 = vand.u32 %v456, 4294901760
        %v877 = vsub.f32 %v456, %v876
        %v878 = vand.u32 %v877, 4294901760
        %v879 = vsub.f32 %v877, %v878
        %v880 = vand.u32 %v879, 4294901760
        %881 = vmatprep.subr.mxu0 %v880
        %v882 = vand.u32 %v455, 4294901760
        %v883 = vsub.f32 %v455, %v882
        %v884 = vand.u32 %v883, 4294901760
        %v885 = vsub.f32 %v883, %v884
        %v886 = vand.u32 %v885, 4294901760
        %887 = vmatpush1.msra.mxu0 %v886
        %v888 = vand.u32 %v464, 4294901760
        %v889 = vsub.f32 %v464, %v888
        %v890 = vand.u32 %v889, 4294901760
        %v891 = vsub.f32 %v889, %v890
        %v892 = vand.u32 %v891, 4294901760
        %893 = vmatprep.subr.mxu0 %v892
        %v894 = vand.u32 %v463, 4294901760
        %v895 = vsub.f32 %v463, %v894
        %v896 = vand.u32 %v895, 4294901760
        %v897 = vsub.f32 %v895, %v896
        %v898 = vand.u32 %v897, 4294901760
        %899 = vmatpush1.msra.mxu0 %v898
        %v900 = vand.u32 %v472, 4294901760
        %v901 = vsub.f32 %v472, %v900
        %v902 = vand.u32 %v901, 4294901760
        %v903 = vsub.f32 %v901, %v902
        %v904 = vand.u32 %v903, 4294901760
        %905 = vmatprep.subr.mxu0 %v904
        %v906 = vand.u32 %v471, 4294901760
        %v907 = vsub.f32 %v471, %v906
        %v908 = vand.u32 %v907, 4294901760
        %v909 = vsub.f32 %v907, %v908
        %v910 = vand.u32 %v909, 4294901760
        %911 = vmatpush1.msra.mxu0 %v910
        %v912 = vand.u32 %v480, 4294901760
        %v913 = vsub.f32 %v480, %v912
        %v914 = vand.u32 %v913, 4294901760
        %v915 = vsub.f32 %v913, %v914
        %v916 = vand.u32 %v915, 4294901760
        %917 = vmatprep.subr.mxu0 %v916
        %v918 = vand.u32 %v479, 4294901760
        %v919 = vsub.f32 %v479, %v918
        %v920 = vand.u32 %v919, 4294901760
        %v921 = vsub.f32 %v919, %v920
        %v922 = vand.u32 %v921, 4294901760
        %923 = vmatpush1.msra.mxu0 %v922
        %v924 = vand.u32 %v488, 4294901760
        %v925 = vsub.f32 %v488, %v924
        %v926 = vand.u32 %v925, 4294901760
        %v927 = vsub.f32 %v925, %v926
        %v928 = vand.u32 %v927, 4294901760
        %929 = vmatprep.subr.mxu0 %v928
        %v930 = vand.u32 %v487, 4294901760
        %v931 = vsub.f32 %v487, %v930
        %v932 = vand.u32 %v931, 4294901760
        %v933 = vsub.f32 %v931, %v932
        %v934 = vand.u32 %v933, 4294901760
        %935 = vmatpush1.msra.mxu0 %v934
        %v936 = vand.u32 %v496, 4294901760
        %v937 = vsub.f32 %v496, %v936
        %v938 = vand.u32 %v937, 4294901760
        %v939 = vsub.f32 %v937, %v938
        %v940 = vand.u32 %v939, 4294901760
        %941 = vmatprep.subr.mxu0 %v940
        %v942 = vand.u32 %v495, 4294901760
        %v943 = vsub.f32 %v495, %v942
        %v944 = vand.u32 %v943, 4294901760
        %v945 = vsub.f32 %v943, %v944
        %v946 = vand.u32 %v945, 4294901760
        %947 = vmatpush1.msra.mxu0 %v946
        %v948 = vand.u32 %v504, 4294901760
        %v949 = vsub.f32 %v504, %v948
        %v950 = vand.u32 %v949, 4294901760
        %v951 = vsub.f32 %v949, %v950
        %v952 = vand.u32 %v951, 4294901760
        %953 = vmatprep.subr.mxu0 %v952
        %v954 = vand.u32 %v503, 4294901760
        %v955 = vsub.f32 %v503, %v954
        %v956 = vand.u32 %v955, 4294901760
        %v957 = vsub.f32 %v955, %v956
        %v958 = vand.u32 %v957, 4294901760
        %959 = vmatpush1.msra.mxu0 %v958
        %v960 = vand.u32 %v512, 4294901760
        %v961 = vsub.f32 %v512, %v960
        %v962 = vand.u32 %v961, 4294901760
        %v963 = vsub.f32 %v961, %v962
        %v964 = vand.u32 %v963, 4294901760
        %965 = vmatprep.subr.mxu0 %v964
        %v966 = vand.u32 %v511, 4294901760
        %v967 = vsub.f32 %v511, %v966
        %v968 = vand.u32 %v967, 4294901760
        %v969 = vsub.f32 %v967, %v968
        %v970 = vand.u32 %v969, 4294901760
        %971 = vmatpush1.msra.mxu0 %v970
        %v972 = vand.u32 %v520, 4294901760
        %v973 = vsub.f32 %v520, %v972
        %v974 = vand.u32 %v973, 4294901760
        %v975 = vsub.f32 %v973, %v974
        %v976 = vand.u32 %v975, 4294901760
        %977 = vmatprep.subr.mxu0 %v976
        %v978 = vand.u32 %v519, 4294901760
        %v979 = vsub.f32 %v519, %v978
        %v980 = vand.u32 %v979, 4294901760
        %v981 = vsub.f32 %v979, %v980
        %v982 = vand.u32 %v981, 4294901760
        %983 = vmatpush1.msra.mxu0 %v982
        %v984 = vand.u32 %v528, 4294901760
        %v985 = vsub.f32 %v528, %v984
        %v986 = vand.u32 %v985, 4294901760
        %v987 = vsub.f32 %v985, %v986
        %v988 = vand.u32 %v987, 4294901760
        %989 = vmatprep.subr.mxu0 %v988
        %v990 = vand.u32 %v527, 4294901760
        %v991 = vsub.f32 %v527, %v990
        %v992 = vand.u32 %v991, 4294901760
        %v993 = vsub.f32 %v991, %v992
        %v994 = vand.u32 %v993, 4294901760
        %995 = vmatpush1.msra.mxu0 %v994
        %v996 = vand.u32 %v536, 4294901760
        %v997 = vsub.f32 %v536, %v996
        %v998 = vand.u32 %v997, 4294901760
        %v999 = vsub.f32 %v997, %v998
        %v1000 = vand.u32 %v999, 4294901760
        %1001 = vmatprep.subr.mxu0 %v1000
        %v1002 = vand.u32 %v535, 4294901760
        %v1003 = vsub.f32 %v535, %v1002
        %v1004 = vand.u32 %v1003, 4294901760
        %v1005 = vsub.f32 %v1003, %v1004
        %v1006 = vand.u32 %v1005, 4294901760
        %1007 = vmatpush1.msra.mxu0 %v1006
        %v1008 = vand.u32 %v544, 4294901760
        %v1009 = vsub.f32 %v544, %v1008
        %v1010 = vand.u32 %v1009, 4294901760
        %v1011 = vsub.f32 %v1009, %v1010
        %v1012 = vand.u32 %v1011, 4294901760
        %1013 = vmatprep.subr.mxu0 %v1012
        %v1014 = vand.u32 %v543, 4294901760
        %v1015 = vsub.f32 %v543, %v1014
        %v1016 = vand.u32 %v1015, 4294901760
        %v1017 = vsub.f32 %v1015, %v1016
        %v1018 = vand.u32 %v1017, 4294901760
        %1019 = vmatpush1.msra.mxu0 %v1018
        %v1020 = vand.u32 %v552, 4294901760
        %v1021 = vsub.f32 %v552, %v1020
        %v1022 = vand.u32 %v1021, 4294901760
        %v1023 = vsub.f32 %v1021, %v1022
        %v1024 = vand.u32 %v1023, 4294901760
        %1025 = vmatprep.subr.mxu0 %v1024
        %v1026 = vand.u32 %v551, 4294901760
        %v1027 = vsub.f32 %v551, %v1026
        %v1028 = vand.u32 %v1027, 4294901760
        %v1029 = vsub.f32 %v1027, %v1028
        %v1030 = vand.u32 %v1029, 4294901760
        %1031 = vmatpush1.msra.mxu0 %v1030
        %v1032 = vand.u32 %v560, 4294901760
        %v1033 = vsub.f32 %v560, %v1032
        %v1034 = vand.u32 %v1033, 4294901760
        %v1035 = vsub.f32 %v1033, %v1034
        %v1036 = vand.u32 %v1035, 4294901760
        %1037 = vmatprep.subr.mxu0 %v1036
        %v1038 = vand.u32 %v559, 4294901760
        %v1039 = vsub.f32 %v559, %v1038
        %v1040 = vand.u32 %v1039, 4294901760
        %v1041 = vsub.f32 %v1039, %v1040
        %v1042 = vand.u32 %v1041, 4294901760
        %1043 = vmatpush1.msra.mxu0 %v1042
        %v1044 = vand.u32 %v568, 4294901760
        %v1045 = vsub.f32 %v568, %v1044
        %v1046 = vand.u32 %v1045, 4294901760
        %v1047 = vsub.f32 %v1045, %v1046
        %v1048 = vand.u32 %v1047, 4294901760
        %1049 = vmatprep.subr.mxu0 %v1048
        %v1050 = vand.u32 %v567, 4294901760
        %v1051 = vsub.f32 %v567, %v1050
        %v1052 = vand.u32 %v1051, 4294901760
        %v1053 = vsub.f32 %v1051, %v1052
        %v1054 = vand.u32 %v1053, 4294901760
        %1055 = vmatpush1.msra.mxu0 %v1054
        %v1056 = vand.u32 %v576, 4294901760
        %v1057 = vsub.f32 %v576, %v1056
        %v1058 = vand.u32 %v1057, 4294901760
        %v1059 = vsub.f32 %v1057, %v1058
        %v1060 = vand.u32 %v1059, 4294901760
        %1061 = vmatprep.subr.mxu0 %v1060
        %v1062 = vand.u32 %v575, 4294901760
        %v1063 = vsub.f32 %v575, %v1062
        %v1064 = vand.u32 %v1063, 4294901760
        %v1065 = vsub.f32 %v1063, %v1064
        %v1066 = vand.u32 %v1065, 4294901760
        %1067 = vmatpush1.msra.mxu0 %v1066
        %v1068 = vand.u32 %v584, 4294901760
        %v1069 = vsub.f32 %v584, %v1068
        %v1070 = vand.u32 %v1069, 4294901760
        %v1071 = vsub.f32 %v1069, %v1070
        %v1072 = vand.u32 %v1071, 4294901760
        %1073 = vmatprep.subr.mxu0 %v1072
        %v1074 = vand.u32 %v583, 4294901760
        %v1075 = vsub.f32 %v583, %v1074
        %v1076 = vand.u32 %v1075, 4294901760
        %v1077 = vsub.f32 %v1075, %v1076
        %v1078 = vand.u32 %v1077, 4294901760
        %1079 = vmatpush1.msra.mxu0 %v1078
        %v1080 = vand.u32 %v592, 4294901760
        %v1081 = vsub.f32 %v592, %v1080
        %v1082 = vand.u32 %v1081, 4294901760
        %v1083 = vsub.f32 %v1081, %v1082
        %v1084 = vand.u32 %v1083, 4294901760
        %1085 = vmatprep.subr.mxu0 %v1084
        %v1086 = vand.u32 %v591, 4294901760
        %v1087 = vsub.f32 %v591, %v1086
        %v1088 = vand.u32 %v1087, 4294901760
        %v1089 = vsub.f32 %v1087, %v1088
        %v1090 = vand.u32 %v1089, 4294901760
        %1091 = vmatpush1.msra.mxu0 %v1090
        %v1092 = vand.u32 %v600, 4294901760
        %v1093 = vsub.f32 %v600, %v1092
        %v1094 = vand.u32 %v1093, 4294901760
        %v1095 = vsub.f32 %v1093, %v1094
        %v1096 = vand.u32 %v1095, 4294901760
        %1097 = vmatprep.subr.mxu0 %v1096
        %v1098 = vand.u32 %v599, 4294901760
        %v1099 = vsub.f32 %v599, %v1098
        %v1100 = vand.u32 %v1099, 4294901760
        %v1101 = vsub.f32 %v1099, %v1100
        %v1102 = vand.u32 %v1101, 4294901760
        %1103 = vmatpush1.msra.mxu0 %v1102
        %v1104 = vand.u32 %v608, 4294901760
        %v1105 = vsub.f32 %v608, %v1104
        %v1106 = vand.u32 %v1105, 4294901760
        %v1107 = vsub.f32 %v1105, %v1106
        %v1108 = vand.u32 %v1107, 4294901760
        %1109 = vmatprep.subr.mxu0 %v1108
        %v1110 = vand.u32 %v607, 4294901760
        %v1111 = vsub.f32 %v607, %v1110
        %v1112 = vand.u32 %v1111, 4294901760
        %v1113 = vsub.f32 %v1111, %v1112
        %v1114 = vand.u32 %v1113, 4294901760
        %1115 = vmatpush1.msra.mxu0 %v1114
        %v1116 = vand.u32 %v616, 4294901760
        %v1117 = vsub.f32 %v616, %v1116
        %v1118 = vand.u32 %v1117, 4294901760
        %v1119 = vsub.f32 %v1117, %v1118
        %v1120 = vand.u32 %v1119, 4294901760
        %1121 = vmatprep.subr.mxu0 %v1120
        %v1122 = vand.u32 %v615, 4294901760
        %v1123 = vsub.f32 %v615, %v1122
        %v1124 = vand.u32 %v1123, 4294901760
        %v1125 = vsub.f32 %v1123, %v1124
        %v1126 = vand.u32 %v1125, 4294901760
        %1127 = vmatpush1.msra.mxu0 %v1126
        %v1128 = vand.u32 %v624, 4294901760
        %v1129 = vsub.f32 %v624, %v1128
        %v1130 = vand.u32 %v1129, 4294901760
        %v1131 = vsub.f32 %v1129, %v1130
        %v1132 = vand.u32 %v1131, 4294901760
        %1133 = vmatprep.subr.mxu0 %v1132
        %v1134 = vand.u32 %v623, 4294901760
        %v1135 = vsub.f32 %v623, %v1134
        %v1136 = vand.u32 %v1135, 4294901760
        %v1137 = vsub.f32 %v1135, %v1136
        %v1138 = vand.u32 %v1137, 4294901760
        %1139 = vmatpush1.msra.mxu0 %v1138
        %v1140 = vand.u32 %v632, 4294901760
        %v1141 = vsub.f32 %v632, %v1140
        %v1142 = vand.u32 %v1141, 4294901760
        %v1143 = vsub.f32 %v1141, %v1142
        %v1144 = vand.u32 %v1143, 4294901760
        %1145 = vmatprep.subr.mxu0 %v1144
        %v1146 = vand.u32 %v631, 4294901760
        %v1147 = vsub.f32 %v631, %v1146
        %v1148 = vand.u32 %v1147, 4294901760
        %v1149 = vsub.f32 %v1147, %v1148
        %v1150 = vand.u32 %v1149, 4294901760
        %1151 = vmatpush1.msra.mxu0 %v1150
        %v1152 = vand.u32 %v640, 4294901760
        %v1153 = vsub.f32 %v640, %v1152
        %v1154 = vand.u32 %v1153, 4294901760
        %v1155 = vsub.f32 %v1153, %v1154
        %v1156 = vand.u32 %v1155, 4294901760
        %1157 = vmatprep.subr.mxu0 %v1156
        %v1158 = vand.u32 %v639, 4294901760
        %v1159 = vsub.f32 %v639, %v1158
        %v1160 = vand.u32 %v1159, 4294901760
        %v1161 = vsub.f32 %v1159, %v1160
        %v1162 = vand.u32 %v1161, 4294901760
        %1163 = vmatpush1.msra.mxu0 %v1162
        %v1164 = vand.u32 %v648, 4294901760
        %v1165 = vsub.f32 %v648, %v1164
        %v1166 = vand.u32 %v1165, 4294901760
        %v1167 = vsub.f32 %v1165, %v1166
        %v1168 = vand.u32 %v1167, 4294901760
        %1169 = vmatprep.subr.mxu0 %v1168
        %v1170 = vand.u32 %v647, 4294901760
        %v1171 = vsub.f32 %v647, %v1170
        %v1172 = vand.u32 %v1171, 4294901760
        %v1173 = vsub.f32 %v1171, %v1172
        %v1174 = vand.u32 %v1173, 4294901760
        %1175 = vmatpush1.msra.mxu0 %v1174
        %v1176 = vand.u32 %v656, 4294901760
        %v1177 = vsub.f32 %v656, %v1176
        %v1178 = vand.u32 %v1177, 4294901760
        %v1179 = vsub.f32 %v1177, %v1178
        %v1180 = vand.u32 %v1179, 4294901760
        %1181 = vmatprep.subr.mxu0 %v1180
        %v1182 = vand.u32 %v655, 4294901760
        %v1183 = vsub.f32 %v655, %v1182
        %v1184 = vand.u32 %v1183, 4294901760
        %v1185 = vsub.f32 %v1183, %v1184
        %v1186 = vand.u32 %v1185, 4294901760
        %1187 = vmatpush1.msra.mxu0 %v1186
        %v1188 = vand.u32 %v664, 4294901760
        %v1189 = vsub.f32 %v664, %v1188
        %v1190 = vand.u32 %v1189, 4294901760
        %v1191 = vsub.f32 %v1189, %v1190
        %v1192 = vand.u32 %v1191, 4294901760
        %1193 = vmatprep.subr.mxu0 %v1192
        %v1194 = vand.u32 %v663, 4294901760
        %v1195 = vsub.f32 %v663, %v1194
        %v1196 = vand.u32 %v1195, 4294901760
        %v1197 = vsub.f32 %v1195, %v1196
        %v1198 = vand.u32 %v1197, 4294901760
        %1199 = vmatpush1.msra.mxu0 %v1198
        %v1200 = vand.u32 %v414, 4294901760
        %1201 = vmatprep.mubr.f32.mxu0 %v1200
        %v1202 = vand.u32 %v413, 4294901760
        %1203 = vmatmul.mubr.f32.gmra.mrb[0].mxu0 %v1202
        %v1204 = vpop.f32.mrb[0].mxu0
        %v1205 = vadd.f32 %v812, %v1204
        %v1206 = vpop.f32.mrb[0].mxu0
        %v1207 = vadd.f32 %v814, %v1206
        %1208 = vdwg.mxu0
        %v1209 = vand.u32 %v416, 4294901760
        %v1210 = vsub.f32 %v416, %v1209
        %1211 = vmatprep.subr.mxu0 %v1210
        %v1212 = vand.u32 %v415, 4294901760
        %v1213 = vsub.f32 %v415, %v1212
        %1214 = vmatpush1.msra.mxu0 %v1213
        %v1215 = vand.u32 %v424, 4294901760
        %v1216 = vsub.f32 %v424, %v1215
        %1217 = vmatprep.subr.mxu0 %v1216
        %v1218 = vand.u32 %v423, 4294901760
        %v1219 = vsub.f32 %v423, %v1218
        %1220 = vmatpush1.msra.mxu0 %v1219
        %v1221 = vand.u32 %v432, 4294901760
        %v1222 = vsub.f32 %v432, %v1221
        %1223 = vmatprep.subr.mxu0 %v1222
        %v1224 = vand.u32 %v431, 4294901760
        %v1225 = vsub.f32 %v431, %v1224
        %1226 = vmatpush1.msra.mxu0 %v1225
        %v1227 = vand.u32 %v440, 4294901760
        %v1228 = vsub.f32 %v440, %v1227
        %1229 = vmatprep.subr.mxu0 %v1228
        %v1230 = vand.u32 %v439, 4294901760
        %v1231 = vsub.f32 %v439, %v1230
        %1232 = vmatpush1.msra.mxu0 %v1231
        %v1233 = vand.u32 %v448, 4294901760
        %v1234 = vsub.f32 %v448, %v1233
        %1235 = vmatprep.subr.mxu0 %v1234
        %v1236 = vand.u32 %v447, 4294901760
        %v1237 = vsub.f32 %v447, %v1236
        %1238 = vmatpush1.msra.mxu0 %v1237
        %v1239 = vand.u32 %v456, 4294901760
        %v1240 = vsub.f32 %v456, %v1239
        %1241 = vmatprep.subr.mxu0 %v1240
        %v1242 = vand.u32 %v455, 4294901760
        %v1243 = vsub.f32 %v455, %v1242
        %1244 = vmatpush1.msra.mxu0 %v1243
        %v1245 = vand.u32 %v464, 4294901760
        %v1246 = vsub.f32 %v464, %v1245
        %1247 = vmatprep.subr.mxu0 %v1246
        %v1248 = vand.u32 %v463, 4294901760
        %v1249 = vsub.f32 %v463, %v1248
        %1250 = vmatpush1.msra.mxu0 %v1249
        %v1251 = vand.u32 %v472, 4294901760
        %v1252 = vsub.f32 %v472, %v1251
        %1253 = vmatprep.subr.mxu0 %v1252
        %v1254 = vand.u32 %v471, 4294901760
        %v1255 = vsub.f32 %v471, %v1254
        %1256 = vmatpush1.msra.mxu0 %v1255
        %v1257 = vand.u32 %v480, 4294901760
        %v1258 = vsub.f32 %v480, %v1257
        %1259 = vmatprep.subr.mxu0 %v1258
        %v1260 = vand.u32 %v479, 4294901760
        %v1261 = vsub.f32 %v479, %v1260
        %1262 = vmatpush1.msra.mxu0 %v1261
        %v1263 = vand.u32 %v488, 4294901760
        %v1264 = vsub.f32 %v488, %v1263
        %1265 = vmatprep.subr.mxu0 %v1264
        %v1266 = vand.u32 %v487, 4294901760
        %v1267 = vsub.f32 %v487, %v1266
        %1268 = vmatpush1.msra.mxu0 %v1267
        %v1269 = vand.u32 %v496, 4294901760
        %v1270 = vsub.f32 %v496, %v1269
        %1271 = vmatprep.subr.mxu0 %v1270
        %v1272 = vand.u32 %v495, 4294901760
        %v1273 = vsub.f32 %v495, %v1272
        %1274 = vmatpush1.msra.mxu0 %v1273
        %v1275 = vand.u32 %v504, 4294901760
        %v1276 = vsub.f32 %v504, %v1275
        %1277 = vmatprep.subr.mxu0 %v1276
        %v1278 = vand.u32 %v503, 4294901760
        %v1279 = vsub.f32 %v503, %v1278
        %1280 = vmatpush1.msra.mxu0 %v1279
        %v1281 = vand.u32 %v512, 4294901760
        %v1282 = vsub.f32 %v512, %v1281
        %1283 = vmatprep.subr.mxu0 %v1282
        %v1284 = vand.u32 %v511, 4294901760
        %v1285 = vsub.f32 %v511, %v1284
        %1286 = vmatpush1.msra.mxu0 %v1285
        %v1287 = vand.u32 %v520, 4294901760
        %v1288 = vsub.f32 %v520, %v1287
        %1289 = vmatprep.subr.mxu0 %v1288
        %v1290 = vand.u32 %v519, 4294901760
        %v1291 = vsub.f32 %v519, %v1290
        %1292 = vmatpush1.msra.mxu0 %v1291
        %v1293 = vand.u32 %v528, 4294901760
        %v1294 = vsub.f32 %v528, %v1293
        %1295 = vmatprep.subr.mxu0 %v1294
        %v1296 = vand.u32 %v527, 4294901760
        %v1297 = vsub.f32 %v527, %v1296
        %1298 = vmatpush1.msra.mxu0 %v1297
        %v1299 = vand.u32 %v536, 4294901760
        %v1300 = vsub.f32 %v536, %v1299
        %1301 = vmatprep.subr.mxu0 %v1300
        %v1302 = vand.u32 %v535, 4294901760
        %v1303 = vsub.f32 %v535, %v1302
        %1304 = vmatpush1.msra.mxu0 %v1303
        %v1305 = vand.u32 %v544, 4294901760
        %v1306 = vsub.f32 %v544, %v1305
        %1307 = vmatprep.subr.mxu0 %v1306
        %v1308 = vand.u32 %v543, 4294901760
        %v1309 = vsub.f32 %v543, %v1308
        %1310 = vmatpush1.msra.mxu0 %v1309
        %v1311 = vand.u32 %v552, 4294901760
        %v1312 = vsub.f32 %v552, %v1311
        %1313 = vmatprep.subr.mxu0 %v1312
        %v1314 = vand.u32 %v551, 4294901760
        %v1315 = vsub.f32 %v551, %v1314
        %1316 = vmatpush1.msra.mxu0 %v1315
        %v1317 = vand.u32 %v560, 4294901760
        %v1318 = vsub.f32 %v560, %v1317
        %1319 = vmatprep.subr.mxu0 %v1318
        %v1320 = vand.u32 %v559, 4294901760
        %v1321 = vsub.f32 %v559, %v1320
        %1322 = vmatpush1.msra.mxu0 %v1321
        %v1323 = vand.u32 %v568, 4294901760
        %v1324 = vsub.f32 %v568, %v1323
        %1325 = vmatprep.subr.mxu0 %v1324
        %v1326 = vand.u32 %v567, 4294901760
        %v1327 = vsub.f32 %v567, %v1326
        %1328 = vmatpush1.msra.mxu0 %v1327
        %v1329 = vand.u32 %v576, 4294901760
        %v1330 = vsub.f32 %v576, %v1329
        %1331 = vmatprep.subr.mxu0 %v1330
        %v1332 = vand.u32 %v575, 4294901760
        %v1333 = vsub.f32 %v575, %v1332
        %1334 = vmatpush1.msra.mxu0 %v1333
        %v1335 = vand.u32 %v584, 4294901760
        %v1336 = vsub.f32 %v584, %v1335
        %1337 = vmatprep.subr.mxu0 %v1336
        %v1338 = vand.u32 %v583, 4294901760
        %v1339 = vsub.f32 %v583, %v1338
        %1340 = vmatpush1.msra.mxu0 %v1339
        %v1341 = vand.u32 %v592, 4294901760
        %v1342 = vsub.f32 %v592, %v1341
        %1343 = vmatprep.subr.mxu0 %v1342
        %v1344 = vand.u32 %v591, 4294901760
        %v1345 = vsub.f32 %v591, %v1344
        %1346 = vmatpush1.msra.mxu0 %v1345
        %v1347 = vand.u32 %v600, 4294901760
        %v1348 = vsub.f32 %v600, %v1347
        %1349 = vmatprep.subr.mxu0 %v1348
        %v1350 = vand.u32 %v599, 4294901760
        %v1351 = vsub.f32 %v599, %v1350
        %1352 = vmatpush1.msra.mxu0 %v1351
        %v1353 = vand.u32 %v608, 4294901760
        %v1354 = vsub.f32 %v608, %v1353
        %1355 = vmatprep.subr.mxu0 %v1354
        %v1356 = vand.u32 %v607, 4294901760
        %v1357 = vsub.f32 %v607, %v1356
        %1358 = vmatpush1.msra.mxu0 %v1357
        %v1359 = vand.u32 %v616, 4294901760
        %v1360 = vsub.f32 %v616, %v1359
        %1361 = vmatprep.subr.mxu0 %v1360
        %v1362 = vand.u32 %v615, 4294901760
        %v1363 = vsub.f32 %v615, %v1362
        %1364 = vmatpush1.msra.mxu0 %v1363
        %v1365 = vand.u32 %v624, 4294901760
        %v1366 = vsub.f32 %v624, %v1365
        %1367 = vmatprep.subr.mxu0 %v1366
        %v1368 = vand.u32 %v623, 4294901760
        %v1369 = vsub.f32 %v623, %v1368
        %1370 = vmatpush1.msra.mxu0 %v1369
        %v1371 = vand.u32 %v632, 4294901760
        %v1372 = vsub.f32 %v632, %v1371
        %1373 = vmatprep.subr.mxu0 %v1372
        %v1374 = vand.u32 %v631, 4294901760
        %v1375 = vsub.f32 %v631, %v1374
        %1376 = vmatpush1.msra.mxu0 %v1375
        %v1377 = vand.u32 %v640, 4294901760
        %v1378 = vsub.f32 %v640, %v1377
        %1379 = vmatprep.subr.mxu0 %v1378
        %v1380 = vand.u32 %v639, 4294901760
        %v1381 = vsub.f32 %v639, %v1380
        %1382 = vmatpush1.msra.mxu0 %v1381
        %v1383 = vand.u32 %v648, 4294901760
        %v1384 = vsub.f32 %v648, %v1383
        %1385 = vmatprep.subr.mxu0 %v1384
        %v1386 = vand.u32 %v647, 4294901760
        %v1387 = vsub.f32 %v647, %v1386
        %1388 = vmatpush1.msra.mxu0 %v1387
        %v1389 = vand.u32 %v656, 4294901760
        %v1390 = vsub.f32 %v656, %v1389
        %1391 = vmatprep.subr.mxu0 %v1390
        %v1392 = vand.u32 %v655, 4294901760
        %v1393 = vsub.f32 %v655, %v1392
        %1394 = vmatpush1.msra.mxu0 %v1393
        %v1395 = vand.u32 %v664, 4294901760
        %v1396 = vsub.f32 %v664, %v1395
        %1397 = vmatprep.subr.mxu0 %v1396
        %v1398 = vand.u32 %v663, 4294901760
        %v1399 = vsub.f32 %v663, %v1398
        %1400 = vmatpush1.msra.mxu0 %v1399
        %v1401 = vand.u32 %v414, 4294901760
        %v1402 = vsub.f32 %v414, %v1401
        %1403 = vmatprep.mubr.f32.mxu0 %v1402
        %v1404 = vand.u32 %v413, 4294901760
        %v1405 = vsub.f32 %v413, %v1404
        %1406 = vmatmul.mubr.f32.gmra.mrb[0].mxu0 %v1405
        %v1407 = vpop.f32.mrb[0].mxu0
        %v1408 = vadd.f32 %v1205, %v1407
        %v1409 = vpop.f32.mrb[0].mxu0
        %v1410 = vadd.f32 %v1207, %v1409
        %1411 = vdwg.mxu0
        %v1412 = vand.u32 %v416, 4294901760
        %1413 = vmatprep.subr.mxu0 %v1412
        %v1414 = vand.u32 %v415, 4294901760
        %1415 = vmatpush1.msra.mxu0 %v1414
        %v1416 = vand.u32 %v424, 4294901760
        %1417 = vmatprep.subr.mxu0 %v1416
        %v1418 = vand.u32 %v423, 4294901760
        %1419 = vmatpush1.msra.mxu0 %v1418
        %v1420 = vand.u32 %v432, 4294901760
        %1421 = vmatprep.subr.mxu0 %v1420
        %v1422 = vand.u32 %v431, 4294901760
        %1423 = vmatpush1.msra.mxu0 %v1422
        %v1424 = vand.u32 %v440, 4294901760
        %1425 = vmatprep.subr.mxu0 %v1424
        %v1426 = vand.u32 %v439, 4294901760
        %1427 = vmatpush1.msra.mxu0 %v1426
        %v1428 = vand.u32 %v448, 4294901760
        %1429 = vmatprep.subr.mxu0 %v1428
        %v1430 = vand.u32 %v447, 4294901760
        %1431 = vmatpush1.msra.mxu0 %v1430
        %v1432 = vand.u32 %v456, 4294901760
        %1433 = vmatprep.subr.mxu0 %v1432
        %v1434 = vand.u32 %v455, 4294901760
        %1435 = vmatpush1.msra.mxu0 %v1434
        %v1436 = vand.u32 %v464, 4294901760
        %1437 = vmatprep.subr.mxu0 %v1436
        %v1438 = vand.u32 %v463, 4294901760
        %1439 = vmatpush1.msra.mxu0 %v1438
        %v1440 = vand.u32 %v472, 4294901760
        %1441 = vmatprep.subr.mxu0 %v1440
        %v1442 = vand.u32 %v471, 4294901760
        %1443 = vmatpush1.msra.mxu0 %v1442
        %v1444 = vand.u32 %v480, 4294901760
        %1445 = vmatprep.subr.mxu0 %v1444
        %v1446 = vand.u32 %v479, 4294901760
        %1447 = vmatpush1.msra.mxu0 %v1446
        %v1448 = vand.u32 %v488, 4294901760
        %1449 = vmatprep.subr.mxu0 %v1448
        %v1450 = vand.u32 %v487, 4294901760
        %1451 = vmatpush1.msra.mxu0 %v1450
        %v1452 = vand.u32 %v496, 4294901760
        %1453 = vmatprep.subr.mxu0 %v1452
        %v1454 = vand.u32 %v495, 4294901760
        %1455 = vmatpush1.msra.mxu0 %v1454
        %v1456 = vand.u32 %v504, 4294901760
        %1457 = vmatprep.subr.mxu0 %v1456
        %v1458 = vand.u32 %v503, 4294901760
        %1459 = vmatpush1.msra.mxu0 %v1458
        %v1460 = vand.u32 %v512, 4294901760
        %1461 = vmatprep.subr.mxu0 %v1460
        %v1462 = vand.u32 %v511, 4294901760
        %1463 = vmatpush1.msra.mxu0 %v1462
        %v1464 = vand.u32 %v520, 4294901760
        %1465 = vmatprep.subr.mxu0 %v1464
        %v1466 = vand.u32 %v519, 4294901760
        %1467 = vmatpush1.msra.mxu0 %v1466
        %v1468 = vand.u32 %v528, 4294901760
        %1469 = vmatprep.subr.mxu0 %v1468
        %v1470 = vand.u32 %v527, 4294901760
        %1471 = vmatpush1.msra.mxu0 %v1470
        %v1472 = vand.u32 %v536, 4294901760
        %1473 = vmatprep.subr.mxu0 %v1472
        %v1474 = vand.u32 %v535, 4294901760
        %1475 = vmatpush1.msra.mxu0 %v1474
        %v1476 = vand.u32 %v544, 4294901760
        %1477 = vmatprep.subr.mxu0 %v1476
        %v1478 = vand.u32 %v543, 4294901760
        %1479 = vmatpush1.msra.mxu0 %v1478
        %v1480 = vand.u32 %v552, 4294901760
        %1481 = vmatprep.subr.mxu0 %v1480
        %v1482 = vand.u32 %v551, 4294901760
        %1483 = vmatpush1.msra.mxu0 %v1482
        %v1484 = vand.u32 %v560, 4294901760
        %1485 = vmatprep.subr.mxu0 %v1484
        %v1486 = vand.u32 %v559, 4294901760
        %1487 = vmatpush1.msra.mxu0 %v1486
        %v1488 = vand.u32 %v568, 4294901760
        %1489 = vmatprep.subr.mxu0 %v1488
        %v1490 = vand.u32 %v567, 4294901760
        %1491 = vmatpush1.msra.mxu0 %v1490
        %v1492 = vand.u32 %v576, 4294901760
        %1493 = vmatprep.subr.mxu0 %v1492
        %v1494 = vand.u32 %v575, 4294901760
        %1495 = vmatpush1.msra.mxu0 %v1494
        %v1496 = vand.u32 %v584, 4294901760
        %1497 = vmatprep.subr.mxu0 %v1496
        %v1498 = vand.u32 %v583, 4294901760
        %1499 = vmatpush1.msra.mxu0 %v1498
        %v1500 = vand.u32 %v592, 4294901760
        %1501 = vmatprep.subr.mxu0 %v1500
        %v1502 = vand.u32 %v591, 4294901760
        %1503 = vmatpush1.msra.mxu0 %v1502
        %v1504 = vand.u32 %v600, 4294901760
        %1505 = vmatprep.subr.mxu0 %v1504
        %v1506 = vand.u32 %v599, 4294901760
        %1507 = vmatpush1.msra.mxu0 %v1506
        %v1508 = vand.u32 %v608, 4294901760
        %1509 = vmatprep.subr.mxu0 %v1508
        %v1510 = vand.u32 %v607, 4294901760
        %1511 = vmatpush1.msra.mxu0 %v1510
        %v1512 = vand.u32 %v616, 4294901760
        %1513 = vmatprep.subr.mxu0 %v1512
        %v1514 = vand.u32 %v615, 4294901760
        %1515 = vmatpush1.msra.mxu0 %v1514
        %v1516 = vand.u32 %v624, 4294901760
        %1517 = vmatprep.subr.mxu0 %v1516
        %v1518 = vand.u32 %v623, 4294901760
        %1519 = vmatpush1.msra.mxu0 %v1518
        %v1520 = vand.u32 %v632, 4294901760
        %1521 = vmatprep.subr.mxu0 %v1520
        %v1522 = vand.u32 %v631, 4294901760
        %1523 = vmatpush1.msra.mxu0 %v1522
        %v1524 = vand.u32 %v640, 4294901760
        %1525 = vmatprep.subr.mxu0 %v1524
        %v1526 = vand.u32 %v639, 4294901760
        %1527 = vmatpush1.msra.mxu0 %v1526
        %v1528 = vand.u32 %v648, 4294901760
        %1529 = vmatprep.subr.mxu0 %v1528
        %v1530 = vand.u32 %v647, 4294901760
        %1531 = vmatpush1.msra.mxu0 %v1530
        %v1532 = vand.u32 %v656, 4294901760
        %1533 = vmatprep.subr.mxu0 %v1532
        %v1534 = vand.u32 %v655, 4294901760
        %1535 = vmatpush1.msra.mxu0 %v1534
        %v1536 = vand.u32 %v664, 4294901760
        %1537 = vmatprep.subr.mxu0 %v1536
        %v1538 = vand.u32 %v663, 4294901760
        %1539 = vmatpush1.msra.mxu0 %v1538
        %v1540 = vand.u32 %v414, 4294901760
        %v1541 = vsub.f32 %v414, %v1540
        %v1542 = vand.u32 %v1541, 4294901760
        %1543 = vmatprep.mubr.f32.mxu0 %v1542
        %v1544 = vand.u32 %v413, 4294901760
        %v1545 = vsub.f32 %v413, %v1544
        %v1546 = vand.u32 %v1545, 4294901760
        %1547 = vmatmul.mubr.f32.gmra.mrb[0].mxu0 %v1546
        %v1548 = vpop.f32.mrb[0].mxu0
        %v1549 = vadd.f32 %v1408, %v1548
        %v1550 = vpop.f32.mrb[0].mxu0
        %v1551 = vadd.f32 %v1410, %v1550
        %1552 = vdwg.mxu0
        %v1553 = vand.u32 %v416, 4294901760
        %v1554 = vsub.f32 %v416, %v1553
        %v1555 = vand.u32 %v1554, 4294901760
        %1556 = vmatprep.subr.mxu0 %v1555
        %v1557 = vand.u32 %v415, 4294901760
        %v1558 = vsub.f32 %v415, %v1557
        %v1559 = vand.u32 %v1558, 4294901760
        %1560 = vmatpush1.msra.mxu0 %v1559
        %v1561 = vand.u32 %v424, 4294901760
        %v1562 = vsub.f32 %v424, %v1561
        %v1563 = vand.u32 %v1562, 4294901760
        %1564 = vmatprep.subr.mxu0 %v1563
        %v1565 = vand.u32 %v423, 4294901760
        %v1566 = vsub.f32 %v423, %v1565
        %v1567 = vand.u32 %v1566, 4294901760
        %1568 = vmatpush1.msra.mxu0 %v1567
        %v1569 = vand.u32 %v432, 4294901760
        %v1570 = vsub.f32 %v432, %v1569
        %v1571 = vand.u32 %v1570, 4294901760
        %1572 = vmatprep.subr.mxu0 %v1571
        %v1573 = vand.u32 %v431, 4294901760
        %v1574 = vsub.f32 %v431, %v1573
        %v1575 = vand.u32 %v1574, 4294901760
        %1576 = vmatpush1.msra.mxu0 %v1575
        %v1577 = vand.u32 %v440, 4294901760
        %v1578 = vsub.f32 %v440, %v1577
        %v1579 = vand.u32 %v1578, 4294901760
        %1580 = vmatprep.subr.mxu0 %v1579
        %v1581 = vand.u32 %v439, 4294901760
        %v1582 = vsub.f32 %v439, %v1581
        %v1583 = vand.u32 %v1582, 4294901760
        %1584 = vmatpush1.msra.mxu0 %v1583
        %v1585 = vand.u32 %v448, 4294901760
        %v1586 = vsub.f32 %v448, %v1585
        %v1587 = vand.u32 %v1586, 4294901760
        %1588 = vmatprep.subr.mxu0 %v1587
        %v1589 = vand.u32 %v447, 4294901760
        %v1590 = vsub.f32 %v447, %v1589
        %v1591 = vand.u32 %v1590, 4294901760
        %1592 = vmatpush1.msra.mxu0 %v1591
        %v1593 = vand.u32 %v456, 4294901760
        %v1594 = vsub.f32 %v456, %v1593
        %v1595 = vand.u32 %v1594, 4294901760
        %1596 = vmatprep.subr.mxu0 %v1595
        %v1597 = vand.u32 %v455, 4294901760
        %v1598 = vsub.f32 %v455, %v1597
        %v1599 = vand.u32 %v1598, 4294901760
        %1600 = vmatpush1.msra.mxu0 %v1599
        %v1601 = vand.u32 %v464, 4294901760
        %v1602 = vsub.f32 %v464, %v1601
        %v1603 = vand.u32 %v1602, 4294901760
        %1604 = vmatprep.subr.mxu0 %v1603
        %v1605 = vand.u32 %v463, 4294901760
        %v1606 = vsub.f32 %v463, %v1605
        %v1607 = vand.u32 %v1606, 4294901760
        %1608 = vmatpush1.msra.mxu0 %v1607
        %v1609 = vand.u32 %v472, 4294901760
        %v1610 = vsub.f32 %v472, %v1609
        %v1611 = vand.u32 %v1610, 4294901760
        %1612 = vmatprep.subr.mxu0 %v1611
        %v1613 = vand.u32 %v471, 4294901760
        %v1614 = vsub.f32 %v471, %v1613
        %v1615 = vand.u32 %v1614, 4294901760
        %1616 = vmatpush1.msra.mxu0 %v1615
        %v1617 = vand.u32 %v480, 4294901760
        %v1618 = vsub.f32 %v480, %v1617
        %v1619 = vand.u32 %v1618, 4294901760
        %1620 = vmatprep.subr.mxu0 %v1619
        %v1621 = vand.u32 %v479, 4294901760
        %v1622 = vsub.f32 %v479, %v1621
        %v1623 = vand.u32 %v1622, 4294901760
        %1624 = vmatpush1.msra.mxu0 %v1623
        %v1625 = vand.u32 %v488, 4294901760
        %v1626 = vsub.f32 %v488, %v1625
        %v1627 = vand.u32 %v1626, 4294901760
        %1628 = vmatprep.subr.mxu0 %v1627
        %v1629 = vand.u32 %v487, 4294901760
        %v1630 = vsub.f32 %v487, %v1629
        %v1631 = vand.u32 %v1630, 4294901760
        %1632 = vmatpush1.msra.mxu0 %v1631
        %v1633 = vand.u32 %v496, 4294901760
        %v1634 = vsub.f32 %v496, %v1633
        %v1635 = vand.u32 %v1634, 4294901760
        %1636 = vmatprep.subr.mxu0 %v1635
        %v1637 = vand.u32 %v495, 4294901760
        %v1638 = vsub.f32 %v495, %v1637
        %v1639 = vand.u32 %v1638, 4294901760
        %1640 = vmatpush1.msra.mxu0 %v1639
        %v1641 = vand.u32 %v504, 4294901760
        %v1642 = vsub.f32 %v504, %v1641
        %v1643 = vand.u32 %v1642, 4294901760
        %1644 = vmatprep.subr.mxu0 %v1643
        %v1645 = vand.u32 %v503, 4294901760
        %v1646 = vsub.f32 %v503, %v1645
        %v1647 = vand.u32 %v1646, 4294901760
        %1648 = vmatpush1.msra.mxu0 %v1647
        %v1649 = vand.u32 %v512, 4294901760
        %v1650 = vsub.f32 %v512, %v1649
        %v1651 = vand.u32 %v1650, 4294901760
        %1652 = vmatprep.subr.mxu0 %v1651
        %v1653 = vand.u32 %v511, 4294901760
        %v1654 = vsub.f32 %v511, %v1653
        %v1655 = vand.u32 %v1654, 4294901760
        %1656 = vmatpush1.msra.mxu0 %v1655
        %v1657 = vand.u32 %v520, 4294901760
        %v1658 = vsub.f32 %v520, %v1657
        %v1659 = vand.u32 %v1658, 4294901760
        %1660 = vmatprep.subr.mxu0 %v1659
        %v1661 = vand.u32 %v519, 4294901760
        %v1662 = vsub.f32 %v519, %v1661
        %v1663 = vand.u32 %v1662, 4294901760
        %1664 = vmatpush1.msra.mxu0 %v1663
        %v1665 = vand.u32 %v528, 4294901760
        %v1666 = vsub.f32 %v528, %v1665
        %v1667 = vand.u32 %v1666, 4294901760
        %1668 = vmatprep.subr.mxu0 %v1667
        %v1669 = vand.u32 %v527, 4294901760
        %v1670 = vsub.f32 %v527, %v1669
        %v1671 = vand.u32 %v1670, 4294901760
        %1672 = vmatpush1.msra.mxu0 %v1671
        %v1673 = vand.u32 %v536, 4294901760
        %v1674 = vsub.f32 %v536, %v1673
        %v1675 = vand.u32 %v1674, 4294901760
        %1676 = vmatprep.subr.mxu0 %v1675
        %v1677 = vand.u32 %v535, 4294901760
        %v1678 = vsub.f32 %v535, %v1677
        %v1679 = vand.u32 %v1678, 4294901760
        %1680 = vmatpush1.msra.mxu0 %v1679
        %v1681 = vand.u32 %v544, 4294901760
        %v1682 = vsub.f32 %v544, %v1681
        %v1683 = vand.u32 %v1682, 4294901760
        %1684 = vmatprep.subr.mxu0 %v1683
        %v1685 = vand.u32 %v543, 4294901760
        %v1686 = vsub.f32 %v543, %v1685
        %v1687 = vand.u32 %v1686, 4294901760
        %1688 = vmatpush1.msra.mxu0 %v1687
        %v1689 = vand.u32 %v552, 4294901760
        %v1690 = vsub.f32 %v552, %v1689
        %v1691 = vand.u32 %v1690, 4294901760
        %1692 = vmatprep.subr.mxu0 %v1691
        %v1693 = vand.u32 %v551, 4294901760
        %v1694 = vsub.f32 %v551, %v1693
        %v1695 = vand.u32 %v1694, 4294901760
        %1696 = vmatpush1.msra.mxu0 %v1695
        %v1697 = vand.u32 %v560, 4294901760
        %v1698 = vsub.f32 %v560, %v1697
        %v1699 = vand.u32 %v1698, 4294901760
        %1700 = vmatprep.subr.mxu0 %v1699
        %v1701 = vand.u32 %v559, 4294901760
        %v1702 = vsub.f32 %v559, %v1701
        %v1703 = vand.u32 %v1702, 4294901760
        %1704 = vmatpush1.msra.mxu0 %v1703
        %v1705 = vand.u32 %v568, 4294901760
        %v1706 = vsub.f32 %v568, %v1705
        %v1707 = vand.u32 %v1706, 4294901760
        %1708 = vmatprep.subr.mxu0 %v1707
        %v1709 = vand.u32 %v567, 4294901760
        %v1710 = vsub.f32 %v567, %v1709
        %v1711 = vand.u32 %v1710, 4294901760
        %1712 = vmatpush1.msra.mxu0 %v1711
        %v1713 = vand.u32 %v576, 4294901760
        %v1714 = vsub.f32 %v576, %v1713
        %v1715 = vand.u32 %v1714, 4294901760
        %1716 = vmatprep.subr.mxu0 %v1715
        %v1717 = vand.u32 %v575, 4294901760
        %v1718 = vsub.f32 %v575, %v1717
        %v1719 = vand.u32 %v1718, 4294901760
        %1720 = vmatpush1.msra.mxu0 %v1719
        %v1721 = vand.u32 %v584, 4294901760
        %v1722 = vsub.f32 %v584, %v1721
        %v1723 = vand.u32 %v1722, 4294901760
        %1724 = vmatprep.subr.mxu0 %v1723
        %v1725 = vand.u32 %v583, 4294901760
        %v1726 = vsub.f32 %v583, %v1725
        %v1727 = vand.u32 %v1726, 4294901760
        %1728 = vmatpush1.msra.mxu0 %v1727
        %v1729 = vand.u32 %v592, 4294901760
        %v1730 = vsub.f32 %v592, %v1729
        %v1731 = vand.u32 %v1730, 4294901760
        %1732 = vmatprep.subr.mxu0 %v1731
        %v1733 = vand.u32 %v591, 4294901760
        %v1734 = vsub.f32 %v591, %v1733
        %v1735 = vand.u32 %v1734, 4294901760
        %1736 = vmatpush1.msra.mxu0 %v1735
        %v1737 = vand.u32 %v600, 4294901760
        %v1738 = vsub.f32 %v600, %v1737
        %v1739 = vand.u32 %v1738, 4294901760
        %1740 = vmatprep.subr.mxu0 %v1739
        %v1741 = vand.u32 %v599, 4294901760
        %v1742 = vsub.f32 %v599, %v1741
        %v1743 = vand.u32 %v1742, 4294901760
        %1744 = vmatpush1.msra.mxu0 %v1743
        %v1745 = vand.u32 %v608, 4294901760
        %v1746 = vsub.f32 %v608, %v1745
        %v1747 = vand.u32 %v1746, 4294901760
        %1748 = vmatprep.subr.mxu0 %v1747
        %v1749 = vand.u32 %v607, 4294901760
        %v1750 = vsub.f32 %v607, %v1749
        %v1751 = vand.u32 %v1750, 4294901760
        %1752 = vmatpush1.msra.mxu0 %v1751
        %v1753 = vand.u32 %v616, 4294901760
        %v1754 = vsub.f32 %v616, %v1753
        %v1755 = vand.u32 %v1754, 4294901760
        %1756 = vmatprep.subr.mxu0 %v1755
        %v1757 = vand.u32 %v615, 4294901760
        %v1758 = vsub.f32 %v615, %v1757
        %v1759 = vand.u32 %v1758, 4294901760
        %1760 = vmatpush1.msra.mxu0 %v1759
        %v1761 = vand.u32 %v624, 4294901760
        %v1762 = vsub.f32 %v624, %v1761
        %v1763 = vand.u32 %v1762, 4294901760
        %1764 = vmatprep.subr.mxu0 %v1763
        %v1765 = vand.u32 %v623, 4294901760
        %v1766 = vsub.f32 %v623, %v1765
        %v1767 = vand.u32 %v1766, 4294901760
        %1768 = vmatpush1.msra.mxu0 %v1767
        %v1769 = vand.u32 %v632, 4294901760
        %v1770 = vsub.f32 %v632, %v1769
        %v1771 = vand.u32 %v1770, 4294901760
        %1772 = vmatprep.subr.mxu0 %v1771
        %v1773 = vand.u32 %v631, 4294901760
        %v1774 = vsub.f32 %v631, %v1773
        %v1775 = vand.u32 %v1774, 4294901760
        %1776 = vmatpush1.msra.mxu0 %v1775
        %v1777 = vand.u32 %v640, 4294901760
        %v1778 = vsub.f32 %v640, %v1777
        %v1779 = vand.u32 %v1778, 4294901760
        %1780 = vmatprep.subr.mxu0 %v1779
        %v1781 = vand.u32 %v639, 4294901760
        %v1782 = vsub.f32 %v639, %v1781
        %v1783 = vand.u32 %v1782, 4294901760
        %1784 = vmatpush1.msra.mxu0 %v1783
        %v1785 = vand.u32 %v648, 4294901760
        %v1786 = vsub.f32 %v648, %v1785
        %v1787 = vand.u32 %v1786, 4294901760
        %1788 = vmatprep.subr.mxu0 %v1787
        %v1789 = vand.u32 %v647, 4294901760
        %v1790 = vsub.f32 %v647, %v1789
        %v1791 = vand.u32 %v1790, 4294901760
        %1792 = vmatpush1.msra.mxu0 %v1791
        %v1793 = vand.u32 %v656, 4294901760
        %v1794 = vsub.f32 %v656, %v1793
        %v1795 = vand.u32 %v1794, 4294901760
        %1796 = vmatprep.subr.mxu0 %v1795
        %v1797 = vand.u32 %v655, 4294901760
        %v1798 = vsub.f32 %v655, %v1797
        %v1799 = vand.u32 %v1798, 4294901760
        %1800 = vmatpush1.msra.mxu0 %v1799
        %v1801 = vand.u32 %v664, 4294901760
        %v1802 = vsub.f32 %v664, %v1801
        %v1803 = vand.u32 %v1802, 4294901760
        %1804 = vmatprep.subr.mxu0 %v1803
        %v1805 = vand.u32 %v663, 4294901760
        %v1806 = vsub.f32 %v663, %v1805
        %v1807 = vand.u32 %v1806, 4294901760
        %1808 = vmatpush1.msra.mxu0 %v1807
        %v1809 = vand.u32 %v414, 4294901760
        %1810 = vmatprep.mubr.f32.mxu0 %v1809
        %v1811 = vand.u32 %v413, 4294901760
        %1812 = vmatmul.mubr.f32.gmra.mrb[0].mxu0 %v1811
        %v1813 = vpop.f32.mrb[0].mxu0
        %v1814 = vadd.f32 %v1549, %v1813
        %v1815 = vpop.f32.mrb[0].mxu0
        %v1816 = vadd.f32 %v1551, %v1815
        %1817 = vdwg.mxu0
        %v1818 = vand.u32 %v416, 4294901760
        %1819 = vmatprep.subr.mxu0 %v1818
        %v1820 = vand.u32 %v415, 4294901760
        %1821 = vmatpush1.msra.mxu0 %v1820
        %v1822 = vand.u32 %v424, 4294901760
        %1823 = vmatprep.subr.mxu0 %v1822
        %v1824 = vand.u32 %v423, 4294901760
        %1825 = vmatpush1.msra.mxu0 %v1824
        %v1826 = vand.u32 %v432, 4294901760
        %1827 = vmatprep.subr.mxu0 %v1826
        %v1828 = vand.u32 %v431, 4294901760
        %1829 = vmatpush1.msra.mxu0 %v1828
        %v1830 = vand.u32 %v440, 4294901760
        %1831 = vmatprep.subr.mxu0 %v1830
        %v1832 = vand.u32 %v439, 4294901760
        %1833 = vmatpush1.msra.mxu0 %v1832
        %v1834 = vand.u32 %v448, 4294901760
        %1835 = vmatprep.subr.mxu0 %v1834
        %v1836 = vand.u32 %v447, 4294901760
        %1837 = vmatpush1.msra.mxu0 %v1836
        %v1838 = vand.u32 %v456, 4294901760
        %1839 = vmatprep.subr.mxu0 %v1838
        %v1840 = vand.u32 %v455, 4294901760
        %1841 = vmatpush1.msra.mxu0 %v1840
        %v1842 = vand.u32 %v464, 4294901760
        %1843 = vmatprep.subr.mxu0 %v1842
        %v1844 = vand.u32 %v463, 4294901760
        %1845 = vmatpush1.msra.mxu0 %v1844
        %v1846 = vand.u32 %v472, 4294901760
        %1847 = vmatprep.subr.mxu0 %v1846
        %v1848 = vand.u32 %v471, 4294901760
        %1849 = vmatpush1.msra.mxu0 %v1848
        %v1850 = vand.u32 %v480, 4294901760
        %1851 = vmatprep.subr.mxu0 %v1850
        %v1852 = vand.u32 %v479, 4294901760
        %1853 = vmatpush1.msra.mxu0 %v1852
        %v1854 = vand.u32 %v488, 4294901760
        %1855 = vmatprep.subr.mxu0 %v1854
        %v1856 = vand.u32 %v487, 4294901760
        %1857 = vmatpush1.msra.mxu0 %v1856
        %v1858 = vand.u32 %v496, 4294901760
        %1859 = vmatprep.subr.mxu0 %v1858
        %v1860 = vand.u32 %v495, 4294901760
        %1861 = vmatpush1.msra.mxu0 %v1860
        %v1862 = vand.u32 %v504, 4294901760
        %1863 = vmatprep.subr.mxu0 %v1862
        %v1864 = vand.u32 %v503, 4294901760
        %1865 = vmatpush1.msra.mxu0 %v1864
        %v1866 = vand.u32 %v512, 4294901760
        %1867 = vmatprep.subr.mxu0 %v1866
        %v1868 = vand.u32 %v511, 4294901760
        %1869 = vmatpush1.msra.mxu0 %v1868
        %v1870 = vand.u32 %v520, 4294901760
        %1871 = vmatprep.subr.mxu0 %v1870
        %v1872 = vand.u32 %v519, 4294901760
        %1873 = vmatpush1.msra.mxu0 %v1872
        %v1874 = vand.u32 %v528, 4294901760
        %1875 = vmatprep.subr.mxu0 %v1874
        %v1876 = vand.u32 %v527, 4294901760
        %1877 = vmatpush1.msra.mxu0 %v1876
        %v1878 = vand.u32 %v536, 4294901760
        %1879 = vmatprep.subr.mxu0 %v1878
        %v1880 = vand.u32 %v535, 4294901760
        %1881 = vmatpush1.msra.mxu0 %v1880
        %v1882 = vand.u32 %v544, 4294901760
        %1883 = vmatprep.subr.mxu0 %v1882
        %v1884 = vand.u32 %v543, 4294901760
        %1885 = vmatpush1.msra.mxu0 %v1884
        %v1886 = vand.u32 %v552, 4294901760
        %1887 = vmatprep.subr.mxu0 %v1886
        %v1888 = vand.u32 %v551, 4294901760
        %1889 = vmatpush1.msra.mxu0 %v1888
        %v1890 = vand.u32 %v560, 4294901760
        %1891 = vmatprep.subr.mxu0 %v1890
        %v1892 = vand.u32 %v559, 4294901760
        %1893 = vmatpush1.msra.mxu0 %v1892
        %v1894 = vand.u32 %v568, 4294901760
        %1895 = vmatprep.subr.mxu0 %v1894
        %v1896 = vand.u32 %v567, 4294901760
        %1897 = vmatpush1.msra.mxu0 %v1896
        %v1898 = vand.u32 %v576, 4294901760
        %1899 = vmatprep.subr.mxu0 %v1898
        %v1900 = vand.u32 %v575, 4294901760
        %1901 = vmatpush1.msra.mxu0 %v1900
        %v1902 = vand.u32 %v584, 4294901760
        %1903 = vmatprep.subr.mxu0 %v1902
        %v1904 = vand.u32 %v583, 4294901760
        %1905 = vmatpush1.msra.mxu0 %v1904
        %v1906 = vand.u32 %v592, 4294901760
        %1907 = vmatprep.subr.mxu0 %v1906
        %v1908 = vand.u32 %v591, 4294901760
        %1909 = vmatpush1.msra.mxu0 %v1908
        %v1910 = vand.u32 %v600, 4294901760
        %1911 = vmatprep.subr.mxu0 %v1910
        %v1912 = vand.u32 %v599, 4294901760
        %1913 = vmatpush1.msra.mxu0 %v1912
        %v1914 = vand.u32 %v608, 4294901760
        %1915 = vmatprep.subr.mxu0 %v1914
        %v1916 = vand.u32 %v607, 4294901760
        %1917 = vmatpush1.msra.mxu0 %v1916
        %v1918 = vand.u32 %v616, 4294901760
        %1919 = vmatprep.subr.mxu0 %v1918
        %v1920 = vand.u32 %v615, 4294901760
        %1921 = vmatpush1.msra.mxu0 %v1920
        %v1922 = vand.u32 %v624, 4294901760
        %1923 = vmatprep.subr.mxu0 %v1922
        %v1924 = vand.u32 %v623, 4294901760
        %1925 = vmatpush1.msra.mxu0 %v1924
        %v1926 = vand.u32 %v632, 4294901760
        %1927 = vmatprep.subr.mxu0 %v1926
        %v1928 = vand.u32 %v631, 4294901760
        %1929 = vmatpush1.msra.mxu0 %v1928
        %v1930 = vand.u32 %v640, 4294901760
        %1931 = vmatprep.subr.mxu0 %v1930
        %v1932 = vand.u32 %v639, 4294901760
        %1933 = vmatpush1.msra.mxu0 %v1932
        %v1934 = vand.u32 %v648, 4294901760
        %1935 = vmatprep.subr.mxu0 %v1934
        %v1936 = vand.u32 %v647, 4294901760
        %1937 = vmatpush1.msra.mxu0 %v1936
        %v1938 = vand.u32 %v656, 4294901760
        %1939 = vmatprep.subr.mxu0 %v1938
        %v1940 = vand.u32 %v655, 4294901760
        %1941 = vmatpush1.msra.mxu0 %v1940
        %v1942 = vand.u32 %v664, 4294901760
        %1943 = vmatprep.subr.mxu0 %v1942
        %v1944 = vand.u32 %v663, 4294901760
        %1945 = vmatpush1.msra.mxu0 %v1944
        %v1946 = vand.u32 %v414, 4294901760
        %1947 = vmatprep.mubr.f32.mxu0 %v1946
        %v1948 = vand.u32 %v413, 4294901760
        %1949 = vmatmul.mubr.f32.gmra.mrb[0].mxu0 %v1948
        %v1950 = vpop.f32.mrb[0].mxu0
        %v1951 = vadd.f32 %v1814, %v1950
        %v1952 = vpop.f32.mrb[0].mxu0
        %v1953 = vadd.f32 %v1816, %v1952
        %1954 = vdwg.mxu0
        %v1955 = vand.u32 %v418, 4294901760
        %1956 = vmatprep.subr.mxu0 %v1955
        %v1957 = vand.u32 %v417, 4294901760
        %1958 = vmatpush1.msra.mxu0 %v1957
        %v1959 = vand.u32 %v426, 4294901760
        %1960 = vmatprep.subr.mxu0 %v1959
        %v1961 = vand.u32 %v425, 4294901760
        %1962 = vmatpush1.msra.mxu0 %v1961
        %v1963 = vand.u32 %v434, 4294901760
        %1964 = vmatprep.subr.mxu0 %v1963
        %v1965 = vand.u32 %v433, 4294901760
        %1966 = vmatpush1.msra.mxu0 %v1965
        %v1967 = vand.u32 %v442, 4294901760
        %1968 = vmatprep.subr.mxu0 %v1967
        %v1969 = vand.u32 %v441, 4294901760
        %1970 = vmatpush1.msra.mxu0 %v1969
        %v1971 = vand.u32 %v450, 4294901760
        %1972 = vmatprep.subr.mxu0 %v1971
        %v1973 = vand.u32 %v449, 4294901760
        %1974 = vmatpush1.msra.mxu0 %v1973
        %v1975 = vand.u32 %v458, 4294901760
        %1976 = vmatprep.subr.mxu0 %v1975
        %v1977 = vand.u32 %v457, 4294901760
        %1978 = vmatpush1.msra.mxu0 %v1977
        %v1979 = vand.u32 %v466, 4294901760
        %1980 = vmatprep.subr.mxu0 %v1979
        %v1981 = vand.u32 %v465, 4294901760
        %1982 = vmatpush1.msra.mxu0 %v1981
        %v1983 = vand.u32 %v474, 4294901760
        %1984 = vmatprep.subr.mxu0 %v1983
        %v1985 = vand.u32 %v473, 4294901760
        %1986 = vmatpush1.msra.mxu0 %v1985
        %v1987 = vand.u32 %v482, 4294901760
        %1988 = vmatprep.subr.mxu0 %v1987
        %v1989 = vand.u32 %v481, 4294901760
        %1990 = vmatpush1.msra.mxu0 %v1989
        %v1991 = vand.u32 %v490, 4294901760
        %1992 = vmatprep.subr.mxu0 %v1991
        %v1993 = vand.u32 %v489, 4294901760
        %1994 = vmatpush1.msra.mxu0 %v1993
        %v1995 = vand.u32 %v498, 4294901760
        %1996 = vmatprep.subr.mxu0 %v1995
        %v1997 = vand.u32 %v497, 4294901760
        %1998 = vmatpush1.msra.mxu0 %v1997
        %v1999 = vand.u32 %v506, 4294901760
        %2000 = vmatprep.subr.mxu0 %v1999
        %v2001 = vand.u32 %v505, 4294901760
        %2002 = vmatpush1.msra.mxu0 %v2001
        %v2003 = vand.u32 %v514, 4294901760
        %2004 = vmatprep.subr.mxu0 %v2003
        %v2005 = vand.u32 %v513, 4294901760
        %2006 = vmatpush1.msra.mxu0 %v2005
        %v2007 = vand.u32 %v522, 4294901760
        %2008 = vmatprep.subr.mxu0 %v2007
        %v2009 = vand.u32 %v521, 4294901760
        %2010 = vmatpush1.msra.mxu0 %v2009
        %v2011 = vand.u32 %v530, 4294901760
        %2012 = vmatprep.subr.mxu0 %v2011
        %v2013 = vand.u32 %v529, 4294901760
        %2014 = vmatpush1.msra.mxu0 %v2013
        %v2015 = vand.u32 %v538, 4294901760
        %2016 = vmatprep.subr.mxu0 %v2015
        %v2017 = vand.u32 %v537, 4294901760
        %2018 = vmatpush1.msra.mxu0 %v2017
        %v2019 = vand.u32 %v546, 4294901760
        %2020 = vmatprep.subr.mxu0 %v2019
        %v2021 = vand.u32 %v545, 4294901760
        %2022 = vmatpush1.msra.mxu0 %v2021
        %v2023 = vand.u32 %v554, 4294901760
        %2024 = vmatprep.subr.mxu0 %v2023
        %v2025 = vand.u32 %v553, 4294901760
        %2026 = vmatpush1.msra.mxu0 %v2025
        %v2027 = vand.u32 %v562, 4294901760
        %2028 = vmatprep.subr.mxu0 %v2027
        %v2029 = vand.u32 %v561, 4294901760
        %2030 = vmatpush1.msra.mxu0 %v2029
        %v2031 = vand.u32 %v570, 4294901760
        %2032 = vmatprep.subr.mxu0 %v2031
        %v2033 = vand.u32 %v569, 4294901760
        %2034 = vmatpush1.msra.mxu0 %v2033
        %v2035 = vand.u32 %v578, 4294901760
        %2036 = vmatprep.subr.mxu0 %v2035
        %v2037 = vand.u32 %v577, 4294901760
        %2038 = vmatpush1.msra.mxu0 %v2037
        %v2039 = vand.u32 %v586, 4294901760
        %2040 = vmatprep.subr.mxu0 %v2039
        %v2041 = vand.u32 %v585, 4294901760
        %2042 = vmatpush1.msra.mxu0 %v2041
        %v2043 = vand.u32 %v594, 4294901760
        %2044 = vmatprep.subr.mxu0 %v2043
        %v2045 = vand.u32 %v593, 4294901760
        %2046 = vmatpush1.msra.mxu0 %v2045
        %v2047 = vand.u32 %v602, 4294901760
        %2048 = vmatprep.subr.mxu0 %v2047
        %v2049 = vand.u32 %v601, 4294901760
        %2050 = vmatpush1.msra.mxu0 %v2049
        %v2051 = vand.u32 %v610, 4294901760
        %2052 = vmatprep.subr.mxu0 %v2051
        %v2053 = vand.u32 %v609, 4294901760
        %2054 = vmatpush1.msra.mxu0 %v2053
        %v2055 = vand.u32 %v618, 4294901760
        %2056 = vmatprep.subr.mxu0 %v2055
        %v2057 = vand.u32 %v617, 4294901760
        %2058 = vmatpush1.msra.mxu0 %v2057
        %v2059 = vand.u32 %v626, 4294901760
        %2060 = vmatprep.subr.mxu0 %v2059
        %v2061 = vand.u32 %v625, 4294901760
        %2062 = vmatpush1.msra.mxu0 %v2061
        %v2063 = vand.u32 %v634, 4294901760
        %2064 = vmatprep.subr.mxu0 %v2063
        %v2065 = vand.u32 %v633, 4294901760
        %2066 = vmatpush1.msra.mxu0 %v2065
        %v2067 = vand.u32 %v642, 4294901760
        %2068 = vmatprep.subr.mxu0 %v2067
        %v2069 = vand.u32 %v641, 4294901760
        %2070 = vmatpush1.msra.mxu0 %v2069
        %v2071 = vand.u32 %v650, 4294901760
        %2072 = vmatprep.subr.mxu0 %v2071
        %v2073 = vand.u32 %v649, 4294901760
        %2074 = vmatpush1.msra.mxu0 %v2073
        %v2075 = vand.u32 %v658, 4294901760
        %2076 = vmatprep.subr.mxu0 %v2075
        %v2077 = vand.u32 %v657, 4294901760
        %2078 = vmatpush1.msra.mxu0 %v2077
        %v2079 = vand.u32 %v666, 4294901760
        %2080 = vmatprep.subr.mxu0 %v2079
        %v2081 = vand.u32 %v665, 4294901760
        %2082 = vmatpush1.msra.mxu0 %v2081
        %v2083 = vand.u32 %v414, 4294901760
        %v2084 = vsub.f32 %v414, %v2083
        %v2085 = vand.u32 %v2084, 4294901760
        %v2086 = vsub.f32 %v2084, %v2085
        %v2087 = vand.u32 %v2086, 4294901760
        %2088 = vmatprep.mubr.f32.mxu0 %v2087
        %v2089 = vand.u32 %v413, 4294901760
        %v2090 = vsub.f32 %v413, %v2089
        %v2091 = vand.u32 %v2090, 4294901760
        %v2092 = vsub.f32 %v2090, %v2091
        %v2093 = vand.u32 %v2092, 4294901760
        %2094 = vmatmul.mubr.f32.gmra.mrb[0].mxu0 %v2093
        %v2095 = vpop.f32.mrb[0].mxu0
        %v2096 = vadd.f32 0.0, %v2095
        %v2097 = vpop.f32.mrb[0].mxu0
        %v2098 = vadd.f32 0.0, %v2097
        %2099 = vdwg.mxu0
        %v2100 = vand.u32 %v418, 4294901760
        %v2101 = vsub.f32 %v418, %v2100
        %v2102 = vand.u32 %v2101, 4294901760
        %v2103 = vsub.f32 %v2101, %v2102
        %v2104 = vand.u32 %v2103, 4294901760
        %2105 = vmatprep.subr.mxu0 %v2104
        %v2106 = vand.u32 %v417, 4294901760
        %v2107 = vsub.f32 %v417, %v2106
        %v2108 = vand.u32 %v2107, 4294901760
        %v2109 = vsub.f32 %v2107, %v2108
        %v2110 = vand.u32 %v2109, 4294901760
        %2111 = vmatpush1.msra.mxu0 %v2110
        %v2112 = vand.u32 %v426, 4294901760
        %v2113 = vsub.f32 %v426, %v2112
        %v2114 = vand.u32 %v2113, 4294901760
        %v2115 = vsub.f32 %v2113, %v2114
        %v2116 = vand.u32 %v2115, 4294901760
        %2117 = vmatprep.subr.mxu0 %v2116
        %v2118 = vand.u32 %v425, 4294901760
        %v2119 = vsub.f32 %v425, %v2118
        %v2120 = vand.u32 %v2119, 4294901760
        %v2121 = vsub.f32 %v2119, %v2120
        %v2122 = vand.u32 %v2121, 4294901760
        %2123 = vmatpush1.msra.mxu0 %v2122
        %v2124 = vand.u32 %v434, 4294901760
        %v2125 = vsub.f32 %v434, %v2124
        %v2126 = vand.u32 %v2125, 4294901760
        %v2127 = vsub.f32 %v2125, %v2126
        %v2128 = vand.u32 %v2127, 4294901760
        %2129 = vmatprep.subr.mxu0 %v2128
        %v2130 = vand.u32 %v433, 4294901760
        %v2131 = vsub.f32 %v433, %v2130
        %v2132 = vand.u32 %v2131, 4294901760
        %v2133 = vsub.f32 %v2131, %v2132
        %v2134 = vand.u32 %v2133, 4294901760
        %2135 = vmatpush1.msra.mxu0 %v2134
        %v2136 = vand.u32 %v442, 4294901760
        %v2137 = vsub.f32 %v442, %v2136
        %v2138 = vand.u32 %v2137, 4294901760
        %v2139 = vsub.f32 %v2137, %v2138
        %v2140 = vand.u32 %v2139, 4294901760
        %2141 = vmatprep.subr.mxu0 %v2140
        %v2142 = vand.u32 %v441, 4294901760
        %v2143 = vsub.f32 %v441, %v2142
        %v2144 = vand.u32 %v2143, 4294901760
        %v2145 = vsub.f32 %v2143, %v2144
        %v2146 = vand.u32 %v2145, 4294901760
        %2147 = vmatpush1.msra.mxu0 %v2146
        %v2148 = vand.u32 %v450, 4294901760
        %v2149 = vsub.f32 %v450, %v2148
        %v2150 = vand.u32 %v2149, 4294901760
        %v2151 = vsub.f32 %v2149, %v2150
        %v2152 = vand.u32 %v2151, 4294901760
        %2153 = vmatprep.subr.mxu0 %v2152
        %v2154 = vand.u32 %v449, 4294901760
        %v2155 = vsub.f32 %v449, %v2154
        %v2156 = vand.u32 %v2155, 4294901760
        %v2157 = vsub.f32 %v2155, %v2156
        %v2158 = vand.u32 %v2157, 4294901760
        %2159 = vmatpush1.msra.mxu0 %v2158
        %v2160 = vand.u32 %v458, 4294901760
        %v2161 = vsub.f32 %v458, %v2160
        %v2162 = vand.u32 %v2161, 4294901760
        %v2163 = vsub.f32 %v2161, %v2162
        %v2164 = vand.u32 %v2163, 4294901760
        %2165 = vmatprep.subr.mxu0 %v2164
        %v2166 = vand.u32 %v457, 4294901760
        %v2167 = vsub.f32 %v457, %v2166
        %v2168 = vand.u32 %v2167, 4294901760
        %v2169 = vsub.f32 %v2167, %v2168
        %v2170 = vand.u32 %v2169, 4294901760
        %2171 = vmatpush1.msra.mxu0 %v2170
        %v2172 = vand.u32 %v466, 4294901760
        %v2173 = vsub.f32 %v466, %v2172
        %v2174 = vand.u32 %v2173, 4294901760
        %v2175 = vsub.f32 %v2173, %v2174
        %v2176 = vand.u32 %v2175, 4294901760
        %2177 = vmatprep.subr.mxu0 %v2176
        %v2178 = vand.u32 %v465, 4294901760
        %v2179 = vsub.f32 %v465, %v2178
        %v2180 = vand.u32 %v2179, 4294901760
        %v2181 = vsub.f32 %v2179, %v2180
        %v2182 = vand.u32 %v2181, 4294901760
        %2183 = vmatpush1.msra.mxu0 %v2182
        %v2184 = vand.u32 %v474, 4294901760
        %v2185 = vsub.f32 %v474, %v2184
        %v2186 = vand.u32 %v2185, 4294901760
        %v2187 = vsub.f32 %v2185, %v2186
        %v2188 = vand.u32 %v2187, 4294901760
        %2189 = vmatprep.subr.mxu0 %v2188
        %v2190 = vand.u32 %v473, 4294901760
        %v2191 = vsub.f32 %v473, %v2190
        %v2192 = vand.u32 %v2191, 4294901760
        %v2193 = vsub.f32 %v2191, %v2192
        %v2194 = vand.u32 %v2193, 4294901760
        %2195 = vmatpush1.msra.mxu0 %v2194
        %v2196 = vand.u32 %v482, 4294901760
        %v2197 = vsub.f32 %v482, %v2196
        %v2198 = vand.u32 %v2197, 4294901760
        %v2199 = vsub.f32 %v2197, %v2198
        %v2200 = vand.u32 %v2199, 4294901760
        %2201 = vmatprep.subr.mxu0 %v2200
        %v2202 = vand.u32 %v481, 4294901760
        %v2203 = vsub.f32 %v481, %v2202
        %v2204 = vand.u32 %v2203, 4294901760
        %v2205 = vsub.f32 %v2203, %v2204
        %v2206 = vand.u32 %v2205, 4294901760
        %2207 = vmatpush1.msra.mxu0 %v2206
        %v2208 = vand.u32 %v490, 4294901760
        %v2209 = vsub.f32 %v490, %v2208
        %v2210 = vand.u32 %v2209, 4294901760
        %v2211 = vsub.f32 %v2209, %v2210
        %v2212 = vand.u32 %v2211, 4294901760
        %2213 = vmatprep.subr.mxu0 %v2212
        %v2214 = vand.u32 %v489, 4294901760
        %v2215 = vsub.f32 %v489, %v2214
        %v2216 = vand.u32 %v2215, 4294901760
        %v2217 = vsub.f32 %v2215, %v2216
        %v2218 = vand.u32 %v2217, 4294901760
        %2219 = vmatpush1.msra.mxu0 %v2218
        %v2220 = vand.u32 %v498, 4294901760
        %v2221 = vsub.f32 %v498, %v2220
        %v2222 = vand.u32 %v2221, 4294901760
        %v2223 = vsub.f32 %v2221, %v2222
        %v2224 = vand.u32 %v2223, 4294901760
        %2225 = vmatprep.subr.mxu0 %v2224
        %v2226 = vand.u32 %v497, 4294901760
        %v2227 = vsub.f32 %v497, %v2226
        %v2228 = vand.u32 %v2227, 4294901760
        %v2229 = vsub.f32 %v2227, %v2228
        %v2230 = vand.u32 %v2229, 4294901760
        %2231 = vmatpush1.msra.mxu0 %v2230
        %v2232 = vand.u32 %v506, 4294901760
        %v2233 = vsub.f32 %v506, %v2232
        %v2234 = vand.u32 %v2233, 4294901760
        %v2235 = vsub.f32 %v2233, %v2234
        %v2236 = vand.u32 %v2235, 4294901760
        %2237 = vmatprep.subr.mxu0 %v2236
        %v2238 = vand.u32 %v505, 4294901760
        %v2239 = vsub.f32 %v505, %v2238
        %v2240 = vand.u32 %v2239, 4294901760
        %v2241 = vsub.f32 %v2239, %v2240
        %v2242 = vand.u32 %v2241, 4294901760
        %2243 = vmatpush1.msra.mxu0 %v2242
        %v2244 = vand.u32 %v514, 4294901760
        %v2245 = vsub.f32 %v514, %v2244
        %v2246 = vand.u32 %v2245, 4294901760
        %v2247 = vsub.f32 %v2245, %v2246
        %v2248 = vand.u32 %v2247, 4294901760
        %2249 = vmatprep.subr.mxu0 %v2248
        %v2250 = vand.u32 %v513, 4294901760
        %v2251 = vsub.f32 %v513, %v2250
        %v2252 = vand.u32 %v2251, 4294901760
        %v2253 = vsub.f32 %v2251, %v2252
        %v2254 = vand.u32 %v2253, 4294901760
        %2255 = vmatpush1.msra.mxu0 %v2254
        %v2256 = vand.u32 %v522, 4294901760
        %v2257 = vsub.f32 %v522, %v2256
        %v2258 = vand.u32 %v2257, 4294901760
        %v2259 = vsub.f32 %v2257, %v2258
        %v2260 = vand.u32 %v2259, 4294901760
        %2261 = vmatprep.subr.mxu0 %v2260
        %v2262 = vand.u32 %v521, 4294901760
        %v2263 = vsub.f32 %v521, %v2262
        %v2264 = vand.u32 %v2263, 4294901760
        %v2265 = vsub.f32 %v2263, %v2264
        %v2266 = vand.u32 %v2265, 4294901760
        %2267 = vmatpush1.msra.mxu0 %v2266
        %v2268 = vand.u32 %v530, 4294901760
        %v2269 = vsub.f32 %v530, %v2268
        %v2270 = vand.u32 %v2269, 4294901760
        %v2271 = vsub.f32 %v2269, %v2270
        %v2272 = vand.u32 %v2271, 4294901760
        %2273 = vmatprep.subr.mxu0 %v2272
        %v2274 = vand.u32 %v529, 4294901760
        %v2275 = vsub.f32 %v529, %v2274
        %v2276 = vand.u32 %v2275, 4294901760
        %v2277 = vsub.f32 %v2275, %v2276
        %v2278 = vand.u32 %v2277, 4294901760
        %2279 = vmatpush1.msra.mxu0 %v2278
        %v2280 = vand.u32 %v538, 4294901760
        %v2281 = vsub.f32 %v538, %v2280
        %v2282 = vand.u32 %v2281, 4294901760
        %v2283 = vsub.f32 %v2281, %v2282
        %v2284 = vand.u32 %v2283, 4294901760
        %2285 = vmatprep.subr.mxu0 %v2284
        %v2286 = vand.u32 %v537, 4294901760
        %v2287 = vsub.f32 %v537, %v2286
        %v2288 = vand.u32 %v2287, 4294901760
        %v2289 = vsub.f32 %v2287, %v2288
        %v2290 = vand.u32 %v2289, 4294901760
        %2291 = vmatpush1.msra.mxu0 %v2290
        %v2292 = vand.u32 %v546, 4294901760
        %v2293 = vsub.f32 %v546, %v2292
        %v2294 = vand.u32 %v2293, 4294901760
        %v2295 = vsub.f32 %v2293, %v2294
        %v2296 = vand.u32 %v2295, 4294901760
        %2297 = vmatprep.subr.mxu0 %v2296
        %v2298 = vand.u32 %v545, 4294901760
        %v2299 = vsub.f32 %v545, %v2298
        %v2300 = vand.u32 %v2299, 4294901760
        %v2301 = vsub.f32 %v2299, %v2300
        %v2302 = vand.u32 %v2301, 4294901760
        %2303 = vmatpush1.msra.mxu0 %v2302
        %v2304 = vand.u32 %v554, 4294901760
        %v2305 = vsub.f32 %v554, %v2304
        %v2306 = vand.u32 %v2305, 4294901760
        %v2307 = vsub.f32 %v2305, %v2306
        %v2308 = vand.u32 %v2307, 4294901760
        %2309 = vmatprep.subr.mxu0 %v2308
        %v2310 = vand.u32 %v553, 4294901760
        %v2311 = vsub.f32 %v553, %v2310
        %v2312 = vand.u32 %v2311, 4294901760
        %v2313 = vsub.f32 %v2311, %v2312
        %v2314 = vand.u32 %v2313, 4294901760
        %2315 = vmatpush1.msra.mxu0 %v2314
        %v2316 = vand.u32 %v562, 4294901760
        %v2317 = vsub.f32 %v562, %v2316
        %v2318 = vand.u32 %v2317, 4294901760
        %v2319 = vsub.f32 %v2317, %v2318
        %v2320 = vand.u32 %v2319, 4294901760
        %2321 = vmatprep.subr.mxu0 %v2320
        %v2322 = vand.u32 %v561, 4294901760
        %v2323 = vsub.f32 %v561, %v2322
        %v2324 = vand.u32 %v2323, 4294901760
        %v2325 = vsub.f32 %v2323, %v2324
        %v2326 = vand.u32 %v2325, 4294901760
        %2327 = vmatpush1.msra.mxu0 %v2326
        %v2328 = vand.u32 %v570, 4294901760
        %v2329 = vsub.f32 %v570, %v2328
        %v2330 = vand.u32 %v2329, 4294901760
        %v2331 = vsub.f32 %v2329, %v2330
        %v2332 = vand.u32 %v2331, 4294901760
        %2333 = vmatprep.subr.mxu0 %v2332
        %v2334 = vand.u32 %v569, 4294901760
        %v2335 = vsub.f32 %v569, %v2334
        %v2336 = vand.u32 %v2335, 4294901760
        %v2337 = vsub.f32 %v2335, %v2336
        %v2338 = vand.u32 %v2337, 4294901760
        %2339 = vmatpush1.msra.mxu0 %v2338
        %v2340 = vand.u32 %v578, 4294901760
        %v2341 = vsub.f32 %v578, %v2340
        %v2342 = vand.u32 %v2341, 4294901760
        %v2343 = vsub.f32 %v2341, %v2342
        %v2344 = vand.u32 %v2343, 4294901760
        %2345 = vmatprep.subr.mxu0 %v2344
        %v2346 = vand.u32 %v577, 4294901760
        %v2347 = vsub.f32 %v577, %v2346
        %v2348 = vand.u32 %v2347, 4294901760
        %v2349 = vsub.f32 %v2347, %v2348
        %v2350 = vand.u32 %v2349, 4294901760
        %2351 = vmatpush1.msra.mxu0 %v2350
        %v2352 = vand.u32 %v586, 4294901760
        %v2353 = vsub.f32 %v586, %v2352
        %v2354 = vand.u32 %v2353, 4294901760
        %v2355 = vsub.f32 %v2353, %v2354
        %v2356 = vand.u32 %v2355, 4294901760
        %2357 = vmatprep.subr.mxu0 %v2356
        %v2358 = vand.u32 %v585, 4294901760
        %v2359 = vsub.f32 %v585, %v2358
        %v2360 = vand.u32 %v2359, 4294901760
        %v2361 = vsub.f32 %v2359, %v2360
        %v2362 = vand.u32 %v2361, 4294901760
        %2363 = vmatpush1.msra.mxu0 %v2362
        %v2364 = vand.u32 %v594, 4294901760
        %v2365 = vsub.f32 %v594, %v2364
        %v2366 = vand.u32 %v2365, 4294901760
        %v2367 = vsub.f32 %v2365, %v2366
        %v2368 = vand.u32 %v2367, 4294901760
        %2369 = vmatprep.subr.mxu0 %v2368
        %v2370 = vand.u32 %v593, 4294901760
        %v2371 = vsub.f32 %v593, %v2370
        %v2372 = vand.u32 %v2371, 4294901760
        %v2373 = vsub.f32 %v2371, %v2372
        %v2374 = vand.u32 %v2373, 4294901760
        %2375 = vmatpush1.msra.mxu0 %v2374
        %v2376 = vand.u32 %v602, 4294901760
        %v2377 = vsub.f32 %v602, %v2376
        %v2378 = vand.u32 %v2377, 4294901760
        %v2379 = vsub.f32 %v2377, %v2378
        %v2380 = vand.u32 %v2379, 4294901760
        %2381 = vmatprep.subr.mxu0 %v2380
        %v2382 = vand.u32 %v601, 4294901760
        %v2383 = vsub.f32 %v601, %v2382
        %v2384 = vand.u32 %v2383, 4294901760
        %v2385 = vsub.f32 %v2383, %v2384
        %v2386 = vand.u32 %v2385, 4294901760
        %2387 = vmatpush1.msra.mxu0 %v2386
        %v2388 = vand.u32 %v610, 4294901760
        %v2389 = vsub.f32 %v610, %v2388
        %v2390 = vand.u32 %v2389, 4294901760
        %v2391 = vsub.f32 %v2389, %v2390
        %v2392 = vand.u32 %v2391, 4294901760
        %2393 = vmatprep.subr.mxu0 %v2392
        %v2394 = vand.u32 %v609, 4294901760
        %v2395 = vsub.f32 %v609, %v2394
        %v2396 = vand.u32 %v2395, 4294901760
        %v2397 = vsub.f32 %v2395, %v2396
        %v2398 = vand.u32 %v2397, 4294901760
        %2399 = vmatpush1.msra.mxu0 %v2398
        %v2400 = vand.u32 %v618, 4294901760
        %v2401 = vsub.f32 %v618, %v2400
        %v2402 = vand.u32 %v2401, 4294901760
        %v2403 = vsub.f32 %v2401, %v2402
        %v2404 = vand.u32 %v2403, 4294901760
        %2405 = vmatprep.subr.mxu0 %v2404
        %v2406 = vand.u32 %v617, 4294901760
        %v2407 = vsub.f32 %v617, %v2406
        %v2408 = vand.u32 %v2407, 4294901760
        %v2409 = vsub.f32 %v2407, %v2408
        %v2410 = vand.u32 %v2409, 4294901760
        %2411 = vmatpush1.msra.mxu0 %v2410
        %v2412 = vand.u32 %v626, 4294901760
        %v2413 = vsub.f32 %v626, %v2412
        %v2414 = vand.u32 %v2413, 4294901760
        %v2415 = vsub.f32 %v2413, %v2414
        %v2416 = vand.u32 %v2415, 4294901760
        %2417 = vmatprep.subr.mxu0 %v2416
        %v2418 = vand.u32 %v625, 4294901760
        %v2419 = vsub.f32 %v625, %v2418
        %v2420 = vand.u32 %v2419, 4294901760
        %v2421 = vsub.f32 %v2419, %v2420
        %v2422 = vand.u32 %v2421, 4294901760
        %2423 = vmatpush1.msra.mxu0 %v2422
        %v2424 = vand.u32 %v634, 4294901760
        %v2425 = vsub.f32 %v634, %v2424
        %v2426 = vand.u32 %v2425, 4294901760
        %v2427 = vsub.f32 %v2425, %v2426
        %v2428 = vand.u32 %v2427, 4294901760
        %2429 = vmatprep.subr.mxu0 %v2428
        %v2430 = vand.u32 %v633, 4294901760
        %v2431 = vsub.f32 %v633, %v2430
        %v2432 = vand.u32 %v2431, 4294901760
        %v2433 = vsub.f32 %v2431, %v2432
        %v2434 = vand.u32 %v2433, 4294901760
        %2435 = vmatpush1.msra.mxu0 %v2434
        %v2436 = vand.u32 %v642, 4294901760
        %v2437 = vsub.f32 %v642, %v2436
        %v2438 = vand.u32 %v2437, 4294901760
        %v2439 = vsub.f32 %v2437, %v2438
        %v2440 = vand.u32 %v2439, 4294901760
        %2441 = vmatprep.subr.mxu0 %v2440
        %v2442 = vand.u32 %v641, 4294901760
        %v2443 = vsub.f32 %v641, %v2442
        %v2444 = vand.u32 %v2443, 4294901760
        %v2445 = vsub.f32 %v2443, %v2444
        %v2446 = vand.u32 %v2445, 4294901760
        %2447 = vmatpush1.msra.mxu0 %v2446
        %v2448 = vand.u32 %v650, 4294901760
        %v2449 = vsub.f32 %v650, %v2448
        %v2450 = vand.u32 %v2449, 4294901760
        %v2451 = vsub.f32 %v2449, %v2450
        %v2452 = vand.u32 %v2451, 4294901760
        %2453 = vmatprep.subr.mxu0 %v2452
        %v2454 = vand.u32 %v649, 4294901760
        %v2455 = vsub.f32 %v649, %v2454
        %v2456 = vand.u32 %v2455, 4294901760
        %v2457 = vsub.f32 %v2455, %v2456
        %v2458 = vand.u32 %v2457, 4294901760
        %2459 = vmatpush1.msra.mxu0 %v2458
        %v2460 = vand.u32 %v658, 4294901760
        %v2461 = vsub.f32 %v658, %v2460
        %v2462 = vand.u32 %v2461, 4294901760
        %v2463 = vsub.f32 %v2461, %v2462
        %v2464 = vand.u32 %v2463, 4294901760
        %2465 = vmatprep.subr.mxu0 %v2464
        %v2466 = vand.u32 %v657, 4294901760
        %v2467 = vsub.f32 %v657, %v2466
        %v2468 = vand.u32 %v2467, 4294901760
        %v2469 = vsub.f32 %v2467, %v2468
        %v2470 = vand.u32 %v2469, 4294901760
        %2471 = vmatpush1.msra.mxu0 %v2470
        %v2472 = vand.u32 %v666, 4294901760
        %v2473 = vsub.f32 %v666, %v2472
        %v2474 = vand.u32 %v2473, 4294901760
        %v2475 = vsub.f32 %v2473, %v2474
        %v2476 = vand.u32 %v2475, 4294901760
        %2477 = vmatprep.subr.mxu0 %v2476
        %v2478 = vand.u32 %v665, 4294901760
        %v2479 = vsub.f32 %v665, %v2478
        %v2480 = vand.u32 %v2479, 4294901760
        %v2481 = vsub.f32 %v2479, %v2480
        %v2482 = vand.u32 %v2481, 4294901760
        %2483 = vmatpush1.msra.mxu0 %v2482
        %v2484 = vand.u32 %v414, 4294901760
        %2485 = vmatprep.mubr.f32.mxu0 %v2484
        %v2486 = vand.u32 %v413, 4294901760
        %2487 = vmatmul.mubr.f32.gmra.mrb[0].mxu0 %v2486
        %v2488 = vpop.f32.mrb[0].mxu0
        %v2489 = vadd.f32 %v2096, %v2488
        %v2490 = vpop.f32.mrb[0].mxu0
        %v2491 = vadd.f32 %v2098, %v2490
        %2492 = vdwg.mxu0
        %v2493 = vand.u32 %v418, 4294901760
        %v2494 = vsub.f32 %v418, %v2493
        %2495 = vmatprep.subr.mxu0 %v2494
        %v2496 = vand.u32 %v417, 4294901760
        %v2497 = vsub.f32 %v417, %v2496
        %2498 = vmatpush1.msra.mxu0 %v2497
        %v2499 = vand.u32 %v426, 4294901760
        %v2500 = vsub.f32 %v426, %v2499
        %2501 = vmatprep.subr.mxu0 %v2500
        %v2502 = vand.u32 %v425, 4294901760
        %v2503 = vsub.f32 %v425, %v2502
        %2504 = vmatpush1.msra.mxu0 %v2503
        %v2505 = vand.u32 %v434, 4294901760
        %v2506 = vsub.f32 %v434, %v2505
        %2507 = vmatprep.subr.mxu0 %v2506
        %v2508 = vand.u32 %v433, 4294901760
        %v2509 = vsub.f32 %v433, %v2508
        %2510 = vmatpush1.msra.mxu0 %v2509
        %v2511 = vand.u32 %v442, 4294901760
        %v2512 = vsub.f32 %v442, %v2511
        %2513 = vmatprep.subr.mxu0 %v2512
        %v2514 = vand.u32 %v441, 4294901760
        %v2515 = vsub.f32 %v441, %v2514
        %2516 = vmatpush1.msra.mxu0 %v2515
        %v2517 = vand.u32 %v450, 4294901760
        %v2518 = vsub.f32 %v450, %v2517
        %2519 = vmatprep.subr.mxu0 %v2518
        %v2520 = vand.u32 %v449, 4294901760
        %v2521 = vsub.f32 %v449, %v2520
        %2522 = vmatpush1.msra.mxu0 %v2521
        %v2523 = vand.u32 %v458, 4294901760
        %v2524 = vsub.f32 %v458, %v2523
        %2525 = vmatprep.subr.mxu0 %v2524
        %v2526 = vand.u32 %v457, 4294901760
        %v2527 = vsub.f32 %v457, %v2526
        %2528 = vmatpush1.msra.mxu0 %v2527
        %v2529 = vand.u32 %v466, 4294901760
        %v2530 = vsub.f32 %v466, %v2529
        %2531 = vmatprep.subr.mxu0 %v2530
        %v2532 = vand.u32 %v465, 4294901760
        %v2533 = vsub.f32 %v465, %v2532
        %2534 = vmatpush1.msra.mxu0 %v2533
        %v2535 = vand.u32 %v474, 4294901760
        %v2536 = vsub.f32 %v474, %v2535
        %2537 = vmatprep.subr.mxu0 %v2536
        %v2538 = vand.u32 %v473, 4294901760
        %v2539 = vsub.f32 %v473, %v2538
        %2540 = vmatpush1.msra.mxu0 %v2539
        %v2541 = vand.u32 %v482, 4294901760
        %v2542 = vsub.f32 %v482, %v2541
        %2543 = vmatprep.subr.mxu0 %v2542
        %v2544 = vand.u32 %v481, 4294901760
        %v2545 = vsub.f32 %v481, %v2544
        %2546 = vmatpush1.msra.mxu0 %v2545
        %v2547 = vand.u32 %v490, 4294901760
        %v2548 = vsub.f32 %v490, %v2547
        %2549 = vmatprep.subr.mxu0 %v2548
        %v2550 = vand.u32 %v489, 4294901760
        %v2551 = vsub.f32 %v489, %v2550
        %2552 = vmatpush1.msra.mxu0 %v2551
        %v2553 = vand.u32 %v498, 4294901760
        %v2554 = vsub.f32 %v498, %v2553
        %2555 = vmatprep.subr.mxu0 %v2554
        %v2556 = vand.u32 %v497, 4294901760
        %v2557 = vsub.f32 %v497, %v2556
        %2558 = vmatpush1.msra.mxu0 %v2557
        %v2559 = vand.u32 %v506, 4294901760
        %v2560 = vsub.f32 %v506, %v2559
        %2561 = vmatprep.subr.mxu0 %v2560
        %v2562 = vand.u32 %v505, 4294901760
        %v2563 = vsub.f32 %v505, %v2562
        %2564 = vmatpush1.msra.mxu0 %v2563
        %v2565 = vand.u32 %v514, 4294901760
        %v2566 = vsub.f32 %v514, %v2565
        %2567 = vmatprep.subr.mxu0 %v2566
        %v2568 = vand.u32 %v513, 4294901760
        %v2569 = vsub.f32 %v513, %v2568
        %2570 = vmatpush1.msra.mxu0 %v2569
        %v2571 = vand.u32 %v522, 4294901760
        %v2572 = vsub.f32 %v522, %v2571
        %2573 = vmatprep.subr.mxu0 %v2572
        %v2574 = vand.u32 %v521, 4294901760
        %v2575 = vsub.f32 %v521, %v2574
        %2576 = vmatpush1.msra.mxu0 %v2575
        %v2577 = vand.u32 %v530, 4294901760
        %v2578 = vsub.f32 %v530, %v2577
        %2579 = vmatprep.subr.mxu0 %v2578
        %v2580 = vand.u32 %v529, 4294901760
        %v2581 = vsub.f32 %v529, %v2580
        %2582 = vmatpush1.msra.mxu0 %v2581
        %v2583 = vand.u32 %v538, 4294901760
        %v2584 = vsub.f32 %v538, %v2583
        %2585 = vmatprep.subr.mxu0 %v2584
        %v2586 = vand.u32 %v537, 4294901760
        %v2587 = vsub.f32 %v537, %v2586
        %2588 = vmatpush1.msra.mxu0 %v2587
        %v2589 = vand.u32 %v546, 4294901760
        %v2590 = vsub.f32 %v546, %v2589
        %2591 = vmatprep.subr.mxu0 %v2590
        %v2592 = vand.u32 %v545, 4294901760
        %v2593 = vsub.f32 %v545, %v2592
        %2594 = vmatpush1.msra.mxu0 %v2593
        %v2595 = vand.u32 %v554, 4294901760
        %v2596 = vsub.f32 %v554, %v2595
        %2597 = vmatprep.subr.mxu0 %v2596
        %v2598 = vand.u32 %v553, 4294901760
        %v2599 = vsub.f32 %v553, %v2598
        %2600 = vmatpush1.msra.mxu0 %v2599
        %v2601 = vand.u32 %v562, 4294901760
        %v2602 = vsub.f32 %v562, %v2601
        %2603 = vmatprep.subr.mxu0 %v2602
        %v2604 = vand.u32 %v561, 4294901760
        %v2605 = vsub.f32 %v561, %v2604
        %2606 = vmatpush1.msra.mxu0 %v2605
        %v2607 = vand.u32 %v570, 4294901760
        %v2608 = vsub.f32 %v570, %v2607
        %2609 = vmatprep.subr.mxu0 %v2608
        %v2610 = vand.u32 %v569, 4294901760
        %v2611 = vsub.f32 %v569, %v2610
        %2612 = vmatpush1.msra.mxu0 %v2611
        %v2613 = vand.u32 %v578, 4294901760
        %v2614 = vsub.f32 %v578, %v2613
        %2615 = vmatprep.subr.mxu0 %v2614
        %v2616 = vand.u32 %v577, 4294901760
        %v2617 = vsub.f32 %v577, %v2616
        %2618 = vmatpush1.msra.mxu0 %v2617
        %v2619 = vand.u32 %v586, 4294901760
        %v2620 = vsub.f32 %v586, %v2619
        %2621 = vmatprep.subr.mxu0 %v2620
        %v2622 = vand.u32 %v585, 4294901760
        %v2623 = vsub.f32 %v585, %v2622
        %2624 = vmatpush1.msra.mxu0 %v2623
        %v2625 = vand.u32 %v594, 4294901760
        %v2626 = vsub.f32 %v594, %v2625
        %2627 = vmatprep.subr.mxu0 %v2626
        %v2628 = vand.u32 %v593, 4294901760
        %v2629 = vsub.f32 %v593, %v2628
        %2630 = vmatpush1.msra.mxu0 %v2629
        %v2631 = vand.u32 %v602, 4294901760
        %v2632 = vsub.f32 %v602, %v2631
        %2633 = vmatprep.subr.mxu0 %v2632
        %v2634 = vand.u32 %v601, 4294901760
        %v2635 = vsub.f32 %v601, %v2634
        %2636 = vmatpush1.msra.mxu0 %v2635
        %v2637 = vand.u32 %v610, 4294901760
        %v2638 = vsub.f32 %v610, %v2637
        %2639 = vmatprep.subr.mxu0 %v2638
        %v2640 = vand.u32 %v609, 4294901760
        %v2641 = vsub.f32 %v609, %v2640
        %2642 = vmatpush1.msra.mxu0 %v2641
        %v2643 = vand.u32 %v618, 4294901760
        %v2644 = vsub.f32 %v618, %v2643
        %2645 = vmatprep.subr.mxu0 %v2644
        %v2646 = vand.u32 %v617, 4294901760
        %v2647 = vsub.f32 %v617, %v2646
        %2648 = vmatpush1.msra.mxu0 %v2647
        %v2649 = vand.u32 %v626, 4294901760
        %v2650 = vsub.f32 %v626, %v2649
        %2651 = vmatprep.subr.mxu0 %v2650
        %v2652 = vand.u32 %v625, 4294901760
        %v2653 = vsub.f32 %v625, %v2652
        %2654 = vmatpush1.msra.mxu0 %v2653
        %v2655 = vand.u32 %v634, 4294901760
        %v2656 = vsub.f32 %v634, %v2655
        %2657 = vmatprep.subr.mxu0 %v2656
        %v2658 = vand.u32 %v633, 4294901760
        %v2659 = vsub.f32 %v633, %v2658
        %2660 = vmatpush1.msra.mxu0 %v2659
        %v2661 = vand.u32 %v642, 4294901760
        %v2662 = vsub.f32 %v642, %v2661
        %2663 = vmatprep.subr.mxu0 %v2662
        %v2664 = vand.u32 %v641, 4294901760
        %v2665 = vsub.f32 %v641, %v2664
        %2666 = vmatpush1.msra.mxu0 %v2665
        %v2667 = vand.u32 %v650, 4294901760
        %v2668 = vsub.f32 %v650, %v2667
        %2669 = vmatprep.subr.mxu0 %v2668
        %v2670 = vand.u32 %v649, 4294901760
        %v2671 = vsub.f32 %v649, %v2670
        %2672 = vmatpush1.msra.mxu0 %v2671
        %v2673 = vand.u32 %v658, 4294901760
        %v2674 = vsub.f32 %v658, %v2673
        %2675 = vmatprep.subr.mxu0 %v2674
        %v2676 = vand.u32 %v657, 4294901760
        %v2677 = vsub.f32 %v657, %v2676
        %2678 = vmatpush1.msra.mxu0 %v2677
        %v2679 = vand.u32 %v666, 4294901760
        %v2680 = vsub.f32 %v666, %v2679
        %2681 = vmatprep.subr.mxu0 %v2680
        %v2682 = vand.u32 %v665, 4294901760
        %v2683 = vsub.f32 %v665, %v2682
        %2684 = vmatpush1.msra.mxu0 %v2683
        %v2685 = vand.u32 %v414, 4294901760
        %v2686 = vsub.f32 %v414, %v2685
        %2687 = vmatprep.mubr.f32.mxu0 %v2686
        %v2688 = vand.u32 %v413, 4294901760
        %v2689 = vsub.f32 %v413, %v2688
        %2690 = vmatmul.mubr.f32.gmra.mrb[0].mxu0 %v2689
        %v2691 = vpop.f32.mrb[0].mxu0
        %v2692 = vadd.f32 %v2489, %v2691
        %v2693 = vpop.f32.mrb[0].mxu0
        %v2694 = vadd.f32 %v2491, %v2693
        %2695 = vdwg.mxu0
        %v2696 = vand.u32 %v418, 4294901760
        %2697 = vmatprep.subr.mxu0 %v2696
        %v2698 = vand.u32 %v417, 4294901760
        %2699 = vmatpush1.msra.mxu0 %v2698
        %v2700 = vand.u32 %v426, 4294901760
        %2701 = vmatprep.subr.mxu0 %v2700
        %v2702 = vand.u32 %v425, 4294901760
        %2703 = vmatpush1.msra.mxu0 %v2702
        %v2704 = vand.u32 %v434, 4294901760
        %2705 = vmatprep.subr.mxu0 %v2704
        %v2706 = vand.u32 %v433, 4294901760
        %2707 = vmatpush1.msra.mxu0 %v2706
        %v2708 = vand.u32 %v442, 4294901760
        %2709 = vmatprep.subr.mxu0 %v2708
        %v2710 = vand.u32 %v441, 4294901760
        %2711 = vmatpush1.msra.mxu0 %v2710
        %v2712 = vand.u32 %v450, 4294901760
        %2713 = vmatprep.subr.mxu0 %v2712
        %v2714 = vand.u32 %v449, 4294901760
        %2715 = vmatpush1.msra.mxu0 %v2714
        %v2716 = vand.u32 %v458, 4294901760
        %2717 = vmatprep.subr.mxu0 %v2716
        %v2718 = vand.u32 %v457, 4294901760
        %2719 = vmatpush1.msra.mxu0 %v2718
        %v2720 = vand.u32 %v466, 4294901760
        %2721 = vmatprep.subr.mxu0 %v2720
        %v2722 = vand.u32 %v465, 4294901760
        %2723 = vmatpush1.msra.mxu0 %v2722
        %v2724 = vand.u32 %v474, 4294901760
        %2725 = vmatprep.subr.mxu0 %v2724
        %v2726 = vand.u32 %v473, 4294901760
        %2727 = vmatpush1.msra.mxu0 %v2726
        %v2728 = vand.u32 %v482, 4294901760
        %2729 = vmatprep.subr.mxu0 %v2728
        %v2730 = vand.u32 %v481, 4294901760
        %2731 = vmatpush1.msra.mxu0 %v2730
        %v2732 = vand.u32 %v490, 4294901760
        %2733 = vmatprep.subr.mxu0 %v2732
        %v2734 = vand.u32 %v489, 4294901760
        %2735 = vmatpush1.msra.mxu0 %v2734
        %v2736 = vand.u32 %v498, 4294901760
        %2737 = vmatprep.subr.mxu0 %v2736
        %v2738 = vand.u32 %v497, 4294901760
        %2739 = vmatpush1.msra.mxu0 %v2738
        %v2740 = vand.u32 %v506, 4294901760
        %2741 = vmatprep.subr.mxu0 %v2740
        %v2742 = vand.u32 %v505, 4294901760
        %2743 = vmatpush1.msra.mxu0 %v2742
        %v2744 = vand.u32 %v514, 4294901760
        %2745 = vmatprep.subr.mxu0 %v2744
        %v2746 = vand.u32 %v513, 4294901760
        %2747 = vmatpush1.msra.mxu0 %v2746
        %v2748 = vand.u32 %v522, 4294901760
        %2749 = vmatprep.subr.mxu0 %v2748
        %v2750 = vand.u32 %v521, 4294901760
        %2751 = vmatpush1.msra.mxu0 %v2750
        %v2752 = vand.u32 %v530, 4294901760
        %2753 = vmatprep.subr.mxu0 %v2752
        %v2754 = vand.u32 %v529, 4294901760
        %2755 = vmatpush1.msra.mxu0 %v2754
        %v2756 = vand.u32 %v538, 4294901760
        %2757 = vmatprep.subr.mxu0 %v2756
        %v2758 = vand.u32 %v537, 4294901760
        %2759 = vmatpush1.msra.mxu0 %v2758
        %v2760 = vand.u32 %v546, 4294901760
        %2761 = vmatprep.subr.mxu0 %v2760
        %v2762 = vand.u32 %v545, 4294901760
        %2763 = vmatpush1.msra.mxu0 %v2762
        %v2764 = vand.u32 %v554, 4294901760
        %2765 = vmatprep.subr.mxu0 %v2764
        %v2766 = vand.u32 %v553, 4294901760
        %2767 = vmatpush1.msra.mxu0 %v2766
        %v2768 = vand.u32 %v562, 4294901760
        %2769 = vmatprep.subr.mxu0 %v2768
        %v2770 = vand.u32 %v561, 4294901760
        %2771 = vmatpush1.msra.mxu0 %v2770
        %v2772 = vand.u32 %v570, 4294901760
        %2773 = vmatprep.subr.mxu0 %v2772
        %v2774 = vand.u32 %v569, 4294901760
        %2775 = vmatpush1.msra.mxu0 %v2774
        %v2776 = vand.u32 %v578, 4294901760
        %2777 = vmatprep.subr.mxu0 %v2776
        %v2778 = vand.u32 %v577, 4294901760
        %2779 = vmatpush1.msra.mxu0 %v2778
        %v2780 = vand.u32 %v586, 4294901760
        %2781 = vmatprep.subr.mxu0 %v2780
        %v2782 = vand.u32 %v585, 4294901760
        %2783 = vmatpush1.msra.mxu0 %v2782
        %v2784 = vand.u32 %v594, 4294901760
        %2785 = vmatprep.subr.mxu0 %v2784
        %v2786 = vand.u32 %v593, 4294901760
        %2787 = vmatpush1.msra.mxu0 %v2786
        %v2788 = vand.u32 %v602, 4294901760
        %2789 = vmatprep.subr.mxu0 %v2788
        %v2790 = vand.u32 %v601, 4294901760
        %2791 = vmatpush1.msra.mxu0 %v2790
        %v2792 = vand.u32 %v610, 4294901760
        %2793 = vmatprep.subr.mxu0 %v2792
        %v2794 = vand.u32 %v609, 4294901760
        %2795 = vmatpush1.msra.mxu0 %v2794
        %v2796 = vand.u32 %v618, 4294901760
        %2797 = vmatprep.subr.mxu0 %v2796
        %v2798 = vand.u32 %v617, 4294901760
        %2799 = vmatpush1.msra.mxu0 %v2798
        %v2800 = vand.u32 %v626, 4294901760
        %2801 = vmatprep.subr.mxu0 %v2800
        %v2802 = vand.u32 %v625, 4294901760
        %2803 = vmatpush1.msra.mxu0 %v2802
        %v2804 = vand.u32 %v634, 4294901760
        %2805 = vmatprep.subr.mxu0 %v2804
        %v2806 = vand.u32 %v633, 4294901760
        %2807 = vmatpush1.msra.mxu0 %v2806
        %v2808 = vand.u32 %v642, 4294901760
        %2809 = vmatprep.subr.mxu0 %v2808
        %v2810 = vand.u32 %v641, 4294901760
        %2811 = vmatpush1.msra.mxu0 %v2810
        %v2812 = vand.u32 %v650, 4294901760
        %2813 = vmatprep.subr.mxu0 %v2812
        %v2814 = vand.u32 %v649, 4294901760
        %2815 = vmatpush1.msra.mxu0 %v2814
        %v2816 = vand.u32 %v658, 4294901760
        %2817 = vmatprep.subr.mxu0 %v2816
        %v2818 = vand.u32 %v657, 4294901760
        %2819 = vmatpush1.msra.mxu0 %v2818
        %v2820 = vand.u32 %v666, 4294901760
        %2821 = vmatprep.subr.mxu0 %v2820
        %v2822 = vand.u32 %v665, 4294901760
        %2823 = vmatpush1.msra.mxu0 %v2822
        %v2824 = vand.u32 %v414, 4294901760
        %v2825 = vsub.f32 %v414, %v2824
        %v2826 = vand.u32 %v2825, 4294901760
        %2827 = vmatprep.mubr.f32.mxu0 %v2826
        %v2828 = vand.u32 %v413, 4294901760
        %v2829 = vsub.f32 %v413, %v2828
        %v2830 = vand.u32 %v2829, 4294901760
        %2831 = vmatmul.mubr.f32.gmra.mrb[0].mxu0 %v2830
        %v2832 = vpop.f32.mrb[0].mxu0
        %v2833 = vadd.f32 %v2692, %v2832
        %v2834 = vpop.f32.mrb[0].mxu0
        %v2835 = vadd.f32 %v2694, %v2834
        %2836 = vdwg.mxu0
        %v2837 = vand.u32 %v418, 4294901760
        %v2838 = vsub.f32 %v418, %v2837
        %v2839 = vand.u32 %v2838, 4294901760
        %2840 = vmatprep.subr.mxu0 %v2839
        %v2841 = vand.u32 %v417, 4294901760
        %v2842 = vsub.f32 %v417, %v2841
        %v2843 = vand.u32 %v2842, 4294901760
        %2844 = vmatpush1.msra.mxu0 %v2843
        %v2845 = vand.u32 %v426, 4294901760
        %v2846 = vsub.f32 %v426, %v2845
        %v2847 = vand.u32 %v2846, 4294901760
        %2848 = vmatprep.subr.mxu0 %v2847
        %v2849 = vand.u32 %v425, 4294901760
        %v2850 = vsub.f32 %v425, %v2849
        %v2851 = vand.u32 %v2850, 4294901760
        %2852 = vmatpush1.msra.mxu0 %v2851
        %v2853 = vand.u32 %v434, 4294901760
        %v2854 = vsub.f32 %v434, %v2853
        %v2855 = vand.u32 %v2854, 4294901760
        %2856 = vmatprep.subr.mxu0 %v2855
        %v2857 = vand.u32 %v433, 4294901760
        %v2858 = vsub.f32 %v433, %v2857
        %v2859 = vand.u32 %v2858, 4294901760
        %2860 = vmatpush1.msra.mxu0 %v2859
        %v2861 = vand.u32 %v442, 4294901760
        %v2862 = vsub.f32 %v442, %v2861
        %v2863 = vand.u32 %v2862, 4294901760
        %2864 = vmatprep.subr.mxu0 %v2863
        %v2865 = vand.u32 %v441, 4294901760
        %v2866 = vsub.f32 %v441, %v2865
        %v2867 = vand.u32 %v2866, 4294901760
        %2868 = vmatpush1.msra.mxu0 %v2867
        %v2869 = vand.u32 %v450, 4294901760
        %v2870 = vsub.f32 %v450, %v2869
        %v2871 = vand.u32 %v2870, 4294901760
        %2872 = vmatprep.subr.mxu0 %v2871
        %v2873 = vand.u32 %v449, 4294901760
        %v2874 = vsub.f32 %v449, %v2873
        %v2875 = vand.u32 %v2874, 4294901760
        %2876 = vmatpush1.msra.mxu0 %v2875
        %v2877 = vand.u32 %v458, 4294901760
        %v2878 = vsub.f32 %v458, %v2877
        %v2879 = vand.u32 %v2878, 4294901760
        %2880 = vmatprep.subr.mxu0 %v2879
        %v2881 = vand.u32 %v457, 4294901760
        %v2882 = vsub.f32 %v457, %v2881
        %v2883 = vand.u32 %v2882, 4294901760
        %2884 = vmatpush1.msra.mxu0 %v2883
        %v2885 = vand.u32 %v466, 4294901760
        %v2886 = vsub.f32 %v466, %v2885
        %v2887 = vand.u32 %v2886, 4294901760
        %2888 = vmatprep.subr.mxu0 %v2887
        %v2889 = vand.u32 %v465, 4294901760
        %v2890 = vsub.f32 %v465, %v2889
        %v2891 = vand.u32 %v2890, 4294901760
        %2892 = vmatpush1.msra.mxu0 %v2891
        %v2893 = vand.u32 %v474, 4294901760
        %v2894 = vsub.f32 %v474, %v2893
        %v2895 = vand.u32 %v2894, 4294901760
        %2896 = vmatprep.subr.mxu0 %v2895
        %v2897 = vand.u32 %v473, 4294901760
        %v2898 = vsub.f32 %v473, %v2897
        %v2899 = vand.u32 %v2898, 4294901760
        %2900 = vmatpush1.msra.mxu0 %v2899
        %v2901 = vand.u32 %v482, 4294901760
        %v2902 = vsub.f32 %v482, %v2901
        %v2903 = vand.u32 %v2902, 4294901760
        %2904 = vmatprep.subr.mxu0 %v2903
        %v2905 = vand.u32 %v481, 4294901760
        %v2906 = vsub.f32 %v481, %v2905
        %v2907 = vand.u32 %v2906, 4294901760
        %2908 = vmatpush1.msra.mxu0 %v2907
        %v2909 = vand.u32 %v490, 4294901760
        %v2910 = vsub.f32 %v490, %v2909
        %v2911 = vand.u32 %v2910, 4294901760
        %2912 = vmatprep.subr.mxu0 %v2911
        %v2913 = vand.u32 %v489, 4294901760
        %v2914 = vsub.f32 %v489, %v2913
        %v2915 = vand.u32 %v2914, 4294901760
        %2916 = vmatpush1.msra.mxu0 %v2915
        %v2917 = vand.u32 %v498, 4294901760
        %v2918 = vsub.f32 %v498, %v2917
        %v2919 = vand.u32 %v2918, 4294901760
        %2920 = vmatprep.subr.mxu0 %v2919
        %v2921 = vand.u32 %v497, 4294901760
        %v2922 = vsub.f32 %v497, %v2921
        %v2923 = vand.u32 %v2922, 4294901760
        %2924 = vmatpush1.msra.mxu0 %v2923
        %v2925 = vand.u32 %v506, 4294901760
        %v2926 = vsub.f32 %v506, %v2925
        %v2927 = vand.u32 %v2926, 4294901760
        %2928 = vmatprep.subr.mxu0 %v2927
        %v2929 = vand.u32 %v505, 4294901760
        %v2930 = vsub.f32 %v505, %v2929
        %v2931 = vand.u32 %v2930, 4294901760
        %2932 = vmatpush1.msra.mxu0 %v2931
        %v2933 = vand.u32 %v514, 4294901760
        %v2934 = vsub.f32 %v514, %v2933
        %v2935 = vand.u32 %v2934, 4294901760
        %2936 = vmatprep.subr.mxu0 %v2935
        %v2937 = vand.u32 %v513, 4294901760
        %v2938 = vsub.f32 %v513, %v2937
        %v2939 = vand.u32 %v2938, 4294901760
        %2940 = vmatpush1.msra.mxu0 %v2939
        %v2941 = vand.u32 %v522, 4294901760
        %v2942 = vsub.f32 %v522, %v2941
        %v2943 = vand.u32 %v2942, 4294901760
        %2944 = vmatprep.subr.mxu0 %v2943
        %v2945 = vand.u32 %v521, 4294901760
        %v2946 = vsub.f32 %v521, %v2945
        %v2947 = vand.u32 %v2946, 4294901760
        %2948 = vmatpush1.msra.mxu0 %v2947
        %v2949 = vand.u32 %v530, 4294901760
        %v2950 = vsub.f32 %v530, %v2949
        %v2951 = vand.u32 %v2950, 4294901760
        %2952 = vmatprep.subr.mxu0 %v2951
        %v2953 = vand.u32 %v529, 4294901760
        %v2954 = vsub.f32 %v529, %v2953
        %v2955 = vand.u32 %v2954, 4294901760
        %2956 = vmatpush1.msra.mxu0 %v2955
        %v2957 = vand.u32 %v538, 4294901760
        %v2958 = vsub.f32 %v538, %v2957
        %v2959 = vand.u32 %v2958, 4294901760
        %2960 = vmatprep.subr.mxu0 %v2959
        %v2961 = vand.u32 %v537, 4294901760
        %v2962 = vsub.f32 %v537, %v2961
        %v2963 = vand.u32 %v2962, 4294901760
        %2964 = vmatpush1.msra.mxu0 %v2963
        %v2965 = vand.u32 %v546, 4294901760
        %v2966 = vsub.f32 %v546, %v2965
        %v2967 = vand.u32 %v2966, 4294901760
        %2968 = vmatprep.subr.mxu0 %v2967
        %v2969 = vand.u32 %v545, 4294901760
        %v2970 = vsub.f32 %v545, %v2969
        %v2971 = vand.u32 %v2970, 4294901760
        %2972 = vmatpush1.msra.mxu0 %v2971
        %v2973 = vand.u32 %v554, 4294901760
        %v2974 = vsub.f32 %v554, %v2973
        %v2975 = vand.u32 %v2974, 4294901760
        %2976 = vmatprep.subr.mxu0 %v2975
        %v2977 = vand.u32 %v553, 4294901760
        %v2978 = vsub.f32 %v553, %v2977
        %v2979 = vand.u32 %v2978, 4294901760
        %2980 = vmatpush1.msra.mxu0 %v2979
        %v2981 = vand.u32 %v562, 4294901760
        %v2982 = vsub.f32 %v562, %v2981
        %v2983 = vand.u32 %v2982, 4294901760
        %2984 = vmatprep.subr.mxu0 %v2983
        %v2985 = vand.u32 %v561, 4294901760
        %v2986 = vsub.f32 %v561, %v2985
        %v2987 = vand.u32 %v2986, 4294901760
        %2988 = vmatpush1.msra.mxu0 %v2987
        %v2989 = vand.u32 %v570, 4294901760
        %v2990 = vsub.f32 %v570, %v2989
        %v2991 = vand.u32 %v2990, 4294901760
        %2992 = vmatprep.subr.mxu0 %v2991
        %v2993 = vand.u32 %v569, 4294901760
        %v2994 = vsub.f32 %v569, %v2993
        %v2995 = vand.u32 %v2994, 4294901760
        %2996 = vmatpush1.msra.mxu0 %v2995
        %v2997 = vand.u32 %v578, 4294901760
        %v2998 = vsub.f32 %v578, %v2997
        %v2999 = vand.u32 %v2998, 4294901760
        %3000 = vmatprep.subr.mxu0 %v2999
        %v3001 = vand.u32 %v577, 4294901760
        %v3002 = vsub.f32 %v577, %v3001
        %v3003 = vand.u32 %v3002, 4294901760
        %3004 = vmatpush1.msra.mxu0 %v3003
        %v3005 = vand.u32 %v586, 4294901760
        %v3006 = vsub.f32 %v586, %v3005
        %v3007 = vand.u32 %v3006, 4294901760
        %3008 = vmatprep.subr.mxu0 %v3007
        %v3009 = vand.u32 %v585, 4294901760
        %v3010 = vsub.f32 %v585, %v3009
        %v3011 = vand.u32 %v3010, 4294901760
        %3012 = vmatpush1.msra.mxu0 %v3011
        %v3013 = vand.u32 %v594, 4294901760
        %v3014 = vsub.f32 %v594, %v3013
        %v3015 = vand.u32 %v3014, 4294901760
        %3016 = vmatprep.subr.mxu0 %v3015
        %v3017 = vand.u32 %v593, 4294901760
        %v3018 = vsub.f32 %v593, %v3017
        %v3019 = vand.u32 %v3018, 4294901760
        %3020 = vmatpush1.msra.mxu0 %v3019
        %v3021 = vand.u32 %v602, 4294901760
        %v3022 = vsub.f32 %v602, %v3021
        %v3023 = vand.u32 %v3022, 4294901760
        %3024 = vmatprep.subr.mxu0 %v3023
        %v3025 = vand.u32 %v601, 4294901760
        %v3026 = vsub.f32 %v601, %v3025
        %v3027 = vand.u32 %v3026, 4294901760
        %3028 = vmatpush1.msra.mxu0 %v3027
        %v3029 = vand.u32 %v610, 4294901760
        %v3030 = vsub.f32 %v610, %v3029
        %v3031 = vand.u32 %v3030, 4294901760
        %3032 = vmatprep.subr.mxu0 %v3031
        %v3033 = vand.u32 %v609, 4294901760
        %v3034 = vsub.f32 %v609, %v3033
        %v3035 = vand.u32 %v3034, 4294901760
        %3036 = vmatpush1.msra.mxu0 %v3035
        %v3037 = vand.u32 %v618, 4294901760
        %v3038 = vsub.f32 %v618, %v3037
        %v3039 = vand.u32 %v3038, 4294901760
        %3040 = vmatprep.subr.mxu0 %v3039
        %v3041 = vand.u32 %v617, 4294901760
        %v3042 = vsub.f32 %v617, %v3041
        %v3043 = vand.u32 %v3042, 4294901760
        %3044 = vmatpush1.msra.mxu0 %v3043
        %v3045 = vand.u32 %v626, 4294901760
        %v3046 = vsub.f32 %v626, %v3045
        %v3047 = vand.u32 %v3046, 4294901760
        %3048 = vmatprep.subr.mxu0 %v3047
        %v3049 = vand.u32 %v625, 4294901760
        %v3050 = vsub.f32 %v625, %v3049
        %v3051 = vand.u32 %v3050, 4294901760
        %3052 = vmatpush1.msra.mxu0 %v3051
        %v3053 = vand.u32 %v634, 4294901760
        %v3054 = vsub.f32 %v634, %v3053
        %v3055 = vand.u32 %v3054, 4294901760
        %3056 = vmatprep.subr.mxu0 %v3055
        %v3057 = vand.u32 %v633, 4294901760
        %v3058 = vsub.f32 %v633, %v3057
        %v3059 = vand.u32 %v3058, 4294901760
        %3060 = vmatpush1.msra.mxu0 %v3059
        %v3061 = vand.u32 %v642, 4294901760
        %v3062 = vsub.f32 %v642, %v3061
        %v3063 = vand.u32 %v3062, 4294901760
        %3064 = vmatprep.subr.mxu0 %v3063
        %v3065 = vand.u32 %v641, 4294901760
        %v3066 = vsub.f32 %v641, %v3065
        %v3067 = vand.u32 %v3066, 4294901760
        %3068 = vmatpush1.msra.mxu0 %v3067
        %v3069 = vand.u32 %v650, 4294901760
        %v3070 = vsub.f32 %v650, %v3069
        %v3071 = vand.u32 %v3070, 4294901760
        %3072 = vmatprep.subr.mxu0 %v3071
        %v3073 = vand.u32 %v649, 4294901760
        %v3074 = vsub.f32 %v649, %v3073
        %v3075 = vand.u32 %v3074, 4294901760
        %3076 = vmatpush1.msra.mxu0 %v3075
        %v3077 = vand.u32 %v658, 4294901760
        %v3078 = vsub.f32 %v658, %v3077
        %v3079 = vand.u32 %v3078, 4294901760
        %3080 = vmatprep.subr.mxu0 %v3079
        %v3081 = vand.u32 %v657, 4294901760
        %v3082 = vsub.f32 %v657, %v3081
        %v3083 = vand.u32 %v3082, 4294901760
        %3084 = vmatpush1.msra.mxu0 %v3083
        %v3085 = vand.u32 %v666, 4294901760
        %v3086 = vsub.f32 %v666, %v3085
        %v3087 = vand.u32 %v3086, 4294901760
        %3088 = vmatprep.subr.mxu0 %v3087
        %v3089 = vand.u32 %v665, 4294901760
        %v3090 = vsub.f32 %v665, %v3089
        %v3091 = vand.u32 %v3090, 4294901760
        %3092 = vmatpush1.msra.mxu0 %v3091
        %v3093 = vand.u32 %v414, 4294901760
        %3094 = vmatprep.mubr.f32.mxu0 %v3093
        %v3095 = vand.u32 %v413, 4294901760
        %3096 = vmatmul.mubr.f32.gmra.mrb[0].mxu0 %v3095
        %v3097 = vpop.f32.mrb[0].mxu0
        %v3098 = vadd.f32 %v2833, %v3097
        %v3099 = vpop.f32.mrb[0].mxu0
        %v3100 = vadd.f32 %v2835, %v3099
        %3101 = vdwg.mxu0
        %v3102 = vand.u32 %v418, 4294901760
        %3103 = vmatprep.subr.mxu0 %v3102
        %v3104 = vand.u32 %v417, 4294901760
        %3105 = vmatpush1.msra.mxu0 %v3104
        %v3106 = vand.u32 %v426, 4294901760
        %3107 = vmatprep.subr.mxu0 %v3106
        %v3108 = vand.u32 %v425, 4294901760
        %3109 = vmatpush1.msra.mxu0 %v3108
        %v3110 = vand.u32 %v434, 4294901760
        %3111 = vmatprep.subr.mxu0 %v3110
        %v3112 = vand.u32 %v433, 4294901760
        %3113 = vmatpush1.msra.mxu0 %v3112
        %v3114 = vand.u32 %v442, 4294901760
        %3115 = vmatprep.subr.mxu0 %v3114
        %v3116 = vand.u32 %v441, 4294901760
        %3117 = vmatpush1.msra.mxu0 %v3116
        %v3118 = vand.u32 %v450, 4294901760
        %3119 = vmatprep.subr.mxu0 %v3118
        %v3120 = vand.u32 %v449, 4294901760
        %3121 = vmatpush1.msra.mxu0 %v3120
        %v3122 = vand.u32 %v458, 4294901760
        %3123 = vmatprep.subr.mxu0 %v3122
        %v3124 = vand.u32 %v457, 4294901760
        %3125 = vmatpush1.msra.mxu0 %v3124
        %v3126 = vand.u32 %v466, 4294901760
        %3127 = vmatprep.subr.mxu0 %v3126
        %v3128 = vand.u32 %v465, 4294901760
        %3129 = vmatpush1.msra.mxu0 %v3128
        %v3130 = vand.u32 %v474, 4294901760
        %3131 = vmatprep.subr.mxu0 %v3130
        %v3132 = vand.u32 %v473, 4294901760
        %3133 = vmatpush1.msra.mxu0 %v3132
        %v3134 = vand.u32 %v482, 4294901760
        %3135 = vmatprep.subr.mxu0 %v3134
        %v3136 = vand.u32 %v481, 4294901760
        %3137 = vmatpush1.msra.mxu0 %v3136
        %v3138 = vand.u32 %v490, 4294901760
        %3139 = vmatprep.subr.mxu0 %v3138
        %v3140 = vand.u32 %v489, 4294901760
        %3141 = vmatpush1.msra.mxu0 %v3140
        %v3142 = vand.u32 %v498, 4294901760
        %3143 = vmatprep.subr.mxu0 %v3142
        %v3144 = vand.u32 %v497, 4294901760
        %3145 = vmatpush1.msra.mxu0 %v3144
        %v3146 = vand.u32 %v506, 4294901760
        %3147 = vmatprep.subr.mxu0 %v3146
        %v3148 = vand.u32 %v505, 4294901760
        %3149 = vmatpush1.msra.mxu0 %v3148
        %v3150 = vand.u32 %v514, 4294901760
        %3151 = vmatprep.subr.mxu0 %v3150
        %v3152 = vand.u32 %v513, 4294901760
        %3153 = vmatpush1.msra.mxu0 %v3152
        %v3154 = vand.u32 %v522, 4294901760
        %3155 = vmatprep.subr.mxu0 %v3154
        %v3156 = vand.u32 %v521, 4294901760
        %3157 = vmatpush1.msra.mxu0 %v3156
        %v3158 = vand.u32 %v530, 4294901760
        %3159 = vmatprep.subr.mxu0 %v3158
        %v3160 = vand.u32 %v529, 4294901760
        %3161 = vmatpush1.msra.mxu0 %v3160
        %v3162 = vand.u32 %v538, 4294901760
        %3163 = vmatprep.subr.mxu0 %v3162
        %v3164 = vand.u32 %v537, 4294901760
        %3165 = vmatpush1.msra.mxu0 %v3164
        %v3166 = vand.u32 %v546, 4294901760
        %3167 = vmatprep.subr.mxu0 %v3166
        %v3168 = vand.u32 %v545, 4294901760
        %3169 = vmatpush1.msra.mxu0 %v3168
        %v3170 = vand.u32 %v554, 4294901760
        %3171 = vmatprep.subr.mxu0 %v3170
        %v3172 = vand.u32 %v553, 4294901760
        %3173 = vmatpush1.msra.mxu0 %v3172
        %v3174 = vand.u32 %v562, 4294901760
        %3175 = vmatprep.subr.mxu0 %v3174
        %v3176 = vand.u32 %v561, 4294901760
        %3177 = vmatpush1.msra.mxu0 %v3176
        %v3178 = vand.u32 %v570, 4294901760
        %3179 = vmatprep.subr.mxu0 %v3178
        %v3180 = vand.u32 %v569, 4294901760
        %3181 = vmatpush1.msra.mxu0 %v3180
        %v3182 = vand.u32 %v578, 4294901760
        %3183 = vmatprep.subr.mxu0 %v3182
        %v3184 = vand.u32 %v577, 4294901760
        %3185 = vmatpush1.msra.mxu0 %v3184
        %v3186 = vand.u32 %v586, 4294901760
        %3187 = vmatprep.subr.mxu0 %v3186
        %v3188 = vand.u32 %v585, 4294901760
        %3189 = vmatpush1.msra.mxu0 %v3188
        %v3190 = vand.u32 %v594, 4294901760
        %3191 = vmatprep.subr.mxu0 %v3190
        %v3192 = vand.u32 %v593, 4294901760
        %3193 = vmatpush1.msra.mxu0 %v3192
        %v3194 = vand.u32 %v602, 4294901760
        %3195 = vmatprep.subr.mxu0 %v3194
        %v3196 = vand.u32 %v601, 4294901760
        %3197 = vmatpush1.msra.mxu0 %v3196
        %v3198 = vand.u32 %v610, 4294901760
        %3199 = vmatprep.subr.mxu0 %v3198
        %v3200 = vand.u32 %v609, 4294901760
        %3201 = vmatpush1.msra.mxu0 %v3200
        %v3202 = vand.u32 %v618, 4294901760
        %3203 = vmatprep.subr.mxu0 %v3202
        %v3204 = vand.u32 %v617, 4294901760
        %3205 = vmatpush1.msra.mxu0 %v3204
        %v3206 = vand.u32 %v626, 4294901760
        %3207 = vmatprep.subr.mxu0 %v3206
        %v3208 = vand.u32 %v625, 4294901760
        %3209 = vmatpush1.msra.mxu0 %v3208
        %v3210 = vand.u32 %v634, 4294901760
        %3211 = vmatprep.subr.mxu0 %v3210
        %v3212 = vand.u32 %v633, 4294901760
        %3213 = vmatpush1.msra.mxu0 %v3212
        %v3214 = vand.u32 %v642, 4294901760
        %3215 = vmatprep.subr.mxu0 %v3214
        %v3216 = vand.u32 %v641, 4294901760
        %3217 = vmatpush1.msra.mxu0 %v3216
        %v3218 = vand.u32 %v650, 4294901760
        %3219 = vmatprep.subr.mxu0 %v3218
        %v3220 = vand.u32 %v649, 4294901760
        %3221 = vmatpush1.msra.mxu0 %v3220
        %v3222 = vand.u32 %v658, 4294901760
        %3223 = vmatprep.subr.mxu0 %v3222
        %v3224 = vand.u32 %v657, 4294901760
        %3225 = vmatpush1.msra.mxu0 %v3224
        %v3226 = vand.u32 %v666, 4294901760
        %3227 = vmatprep.subr.mxu0 %v3226
        %v3228 = vand.u32 %v665, 4294901760
        %3229 = vmatpush1.msra.mxu0 %v3228
        %v3230 = vand.u32 %v414, 4294901760
        %3231 = vmatprep.mubr.f32.mxu0 %v3230
        %v3232 = vand.u32 %v413, 4294901760
        %3233 = vmatmul.mubr.f32.gmra.mrb[0].mxu0 %v3232
        %v3234 = vpop.f32.mrb[0].mxu0
        %v3235 = vadd.f32 %v3098, %v3234
        %v3236 = vpop.f32.mrb[0].mxu0
        %v3237 = vadd.f32 %v3100, %v3236
        %3238 = vdwg.mxu0
        %v3239 = vand.u32 %v420, 4294901760
        %3240 = vmatprep.subr.mxu0 %v3239
        %v3241 = vand.u32 %v419, 4294901760
        %3242 = vmatpush1.msra.mxu0 %v3241
        %v3243 = vand.u32 %v428, 4294901760
        %3244 = vmatprep.subr.mxu0 %v3243
        %v3245 = vand.u32 %v427, 4294901760
        %3246 = vmatpush1.msra.mxu0 %v3245
        %v3247 = vand.u32 %v436, 4294901760
        %3248 = vmatprep.subr.mxu0 %v3247
        %v3249 = vand.u32 %v435, 4294901760
        %3250 = vmatpush1.msra.mxu0 %v3249
        %v3251 = vand.u32 %v444, 4294901760
        %3252 = vmatprep.subr.mxu0 %v3251
        %v3253 = vand.u32 %v443, 4294901760
        %3254 = vmatpush1.msra.mxu0 %v3253
        %v3255 = vand.u32 %v452, 4294901760
        %3256 = vmatprep.subr.mxu0 %v3255
        %v3257 = vand.u32 %v451, 4294901760
        %3258 = vmatpush1.msra.mxu0 %v3257
        %v3259 = vand.u32 %v460, 4294901760
        %3260 = vmatprep.subr.mxu0 %v3259
        %v3261 = vand.u32 %v459, 4294901760
        %3262 = vmatpush1.msra.mxu0 %v3261
        %v3263 = vand.u32 %v468, 4294901760
        %3264 = vmatprep.subr.mxu0 %v3263
        %v3265 = vand.u32 %v467, 4294901760
        %3266 = vmatpush1.msra.mxu0 %v3265
        %v3267 = vand.u32 %v476, 4294901760
        %3268 = vmatprep.subr.mxu0 %v3267
        %v3269 = vand.u32 %v475, 4294901760
        %3270 = vmatpush1.msra.mxu0 %v3269
        %v3271 = vand.u32 %v484, 4294901760
        %3272 = vmatprep.subr.mxu0 %v3271
        %v3273 = vand.u32 %v483, 4294901760
        %3274 = vmatpush1.msra.mxu0 %v3273
        %v3275 = vand.u32 %v492, 4294901760
        %3276 = vmatprep.subr.mxu0 %v3275
        %v3277 = vand.u32 %v491, 4294901760
        %3278 = vmatpush1.msra.mxu0 %v3277
        %v3279 = vand.u32 %v500, 4294901760
        %3280 = vmatprep.subr.mxu0 %v3279
        %v3281 = vand.u32 %v499, 4294901760
        %3282 = vmatpush1.msra.mxu0 %v3281
        %v3283 = vand.u32 %v508, 4294901760
        %3284 = vmatprep.subr.mxu0 %v3283
        %v3285 = vand.u32 %v507, 4294901760
        %3286 = vmatpush1.msra.mxu0 %v3285
        %v3287 = vand.u32 %v516, 4294901760
        %3288 = vmatprep.subr.mxu0 %v3287
        %v3289 = vand.u32 %v515, 4294901760
        %3290 = vmatpush1.msra.mxu0 %v3289
        %v3291 = vand.u32 %v524, 4294901760
        %3292 = vmatprep.subr.mxu0 %v3291
        %v3293 = vand.u32 %v523, 4294901760
        %3294 = vmatpush1.msra.mxu0 %v3293
        %v3295 = vand.u32 %v532, 4294901760
        %3296 = vmatprep.subr.mxu0 %v3295
        %v3297 = vand.u32 %v531, 4294901760
        %3298 = vmatpush1.msra.mxu0 %v3297
        %v3299 = vand.u32 %v540, 4294901760
        %3300 = vmatprep.subr.mxu0 %v3299
        %v3301 = vand.u32 %v539, 4294901760
        %3302 = vmatpush1.msra.mxu0 %v3301
        %v3303 = vand.u32 %v548, 4294901760
        %3304 = vmatprep.subr.mxu0 %v3303
        %v3305 = vand.u32 %v547, 4294901760
        %3306 = vmatpush1.msra.mxu0 %v3305
        %v3307 = vand.u32 %v556, 4294901760
        %3308 = vmatprep.subr.mxu0 %v3307
        %v3309 = vand.u32 %v555, 4294901760
        %3310 = vmatpush1.msra.mxu0 %v3309
        %v3311 = vand.u32 %v564, 4294901760
        %3312 = vmatprep.subr.mxu0 %v3311
        %v3313 = vand.u32 %v563, 4294901760
        %3314 = vmatpush1.msra.mxu0 %v3313
        %v3315 = vand.u32 %v572, 4294901760
        %3316 = vmatprep.subr.mxu0 %v3315
        %v3317 = vand.u32 %v571, 4294901760
        %3318 = vmatpush1.msra.mxu0 %v3317
        %v3319 = vand.u32 %v580, 4294901760
        %3320 = vmatprep.subr.mxu0 %v3319
        %v3321 = vand.u32 %v579, 4294901760
        %3322 = vmatpush1.msra.mxu0 %v3321
        %v3323 = vand.u32 %v588, 4294901760
        %3324 = vmatprep.subr.mxu0 %v3323
        %v3325 = vand.u32 %v587, 4294901760
        %3326 = vmatpush1.msra.mxu0 %v3325
        %v3327 = vand.u32 %v596, 4294901760
        %3328 = vmatprep.subr.mxu0 %v3327
        %v3329 = vand.u32 %v595, 4294901760
        %3330 = vmatpush1.msra.mxu0 %v3329
        %v3331 = vand.u32 %v604, 4294901760
        %3332 = vmatprep.subr.mxu0 %v3331
        %v3333 = vand.u32 %v603, 4294901760
        %3334 = vmatpush1.msra.mxu0 %v3333
        %v3335 = vand.u32 %v612, 4294901760
        %3336 = vmatprep.subr.mxu0 %v3335
        %v3337 = vand.u32 %v611, 4294901760
        %3338 = vmatpush1.msra.mxu0 %v3337
        %v3339 = vand.u32 %v620, 4294901760
        %3340 = vmatprep.subr.mxu0 %v3339
        %v3341 = vand.u32 %v619, 4294901760
        %3342 = vmatpush1.msra.mxu0 %v3341
        %v3343 = vand.u32 %v628, 4294901760
        %3344 = vmatprep.subr.mxu0 %v3343
        %v3345 = vand.u32 %v627, 4294901760
        %3346 = vmatpush1.msra.mxu0 %v3345
        %v3347 = vand.u32 %v636, 4294901760
        %3348 = vmatprep.subr.mxu0 %v3347
        %v3349 = vand.u32 %v635, 4294901760
        %3350 = vmatpush1.msra.mxu0 %v3349
        %v3351 = vand.u32 %v644, 4294901760
        %3352 = vmatprep.subr.mxu0 %v3351
        %v3353 = vand.u32 %v643, 4294901760
        %3354 = vmatpush1.msra.mxu0 %v3353
        %v3355 = vand.u32 %v652, 4294901760
        %3356 = vmatprep.subr.mxu0 %v3355
        %v3357 = vand.u32 %v651, 4294901760
        %3358 = vmatpush1.msra.mxu0 %v3357
        %v3359 = vand.u32 %v660, 4294901760
        %3360 = vmatprep.subr.mxu0 %v3359
        %v3361 = vand.u32 %v659, 4294901760
        %3362 = vmatpush1.msra.mxu0 %v3361
        %v3363 = vand.u32 %v668, 4294901760
        %3364 = vmatprep.subr.mxu0 %v3363
        %v3365 = vand.u32 %v667, 4294901760
        %3366 = vmatpush1.msra.mxu0 %v3365
        %v3367 = vand.u32 %v414, 4294901760
        %v3368 = vsub.f32 %v414, %v3367
        %v3369 = vand.u32 %v3368, 4294901760
        %v3370 = vsub.f32 %v3368, %v3369
        %v3371 = vand.u32 %v3370, 4294901760
        %3372 = vmatprep.mubr.f32.mxu0 %v3371
        %v3373 = vand.u32 %v413, 4294901760
        %v3374 = vsub.f32 %v413, %v3373
        %v3375 = vand.u32 %v3374, 4294901760
        %v3376 = vsub.f32 %v3374, %v3375
        %v3377 = vand.u32 %v3376, 4294901760
        %3378 = vmatmul.mubr.f32.gmra.mrb[0].mxu0 %v3377
        %v3379 = vpop.f32.mrb[0].mxu0
        %v3380 = vadd.f32 0.0, %v3379
        %v3381 = vpop.f32.mrb[0].mxu0
        %v3382 = vadd.f32 0.0, %v3381
        %3383 = vdwg.mxu0
        %v3384 = vand.u32 %v420, 4294901760
        %v3385 = vsub.f32 %v420, %v3384
        %v3386 = vand.u32 %v3385, 4294901760
        %v3387 = vsub.f32 %v3385, %v3386
        %v3388 = vand.u32 %v3387, 4294901760
        %3389 = vmatprep.subr.mxu0 %v3388
        %v3390 = vand.u32 %v419, 4294901760
        %v3391 = vsub.f32 %v419, %v3390
        %v3392 = vand.u32 %v3391, 4294901760
        %v3393 = vsub.f32 %v3391, %v3392
        %v3394 = vand.u32 %v3393, 4294901760
        %3395 = vmatpush1.msra.mxu0 %v3394
        %v3396 = vand.u32 %v428, 4294901760
        %v3397 = vsub.f32 %v428, %v3396
        %v3398 = vand.u32 %v3397, 4294901760
        %v3399 = vsub.f32 %v3397, %v3398
        %v3400 = vand.u32 %v3399, 4294901760
        %3401 = vmatprep.subr.mxu0 %v3400
        %v3402 = vand.u32 %v427, 4294901760
        %v3403 = vsub.f32 %v427, %v3402
        %v3404 = vand.u32 %v3403, 4294901760
        %v3405 = vsub.f32 %v3403, %v3404
        %v3406 = vand.u32 %v3405, 4294901760
        %3407 = vmatpush1.msra.mxu0 %v3406
        %v3408 = vand.u32 %v436, 4294901760
        %v3409 = vsub.f32 %v436, %v3408
        %v3410 = vand.u32 %v3409, 4294901760
        %v3411 = vsub.f32 %v3409, %v3410
        %v3412 = vand.u32 %v3411, 4294901760
        %3413 = vmatprep.subr.mxu0 %v3412
        %v3414 = vand.u32 %v435, 4294901760
        %v3415 = vsub.f32 %v435, %v3414
        %v3416 = vand.u32 %v3415, 4294901760
        %v3417 = vsub.f32 %v3415, %v3416
        %v3418 = vand.u32 %v3417, 4294901760
        %3419 = vmatpush1.msra.mxu0 %v3418
        %v3420 = vand.u32 %v444, 4294901760
        %v3421 = vsub.f32 %v444, %v3420
        %v3422 = vand.u32 %v3421, 4294901760
        %v3423 = vsub.f32 %v3421, %v3422
        %v3424 = vand.u32 %v3423, 4294901760
        %3425 = vmatprep.subr.mxu0 %v3424
        %v3426 = vand.u32 %v443, 4294901760
        %v3427 = vsub.f32 %v443, %v3426
        %v3428 = vand.u32 %v3427, 4294901760
        %v3429 = vsub.f32 %v3427, %v3428
        %v3430 = vand.u32 %v3429, 4294901760
        %3431 = vmatpush1.msra.mxu0 %v3430
        %v3432 = vand.u32 %v452, 4294901760
        %v3433 = vsub.f32 %v452, %v3432
        %v3434 = vand.u32 %v3433, 4294901760
        %v3435 = vsub.f32 %v3433, %v3434
        %v3436 = vand.u32 %v3435, 4294901760
        %3437 = vmatprep.subr.mxu0 %v3436
        %v3438 = vand.u32 %v451, 4294901760
        %v3439 = vsub.f32 %v451, %v3438
        %v3440 = vand.u32 %v3439, 4294901760
        %v3441 = vsub.f32 %v3439, %v3440
        %v3442 = vand.u32 %v3441, 4294901760
        %3443 = vmatpush1.msra.mxu0 %v3442
        %v3444 = vand.u32 %v460, 4294901760
        %v3445 = vsub.f32 %v460, %v3444
        %v3446 = vand.u32 %v3445, 4294901760
        %v3447 = vsub.f32 %v3445, %v3446
        %v3448 = vand.u32 %v3447, 4294901760
        %3449 = vmatprep.subr.mxu0 %v3448
        %v3450 = vand.u32 %v459, 4294901760
        %v3451 = vsub.f32 %v459, %v3450
        %v3452 = vand.u32 %v3451, 4294901760
        %v3453 = vsub.f32 %v3451, %v3452
        %v3454 = vand.u32 %v3453, 4294901760
        %3455 = vmatpush1.msra.mxu0 %v3454
        %v3456 = vand.u32 %v468, 4294901760
        %v3457 = vsub.f32 %v468, %v3456
        %v3458 = vand.u32 %v3457, 4294901760
        %v3459 = vsub.f32 %v3457, %v3458
        %v3460 = vand.u32 %v3459, 4294901760
        %3461 = vmatprep.subr.mxu0 %v3460
        %v3462 = vand.u32 %v467, 4294901760
        %v3463 = vsub.f32 %v467, %v3462
        %v3464 = vand.u32 %v3463, 4294901760
        %v3465 = vsub.f32 %v3463, %v3464
        %v3466 = vand.u32 %v3465, 4294901760
        %3467 = vmatpush1.msra.mxu0 %v3466
        %v3468 = vand.u32 %v476, 4294901760
        %v3469 = vsub.f32 %v476, %v3468
        %v3470 = vand.u32 %v3469, 4294901760
        %v3471 = vsub.f32 %v3469, %v3470
        %v3472 = vand.u32 %v3471, 4294901760
        %3473 = vmatprep.subr.mxu0 %v3472
        %v3474 = vand.u32 %v475, 4294901760
        %v3475 = vsub.f32 %v475, %v3474
        %v3476 = vand.u32 %v3475, 4294901760
        %v3477 = vsub.f32 %v3475, %v3476
        %v3478 = vand.u32 %v3477, 4294901760
        %3479 = vmatpush1.msra.mxu0 %v3478
        %v3480 = vand.u32 %v484, 4294901760
        %v3481 = vsub.f32 %v484, %v3480
        %v3482 = vand.u32 %v3481, 4294901760
        %v3483 = vsub.f32 %v3481, %v3482
        %v3484 = vand.u32 %v3483, 4294901760
        %3485 = vmatprep.subr.mxu0 %v3484
        %v3486 = vand.u32 %v483, 4294901760
        %v3487 = vsub.f32 %v483, %v3486
        %v3488 = vand.u32 %v3487, 4294901760
        %v3489 = vsub.f32 %v3487, %v3488
        %v3490 = vand.u32 %v3489, 4294901760
        %3491 = vmatpush1.msra.mxu0 %v3490
        %v3492 = vand.u32 %v492, 4294901760
        %v3493 = vsub.f32 %v492, %v3492
        %v3494 = vand.u32 %v3493, 4294901760
        %v3495 = vsub.f32 %v3493, %v3494
        %v3496 = vand.u32 %v3495, 4294901760
        %3497 = vmatprep.subr.mxu0 %v3496
        %v3498 = vand.u32 %v491, 4294901760
        %v3499 = vsub.f32 %v491, %v3498
        %v3500 = vand.u32 %v3499, 4294901760
        %v3501 = vsub.f32 %v3499, %v3500
        %v3502 = vand.u32 %v3501, 4294901760
        %3503 = vmatpush1.msra.mxu0 %v3502
        %v3504 = vand.u32 %v500, 4294901760
        %v3505 = vsub.f32 %v500, %v3504
        %v3506 = vand.u32 %v3505, 4294901760
        %v3507 = vsub.f32 %v3505, %v3506
        %v3508 = vand.u32 %v3507, 4294901760
        %3509 = vmatprep.subr.mxu0 %v3508
        %v3510 = vand.u32 %v499, 4294901760
        %v3511 = vsub.f32 %v499, %v3510
        %v3512 = vand.u32 %v3511, 4294901760
        %v3513 = vsub.f32 %v3511, %v3512
        %v3514 = vand.u32 %v3513, 4294901760
        %3515 = vmatpush1.msra.mxu0 %v3514
        %v3516 = vand.u32 %v508, 4294901760
        %v3517 = vsub.f32 %v508, %v3516
        %v3518 = vand.u32 %v3517, 4294901760
        %v3519 = vsub.f32 %v3517, %v3518
        %v3520 = vand.u32 %v3519, 4294901760
        %3521 = vmatprep.subr.mxu0 %v3520
        %v3522 = vand.u32 %v507, 4294901760
        %v3523 = vsub.f32 %v507, %v3522
        %v3524 = vand.u32 %v3523, 4294901760
        %v3525 = vsub.f32 %v3523, %v3524
        %v3526 = vand.u32 %v3525, 4294901760
        %3527 = vmatpush1.msra.mxu0 %v3526
        %v3528 = vand.u32 %v516, 4294901760
        %v3529 = vsub.f32 %v516, %v3528
        %v3530 = vand.u32 %v3529, 4294901760
        %v3531 = vsub.f32 %v3529, %v3530
        %v3532 = vand.u32 %v3531, 4294901760
        %3533 = vmatprep.subr.mxu0 %v3532
        %v3534 = vand.u32 %v515, 4294901760
        %v3535 = vsub.f32 %v515, %v3534
        %v3536 = vand.u32 %v3535, 4294901760
        %v3537 = vsub.f32 %v3535, %v3536
        %v3538 = vand.u32 %v3537, 4294901760
        %3539 = vmatpush1.msra.mxu0 %v3538
        %v3540 = vand.u32 %v524, 4294901760
        %v3541 = vsub.f32 %v524, %v3540
        %v3542 = vand.u32 %v3541, 4294901760
        %v3543 = vsub.f32 %v3541, %v3542
        %v3544 = vand.u32 %v3543, 4294901760
        %3545 = vmatprep.subr.mxu0 %v3544
        %v3546 = vand.u32 %v523, 4294901760
        %v3547 = vsub.f32 %v523, %v3546
        %v3548 = vand.u32 %v3547, 4294901760
        %v3549 = vsub.f32 %v3547, %v3548
        %v3550 = vand.u32 %v3549, 4294901760
        %3551 = vmatpush1.msra.mxu0 %v3550
        %v3552 = vand.u32 %v532, 4294901760
        %v3553 = vsub.f32 %v532, %v3552
        %v3554 = vand.u32 %v3553, 4294901760
        %v3555 = vsub.f32 %v3553, %v3554
        %v3556 = vand.u32 %v3555, 4294901760
        %3557 = vmatprep.subr.mxu0 %v3556
        %v3558 = vand.u32 %v531, 4294901760
        %v3559 = vsub.f32 %v531, %v3558
        %v3560 = vand.u32 %v3559, 4294901760
        %v3561 = vsub.f32 %v3559, %v3560
        %v3562 = vand.u32 %v3561, 4294901760
        %3563 = vmatpush1.msra.mxu0 %v3562
        %v3564 = vand.u32 %v540, 4294901760
        %v3565 = vsub.f32 %v540, %v3564
        %v3566 = vand.u32 %v3565, 4294901760
        %v3567 = vsub.f32 %v3565, %v3566
        %v3568 = vand.u32 %v3567, 4294901760
        %3569 = vmatprep.subr.mxu0 %v3568
        %v3570 = vand.u32 %v539, 4294901760
        %v3571 = vsub.f32 %v539, %v3570
        %v3572 = vand.u32 %v3571, 4294901760
        %v3573 = vsub.f32 %v3571, %v3572
        %v3574 = vand.u32 %v3573, 4294901760
        %3575 = vmatpush1.msra.mxu0 %v3574
        %v3576 = vand.u32 %v548, 4294901760
        %v3577 = vsub.f32 %v548, %v3576
        %v3578 = vand.u32 %v3577, 4294901760
        %v3579 = vsub.f32 %v3577, %v3578
        %v3580 = vand.u32 %v3579, 4294901760
        %3581 = vmatprep.subr.mxu0 %v3580
        %v3582 = vand.u32 %v547, 4294901760
        %v3583 = vsub.f32 %v547, %v3582
        %v3584 = vand.u32 %v3583, 4294901760
        %v3585 = vsub.f32 %v3583, %v3584
        %v3586 = vand.u32 %v3585, 4294901760
        %3587 = vmatpush1.msra.mxu0 %v3586
        %v3588 = vand.u32 %v556, 4294901760
        %v3589 = vsub.f32 %v556, %v3588
        %v3590 = vand.u32 %v3589, 4294901760
        %v3591 = vsub.f32 %v3589, %v3590
        %v3592 = vand.u32 %v3591, 4294901760
        %3593 = vmatprep.subr.mxu0 %v3592
        %v3594 = vand.u32 %v555, 4294901760
        %v3595 = vsub.f32 %v555, %v3594
        %v3596 = vand.u32 %v3595, 4294901760
        %v3597 = vsub.f32 %v3595, %v3596
        %v3598 = vand.u32 %v3597, 4294901760
        %3599 = vmatpush1.msra.mxu0 %v3598
        %v3600 = vand.u32 %v564, 4294901760
        %v3601 = vsub.f32 %v564, %v3600
        %v3602 = vand.u32 %v3601, 4294901760
        %v3603 = vsub.f32 %v3601, %v3602
        %v3604 = vand.u32 %v3603, 4294901760
        %3605 = vmatprep.subr.mxu0 %v3604
        %v3606 = vand.u32 %v563, 4294901760
        %v3607 = vsub.f32 %v563, %v3606
        %v3608 = vand.u32 %v3607, 4294901760
        %v3609 = vsub.f32 %v3607, %v3608
        %v3610 = vand.u32 %v3609, 4294901760
        %3611 = vmatpush1.msra.mxu0 %v3610
        %v3612 = vand.u32 %v572, 4294901760
        %v3613 = vsub.f32 %v572, %v3612
        %v3614 = vand.u32 %v3613, 4294901760
        %v3615 = vsub.f32 %v3613, %v3614
        %v3616 = vand.u32 %v3615, 4294901760
        %3617 = vmatprep.subr.mxu0 %v3616
        %v3618 = vand.u32 %v571, 4294901760
        %v3619 = vsub.f32 %v571, %v3618
        %v3620 = vand.u32 %v3619, 4294901760
        %v3621 = vsub.f32 %v3619, %v3620
        %v3622 = vand.u32 %v3621, 4294901760
        %3623 = vmatpush1.msra.mxu0 %v3622
        %v3624 = vand.u32 %v580, 4294901760
        %v3625 = vsub.f32 %v580, %v3624
        %v3626 = vand.u32 %v3625, 4294901760
        %v3627 = vsub.f32 %v3625, %v3626
        %v3628 = vand.u32 %v3627, 4294901760
        %3629 = vmatprep.subr.mxu0 %v3628
        %v3630 = vand.u32 %v579, 4294901760
        %v3631 = vsub.f32 %v579, %v3630
        %v3632 = vand.u32 %v3631, 4294901760
        %v3633 = vsub.f32 %v3631, %v3632
        %v3634 = vand.u32 %v3633, 4294901760
        %3635 = vmatpush1.msra.mxu0 %v3634
        %v3636 = vand.u32 %v588, 4294901760
        %v3637 = vsub.f32 %v588, %v3636
        %v3638 = vand.u32 %v3637, 4294901760
        %v3639 = vsub.f32 %v3637, %v3638
        %v3640 = vand.u32 %v3639, 4294901760
        %3641 = vmatprep.subr.mxu0 %v3640
        %v3642 = vand.u32 %v587, 4294901760
        %v3643 = vsub.f32 %v587, %v3642
        %v3644 = vand.u32 %v3643, 4294901760
        %v3645 = vsub.f32 %v3643, %v3644
        %v3646 = vand.u32 %v3645, 4294901760
        %3647 = vmatpush1.msra.mxu0 %v3646
        %v3648 = vand.u32 %v596, 4294901760
        %v3649 = vsub.f32 %v596, %v3648
        %v3650 = vand.u32 %v3649, 4294901760
        %v3651 = vsub.f32 %v3649, %v3650
        %v3652 = vand.u32 %v3651, 4294901760
        %3653 = vmatprep.subr.mxu0 %v3652
        %v3654 = vand.u32 %v595, 4294901760
        %v3655 = vsub.f32 %v595, %v3654
        %v3656 = vand.u32 %v3655, 4294901760
        %v3657 = vsub.f32 %v3655, %v3656
        %v3658 = vand.u32 %v3657, 4294901760
        %3659 = vmatpush1.msra.mxu0 %v3658
        %v3660 = vand.u32 %v604, 4294901760
        %v3661 = vsub.f32 %v604, %v3660
        %v3662 = vand.u32 %v3661, 4294901760
        %v3663 = vsub.f32 %v3661, %v3662
        %v3664 = vand.u32 %v3663, 4294901760
        %3665 = vmatprep.subr.mxu0 %v3664
        %v3666 = vand.u32 %v603, 4294901760
        %v3667 = vsub.f32 %v603, %v3666
        %v3668 = vand.u32 %v3667, 4294901760
        %v3669 = vsub.f32 %v3667, %v3668
        %v3670 = vand.u32 %v3669, 4294901760
        %3671 = vmatpush1.msra.mxu0 %v3670
        %v3672 = vand.u32 %v612, 4294901760
        %v3673 = vsub.f32 %v612, %v3672
        %v3674 = vand.u32 %v3673, 4294901760
        %v3675 = vsub.f32 %v3673, %v3674
        %v3676 = vand.u32 %v3675, 4294901760
        %3677 = vmatprep.subr.mxu0 %v3676
        %v3678 = vand.u32 %v611, 4294901760
        %v3679 = vsub.f32 %v611, %v3678
        %v3680 = vand.u32 %v3679, 4294901760
        %v3681 = vsub.f32 %v3679, %v3680
        %v3682 = vand.u32 %v3681, 4294901760
        %3683 = vmatpush1.msra.mxu0 %v3682
        %v3684 = vand.u32 %v620, 4294901760
        %v3685 = vsub.f32 %v620, %v3684
        %v3686 = vand.u32 %v3685, 4294901760
        %v3687 = vsub.f32 %v3685, %v3686
        %v3688 = vand.u32 %v3687, 4294901760
        %3689 = vmatprep.subr.mxu0 %v3688
        %v3690 = vand.u32 %v619, 4294901760
        %v3691 = vsub.f32 %v619, %v3690
        %v3692 = vand.u32 %v3691, 4294901760
        %v3693 = vsub.f32 %v3691, %v3692
        %v3694 = vand.u32 %v3693, 4294901760
        %3695 = vmatpush1.msra.mxu0 %v3694
        %v3696 = vand.u32 %v628, 4294901760
        %v3697 = vsub.f32 %v628, %v3696
        %v3698 = vand.u32 %v3697, 4294901760
        %v3699 = vsub.f32 %v3697, %v3698
        %v3700 = vand.u32 %v3699, 4294901760
        %3701 = vmatprep.subr.mxu0 %v3700
        %v3702 = vand.u32 %v627, 4294901760
        %v3703 = vsub.f32 %v627, %v3702
        %v3704 = vand.u32 %v3703, 4294901760
        %v3705 = vsub.f32 %v3703, %v3704
        %v3706 = vand.u32 %v3705, 4294901760
        %3707 = vmatpush1.msra.mxu0 %v3706
        %v3708 = vand.u32 %v636, 4294901760
        %v3709 = vsub.f32 %v636, %v3708
        %v3710 = vand.u32 %v3709, 4294901760
        %v3711 = vsub.f32 %v3709, %v3710
        %v3712 = vand.u32 %v3711, 4294901760
        %3713 = vmatprep.subr.mxu0 %v3712
        %v3714 = vand.u32 %v635, 4294901760
        %v3715 = vsub.f32 %v635, %v3714
        %v3716 = vand.u32 %v3715, 4294901760
        %v3717 = vsub.f32 %v3715, %v3716
        %v3718 = vand.u32 %v3717, 4294901760
        %3719 = vmatpush1.msra.mxu0 %v3718
        %v3720 = vand.u32 %v644, 4294901760
        %v3721 = vsub.f32 %v644, %v3720
        %v3722 = vand.u32 %v3721, 4294901760
        %v3723 = vsub.f32 %v3721, %v3722
        %v3724 = vand.u32 %v3723, 4294901760
        %3725 = vmatprep.subr.mxu0 %v3724
        %v3726 = vand.u32 %v643, 4294901760
        %v3727 = vsub.f32 %v643, %v3726
        %v3728 = vand.u32 %v3727, 4294901760
        %v3729 = vsub.f32 %v3727, %v3728
        %v3730 = vand.u32 %v3729, 4294901760
        %3731 = vmatpush1.msra.mxu0 %v3730
        %v3732 = vand.u32 %v652, 4294901760
        %v3733 = vsub.f32 %v652, %v3732
        %v3734 = vand.u32 %v3733, 4294901760
        %v3735 = vsub.f32 %v3733, %v3734
        %v3736 = vand.u32 %v3735, 4294901760
        %3737 = vmatprep.subr.mxu0 %v3736
        %v3738 = vand.u32 %v651, 4294901760
        %v3739 = vsub.f32 %v651, %v3738
        %v3740 = vand.u32 %v3739, 4294901760
        %v3741 = vsub.f32 %v3739, %v3740
        %v3742 = vand.u32 %v3741, 4294901760
        %3743 = vmatpush1.msra.mxu0 %v3742
        %v3744 = vand.u32 %v660, 4294901760
        %v3745 = vsub.f32 %v660, %v3744
        %v3746 = vand.u32 %v3745, 4294901760
        %v3747 = vsub.f32 %v3745, %v3746
        %v3748 = vand.u32 %v3747, 4294901760
        %3749 = vmatprep.subr.mxu0 %v3748
        %v3750 = vand.u32 %v659, 4294901760
        %v3751 = vsub.f32 %v659, %v3750
        %v3752 = vand.u32 %v3751, 4294901760
        %v3753 = vsub.f32 %v3751, %v3752
        %v3754 = vand.u32 %v3753, 4294901760
        %3755 = vmatpush1.msra.mxu0 %v3754
        %v3756 = vand.u32 %v668, 4294901760
        %v3757 = vsub.f32 %v668, %v3756
        %v3758 = vand.u32 %v3757, 4294901760
        %v3759 = vsub.f32 %v3757, %v3758
        %v3760 = vand.u32 %v3759, 4294901760
        %3761 = vmatprep.subr.mxu0 %v3760
        %v3762 = vand.u32 %v667, 4294901760
        %v3763 = vsub.f32 %v667, %v3762
        %v3764 = vand.u32 %v3763, 4294901760
        %v3765 = vsub.f32 %v3763, %v3764
        %v3766 = vand.u32 %v3765, 4294901760
        %3767 = vmatpush1.msra.mxu0 %v3766
        %v3768 = vand.u32 %v414, 4294901760
        %3769 = vmatprep.mubr.f32.mxu0 %v3768
        %v3770 = vand.u32 %v413, 4294901760
        %3771 = vmatmul.mubr.f32.gmra.mrb[0].mxu0 %v3770
        %v3772 = vpop.f32.mrb[0].mxu0
        %v3773 = vadd.f32 %v3380, %v3772
        %v3774 = vpop.f32.mrb[0].mxu0
        %v3775 = vadd.f32 %v3382, %v3774
        %3776 = vdwg.mxu0
        %v3777 = vand.u32 %v420, 4294901760
        %v3778 = vsub.f32 %v420, %v3777
        %3779 = vmatprep.subr.mxu0 %v3778
        %v3780 = vand.u32 %v419, 4294901760
        %v3781 = vsub.f32 %v419, %v3780
        %3782 = vmatpush1.msra.mxu0 %v3781
        %v3783 = vand.u32 %v428, 4294901760
        %v3784 = vsub.f32 %v428, %v3783
        %3785 = vmatprep.subr.mxu0 %v3784
        %v3786 = vand.u32 %v427, 4294901760
        %v3787 = vsub.f32 %v427, %v3786
        %3788 = vmatpush1.msra.mxu0 %v3787
        %v3789 = vand.u32 %v436, 4294901760
        %v3790 = vsub.f32 %v436, %v3789
        %3791 = vmatprep.subr.mxu0 %v3790
        %v3792 = vand.u32 %v435, 4294901760
        %v3793 = vsub.f32 %v435, %v3792
        %3794 = vmatpush1.msra.mxu0 %v3793
        %v3795 = vand.u32 %v444, 4294901760
        %v3796 = vsub.f32 %v444, %v3795
        %3797 = vmatprep.subr.mxu0 %v3796
        %v3798 = vand.u32 %v443, 4294901760
        %v3799 = vsub.f32 %v443, %v3798
        %3800 = vmatpush1.msra.mxu0 %v3799
        %v3801 = vand.u32 %v452, 4294901760
        %v3802 = vsub.f32 %v452, %v3801
        %3803 = vmatprep.subr.mxu0 %v3802
        %v3804 = vand.u32 %v451, 4294901760
        %v3805 = vsub.f32 %v451, %v3804
        %3806 = vmatpush1.msra.mxu0 %v3805
        %v3807 = vand.u32 %v460, 4294901760
        %v3808 = vsub.f32 %v460, %v3807
        %3809 = vmatprep.subr.mxu0 %v3808
        %v3810 = vand.u32 %v459, 4294901760
        %v3811 = vsub.f32 %v459, %v3810
        %3812 = vmatpush1.msra.mxu0 %v3811
        %v3813 = vand.u32 %v468, 4294901760
        %v3814 = vsub.f32 %v468, %v3813
        %3815 = vmatprep.subr.mxu0 %v3814
        %v3816 = vand.u32 %v467, 4294901760
        %v3817 = vsub.f32 %v467, %v3816
        %3818 = vmatpush1.msra.mxu0 %v3817
        %v3819 = vand.u32 %v476, 4294901760
        %v3820 = vsub.f32 %v476, %v3819
        %3821 = vmatprep.subr.mxu0 %v3820
        %v3822 = vand.u32 %v475, 4294901760
        %v3823 = vsub.f32 %v475, %v3822
        %3824 = vmatpush1.msra.mxu0 %v3823
        %v3825 = vand.u32 %v484, 4294901760
        %v3826 = vsub.f32 %v484, %v3825
        %3827 = vmatprep.subr.mxu0 %v3826
        %v3828 = vand.u32 %v483, 4294901760
        %v3829 = vsub.f32 %v483, %v3828
        %3830 = vmatpush1.msra.mxu0 %v3829
        %v3831 = vand.u32 %v492, 4294901760
        %v3832 = vsub.f32 %v492, %v3831
        %3833 = vmatprep.subr.mxu0 %v3832
        %v3834 = vand.u32 %v491, 4294901760
        %v3835 = vsub.f32 %v491, %v3834
        %3836 = vmatpush1.msra.mxu0 %v3835
        %v3837 = vand.u32 %v500, 4294901760
        %v3838 = vsub.f32 %v500, %v3837
        %3839 = vmatprep.subr.mxu0 %v3838
        %v3840 = vand.u32 %v499, 4294901760
        %v3841 = vsub.f32 %v499, %v3840
        %3842 = vmatpush1.msra.mxu0 %v3841
        %v3843 = vand.u32 %v508, 4294901760
        %v3844 = vsub.f32 %v508, %v3843
        %3845 = vmatprep.subr.mxu0 %v3844
        %v3846 = vand.u32 %v507, 4294901760
        %v3847 = vsub.f32 %v507, %v3846
        %3848 = vmatpush1.msra.mxu0 %v3847
        %v3849 = vand.u32 %v516, 4294901760
        %v3850 = vsub.f32 %v516, %v3849
        %3851 = vmatprep.subr.mxu0 %v3850
        %v3852 = vand.u32 %v515, 4294901760
        %v3853 = vsub.f32 %v515, %v3852
        %3854 = vmatpush1.msra.mxu0 %v3853
        %v3855 = vand.u32 %v524, 4294901760
        %v3856 = vsub.f32 %v524, %v3855
        %3857 = vmatprep.subr.mxu0 %v3856
        %v3858 = vand.u32 %v523, 4294901760
        %v3859 = vsub.f32 %v523, %v3858
        %3860 = vmatpush1.msra.mxu0 %v3859
        %v3861 = vand.u32 %v532, 4294901760
        %v3862 = vsub.f32 %v532, %v3861
        %3863 = vmatprep.subr.mxu0 %v3862
        %v3864 = vand.u32 %v531, 4294901760
        %v3865 = vsub.f32 %v531, %v3864
        %3866 = vmatpush1.msra.mxu0 %v3865
        %v3867 = vand.u32 %v540, 4294901760
        %v3868 = vsub.f32 %v540, %v3867
        %3869 = vmatprep.subr.mxu0 %v3868
        %v3870 = vand.u32 %v539, 4294901760
        %v3871 = vsub.f32 %v539, %v3870
        %3872 = vmatpush1.msra.mxu0 %v3871
        %v3873 = vand.u32 %v548, 4294901760
        %v3874 = vsub.f32 %v548, %v3873
        %3875 = vmatprep.subr.mxu0 %v3874
        %v3876 = vand.u32 %v547, 4294901760
        %v3877 = vsub.f32 %v547, %v3876
        %3878 = vmatpush1.msra.mxu0 %v3877
        %v3879 = vand.u32 %v556, 4294901760
        %v3880 = vsub.f32 %v556, %v3879
        %3881 = vmatprep.subr.mxu0 %v3880
        %v3882 = vand.u32 %v555, 4294901760
        %v3883 = vsub.f32 %v555, %v3882
        %3884 = vmatpush1.msra.mxu0 %v3883
        %v3885 = vand.u32 %v564, 4294901760
        %v3886 = vsub.f32 %v564, %v3885
        %3887 = vmatprep.subr.mxu0 %v3886
        %v3888 = vand.u32 %v563, 4294901760
        %v3889 = vsub.f32 %v563, %v3888
        %3890 = vmatpush1.msra.mxu0 %v3889
        %v3891 = vand.u32 %v572, 4294901760
        %v3892 = vsub.f32 %v572, %v3891
        %3893 = vmatprep.subr.mxu0 %v3892
        %v3894 = vand.u32 %v571, 4294901760
        %v3895 = vsub.f32 %v571, %v3894
        %3896 = vmatpush1.msra.mxu0 %v3895
        %v3897 = vand.u32 %v580, 4294901760
        %v3898 = vsub.f32 %v580, %v3897
        %3899 = vmatprep.subr.mxu0 %v3898
        %v3900 = vand.u32 %v579, 4294901760
        %v3901 = vsub.f32 %v579, %v3900
        %3902 = vmatpush1.msra.mxu0 %v3901
        %v3903 = vand.u32 %v588, 4294901760
        %v3904 = vsub.f32 %v588, %v3903
        %3905 = vmatprep.subr.mxu0 %v3904
        %v3906 = vand.u32 %v587, 4294901760
        %v3907 = vsub.f32 %v587, %v3906
        %3908 = vmatpush1.msra.mxu0 %v3907
        %v3909 = vand.u32 %v596, 4294901760
        %v3910 = vsub.f32 %v596, %v3909
        %3911 = vmatprep.subr.mxu0 %v3910
        %v3912 = vand.u32 %v595, 4294901760
        %v3913 = vsub.f32 %v595, %v3912
        %3914 = vmatpush1.msra.mxu0 %v3913
        %v3915 = vand.u32 %v604, 4294901760
        %v3916 = vsub.f32 %v604, %v3915
        %3917 = vmatprep.subr.mxu0 %v3916
        %v3918 = vand.u32 %v603, 4294901760
        %v3919 = vsub.f32 %v603, %v3918
        %3920 = vmatpush1.msra.mxu0 %v3919
        %v3921 = vand.u32 %v612, 4294901760
        %v3922 = vsub.f32 %v612, %v3921
        %3923 = vmatprep.subr.mxu0 %v3922
        %v3924 = vand.u32 %v611, 4294901760
        %v3925 = vsub.f32 %v611, %v3924
        %3926 = vmatpush1.msra.mxu0 %v3925
        %v3927 = vand.u32 %v620, 4294901760
        %v3928 = vsub.f32 %v620, %v3927
        %3929 = vmatprep.subr.mxu0 %v3928
        %v3930 = vand.u32 %v619, 4294901760
        %v3931 = vsub.f32 %v619, %v3930
        %3932 = vmatpush1.msra.mxu0 %v3931
        %v3933 = vand.u32 %v628, 4294901760
        %v3934 = vsub.f32 %v628, %v3933
        %3935 = vmatprep.subr.mxu0 %v3934
        %v3936 = vand.u32 %v627, 4294901760
        %v3937 = vsub.f32 %v627, %v3936
        %3938 = vmatpush1.msra.mxu0 %v3937
        %v3939 = vand.u32 %v636, 4294901760
        %v3940 = vsub.f32 %v636, %v3939
        %3941 = vmatprep.subr.mxu0 %v3940
        %v3942 = vand.u32 %v635, 4294901760
        %v3943 = vsub.f32 %v635, %v3942
        %3944 = vmatpush1.msra.mxu0 %v3943
        %v3945 = vand.u32 %v644, 4294901760
        %v3946 = vsub.f32 %v644, %v3945
        %3947 = vmatprep.subr.mxu0 %v3946
        %v3948 = vand.u32 %v643, 4294901760
        %v3949 = vsub.f32 %v643, %v3948
        %3950 = vmatpush1.msra.mxu0 %v3949
        %v3951 = vand.u32 %v652, 4294901760
        %v3952 = vsub.f32 %v652, %v3951
        %3953 = vmatprep.subr.mxu0 %v3952
        %v3954 = vand.u32 %v651, 4294901760
        %v3955 = vsub.f32 %v651, %v3954
        %3956 = vmatpush1.msra.mxu0 %v3955
        %v3957 = vand.u32 %v660, 4294901760
        %v3958 = vsub.f32 %v660, %v3957
        %3959 = vmatprep.subr.mxu0 %v3958
        %v3960 = vand.u32 %v659, 4294901760
        %v3961 = vsub.f32 %v659, %v3960
        %3962 = vmatpush1.msra.mxu0 %v3961
        %v3963 = vand.u32 %v668, 4294901760
        %v3964 = vsub.f32 %v668, %v3963
        %3965 = vmatprep.subr.mxu0 %v3964
        %v3966 = vand.u32 %v667, 4294901760
        %v3967 = vsub.f32 %v667, %v3966
        %3968 = vmatpush1.msra.mxu0 %v3967
        %v3969 = vand.u32 %v414, 4294901760
        %v3970 = vsub.f32 %v414, %v3969
        %3971 = vmatprep.mubr.f32.mxu0 %v3970
        %v3972 = vand.u32 %v413, 4294901760
        %v3973 = vsub.f32 %v413, %v3972
        %3974 = vmatmul.mubr.f32.gmra.mrb[0].mxu0 %v3973
        %v3975 = vpop.f32.mrb[0].mxu0
        %v3976 = vadd.f32 %v3773, %v3975
        %v3977 = vpop.f32.mrb[0].mxu0
        %v3978 = vadd.f32 %v3775, %v3977
        %3979 = vdwg.mxu0
        %v3980 = vand.u32 %v420, 4294901760
        %3981 = vmatprep.subr.mxu0 %v3980
        %v3982 = vand.u32 %v419, 4294901760
        %3983 = vmatpush1.msra.mxu0 %v3982
        %v3984 = vand.u32 %v428, 4294901760
        %3985 = vmatprep.subr.mxu0 %v3984
        %v3986 = vand.u32 %v427, 4294901760
        %3987 = vmatpush1.msra.mxu0 %v3986
        %v3988 = vand.u32 %v436, 4294901760
        %3989 = vmatprep.subr.mxu0 %v3988
        %v3990 = vand.u32 %v435, 4294901760
        %3991 = vmatpush1.msra.mxu0 %v3990
        %v3992 = vand.u32 %v444, 4294901760
        %3993 = vmatprep.subr.mxu0 %v3992
        %v3994 = vand.u32 %v443, 4294901760
        %3995 = vmatpush1.msra.mxu0 %v3994
        %v3996 = vand.u32 %v452, 4294901760
        %3997 = vmatprep.subr.mxu0 %v3996
        %v3998 = vand.u32 %v451, 4294901760
        %3999 = vmatpush1.msra.mxu0 %v3998
        %v4000 = vand.u32 %v460, 4294901760
        %4001 = vmatprep.subr.mxu0 %v4000
        %v4002 = vand.u32 %v459, 4294901760
        %4003 = vmatpush1.msra.mxu0 %v4002
        %v4004 = vand.u32 %v468, 4294901760
        %4005 = vmatprep.subr.mxu0 %v4004
        %v4006 = vand.u32 %v467, 4294901760
        %4007 = vmatpush1.msra.mxu0 %v4006
        %v4008 = vand.u32 %v476, 4294901760
        %4009 = vmatprep.subr.mxu0 %v4008
        %v4010 = vand.u32 %v475, 4294901760
        %4011 = vmatpush1.msra.mxu0 %v4010
        %v4012 = vand.u32 %v484, 4294901760
        %4013 = vmatprep.subr.mxu0 %v4012
        %v4014 = vand.u32 %v483, 4294901760
        %4015 = vmatpush1.msra.mxu0 %v4014
        %v4016 = vand.u32 %v492, 4294901760
        %4017 = vmatprep.subr.mxu0 %v4016
        %v4018 = vand.u32 %v491, 4294901760
        %4019 = vmatpush1.msra.mxu0 %v4018
        %v4020 = vand.u32 %v500, 4294901760
        %4021 = vmatprep.subr.mxu0 %v4020
        %v4022 = vand.u32 %v499, 4294901760
        %4023 = vmatpush1.msra.mxu0 %v4022
        %v4024 = vand.u32 %v508, 4294901760
        %4025 = vmatprep.subr.mxu0 %v4024
        %v4026 = vand.u32 %v507, 4294901760
        %4027 = vmatpush1.msra.mxu0 %v4026
        %v4028 = vand.u32 %v516, 4294901760
        %4029 = vmatprep.subr.mxu0 %v4028
        %v4030 = vand.u32 %v515, 4294901760
        %4031 = vmatpush1.msra.mxu0 %v4030
        %v4032 = vand.u32 %v524, 4294901760
        %4033 = vmatprep.subr.mxu0 %v4032
        %v4034 = vand.u32 %v523, 4294901760
        %4035 = vmatpush1.msra.mxu0 %v4034
        %v4036 = vand.u32 %v532, 4294901760
        %4037 = vmatprep.subr.mxu0 %v4036
        %v4038 = vand.u32 %v531, 4294901760
        %4039 = vmatpush1.msra.mxu0 %v4038
        %v4040 = vand.u32 %v540, 4294901760
        %4041 = vmatprep.subr.mxu0 %v4040
        %v4042 = vand.u32 %v539, 4294901760
        %4043 = vmatpush1.msra.mxu0 %v4042
        %v4044 = vand.u32 %v548, 4294901760
        %4045 = vmatprep.subr.mxu0 %v4044
        %v4046 = vand.u32 %v547, 4294901760
        %4047 = vmatpush1.msra.mxu0 %v4046
        %v4048 = vand.u32 %v556, 4294901760
        %4049 = vmatprep.subr.mxu0 %v4048
        %v4050 = vand.u32 %v555, 4294901760
        %4051 = vmatpush1.msra.mxu0 %v4050
        %v4052 = vand.u32 %v564, 4294901760
        %4053 = vmatprep.subr.mxu0 %v4052
        %v4054 = vand.u32 %v563, 4294901760
        %4055 = vmatpush1.msra.mxu0 %v4054
        %v4056 = vand.u32 %v572, 4294901760
        %4057 = vmatprep.subr.mxu0 %v4056
        %v4058 = vand.u32 %v571, 4294901760
        %4059 = vmatpush1.msra.mxu0 %v4058
        %v4060 = vand.u32 %v580, 4294901760
        %4061 = vmatprep.subr.mxu0 %v4060
        %v4062 = vand.u32 %v579, 4294901760
        %4063 = vmatpush1.msra.mxu0 %v4062
        %v4064 = vand.u32 %v588, 4294901760
        %4065 = vmatprep.subr.mxu0 %v4064
        %v4066 = vand.u32 %v587, 4294901760
        %4067 = vmatpush1.msra.mxu0 %v4066
        %v4068 = vand.u32 %v596, 4294901760
        %4069 = vmatprep.subr.mxu0 %v4068
        %v4070 = vand.u32 %v595, 4294901760
        %4071 = vmatpush1.msra.mxu0 %v4070
        %v4072 = vand.u32 %v604, 4294901760
        %4073 = vmatprep.subr.mxu0 %v4072
        %v4074 = vand.u32 %v603, 4294901760
        %4075 = vmatpush1.msra.mxu0 %v4074
        %v4076 = vand.u32 %v612, 4294901760
        %4077 = vmatprep.subr.mxu0 %v4076
        %v4078 = vand.u32 %v611, 4294901760
        %4079 = vmatpush1.msra.mxu0 %v4078
        %v4080 = vand.u32 %v620, 4294901760
        %4081 = vmatprep.subr.mxu0 %v4080
        %v4082 = vand.u32 %v619, 4294901760
        %4083 = vmatpush1.msra.mxu0 %v4082
        %v4084 = vand.u32 %v628, 4294901760
        %4085 = vmatprep.subr.mxu0 %v4084
        %v4086 = vand.u32 %v627, 4294901760
        %4087 = vmatpush1.msra.mxu0 %v4086
        %v4088 = vand.u32 %v636, 4294901760
        %4089 = vmatprep.subr.mxu0 %v4088
        %v4090 = vand.u32 %v635, 4294901760
        %4091 = vmatpush1.msra.mxu0 %v4090
        %v4092 = vand.u32 %v644, 4294901760
        %4093 = vmatprep.subr.mxu0 %v4092
        %v4094 = vand.u32 %v643, 4294901760
        %4095 = vmatpush1.msra.mxu0 %v4094
        %v4096 = vand.u32 %v652, 4294901760
        %4097 = vmatprep.subr.mxu0 %v4096
        %v4098 = vand.u32 %v651, 4294901760
        %4099 = vmatpush1.msra.mxu0 %v4098
        %v4100 = vand.u32 %v660, 4294901760
        %4101 = vmatprep.subr.mxu0 %v4100
        %v4102 = vand.u32 %v659, 4294901760
        %4103 = vmatpush1.msra.mxu0 %v4102
        %v4104 = vand.u32 %v668, 4294901760
        %4105 = vmatprep.subr.mxu0 %v4104
        %v4106 = vand.u32 %v667, 4294901760
        %4107 = vmatpush1.msra.mxu0 %v4106
        %v4108 = vand.u32 %v414, 4294901760
        %v4109 = vsub.f32 %v414, %v4108
        %v4110 = vand.u32 %v4109, 4294901760
        %4111 = vmatprep.mubr.f32.mxu0 %v4110
        %v4112 = vand.u32 %v413, 4294901760
        %v4113 = vsub.f32 %v413, %v4112
        %v4114 = vand.u32 %v4113, 4294901760
        %4115 = vmatmul.mubr.f32.gmra.mrb[0].mxu0 %v4114
        %v4116 = vpop.f32.mrb[0].mxu0
        %v4117 = vadd.f32 %v3976, %v4116
        %v4118 = vpop.f32.mrb[0].mxu0
        %v4119 = vadd.f32 %v3978, %v4118
        %4120 = vdwg.mxu0
        %v4121 = vand.u32 %v420, 4294901760
        %v4122 = vsub.f32 %v420, %v4121
        %v4123 = vand.u32 %v4122, 4294901760
        %4124 = vmatprep.subr.mxu0 %v4123
        %v4125 = vand.u32 %v419, 4294901760
        %v4126 = vsub.f32 %v419, %v4125
        %v4127 = vand.u32 %v4126, 4294901760
        %4128 = vmatpush1.msra.mxu0 %v4127
        %v4129 = vand.u32 %v428, 4294901760
        %v4130 = vsub.f32 %v428, %v4129
        %v4131 = vand.u32 %v4130, 4294901760
        %4132 = vmatprep.subr.mxu0 %v4131
        %v4133 = vand.u32 %v427, 4294901760
        %v4134 = vsub.f32 %v427, %v4133
        %v4135 = vand.u32 %v4134, 4294901760
        %4136 = vmatpush1.msra.mxu0 %v4135
        %v4137 = vand.u32 %v436, 4294901760
        %v4138 = vsub.f32 %v436, %v4137
        %v4139 = vand.u32 %v4138, 4294901760
        %4140 = vmatprep.subr.mxu0 %v4139
        %v4141 = vand.u32 %v435, 4294901760
        %v4142 = vsub.f32 %v435, %v4141
        %v4143 = vand.u32 %v4142, 4294901760
        %4144 = vmatpush1.msra.mxu0 %v4143
        %v4145 = vand.u32 %v444, 4294901760
        %v4146 = vsub.f32 %v444, %v4145
        %v4147 = vand.u32 %v4146, 4294901760
        %4148 = vmatprep.subr.mxu0 %v4147
        %v4149 = vand.u32 %v443, 4294901760
        %v4150 = vsub.f32 %v443, %v4149
        %v4151 = vand.u32 %v4150, 4294901760
        %4152 = vmatpush1.msra.mxu0 %v4151
        %v4153 = vand.u32 %v452, 4294901760
        %v4154 = vsub.f32 %v452, %v4153
        %v4155 = vand.u32 %v4154, 4294901760
        %4156 = vmatprep.subr.mxu0 %v4155
        %v4157 = vand.u32 %v451, 4294901760
        %v4158 = vsub.f32 %v451, %v4157
        %v4159 = vand.u32 %v4158, 4294901760
        %4160 = vmatpush1.msra.mxu0 %v4159
        %v4161 = vand.u32 %v460, 4294901760
        %v4162 = vsub.f32 %v460, %v4161
        %v4163 = vand.u32 %v4162, 4294901760
        %4164 = vmatprep.subr.mxu0 %v4163
        %v4165 = vand.u32 %v459, 4294901760
        %v4166 = vsub.f32 %v459, %v4165
        %v4167 = vand.u32 %v4166, 4294901760
        %4168 = vmatpush1.msra.mxu0 %v4167
        %v4169 = vand.u32 %v468, 4294901760
        %v4170 = vsub.f32 %v468, %v4169
        %v4171 = vand.u32 %v4170, 4294901760
        %4172 = vmatprep.subr.mxu0 %v4171
        %v4173 = vand.u32 %v467, 4294901760
        %v4174 = vsub.f32 %v467, %v4173
        %v4175 = vand.u32 %v4174, 4294901760
        %4176 = vmatpush1.msra.mxu0 %v4175
        %v4177 = vand.u32 %v476, 4294901760
        %v4178 = vsub.f32 %v476, %v4177
        %v4179 = vand.u32 %v4178, 4294901760
        %4180 = vmatprep.subr.mxu0 %v4179
        %v4181 = vand.u32 %v475, 4294901760
        %v4182 = vsub.f32 %v475, %v4181
        %v4183 = vand.u32 %v4182, 4294901760
        %4184 = vmatpush1.msra.mxu0 %v4183
        %v4185 = vand.u32 %v484, 4294901760
        %v4186 = vsub.f32 %v484, %v4185
        %v4187 = vand.u32 %v4186, 4294901760
        %4188 = vmatprep.subr.mxu0 %v4187
        %v4189 = vand.u32 %v483, 4294901760
        %v4190 = vsub.f32 %v483, %v4189
        %v4191 = vand.u32 %v4190, 4294901760
        %4192 = vmatpush1.msra.mxu0 %v4191
        %v4193 = vand.u32 %v492, 4294901760
        %v4194 = vsub.f32 %v492, %v4193
        %v4195 = vand.u32 %v4194, 4294901760
        %4196 = vmatprep.subr.mxu0 %v4195
        %v4197 = vand.u32 %v491, 4294901760
        %v4198 = vsub.f32 %v491, %v4197
        %v4199 = vand.u32 %v4198, 4294901760
        %4200 = vmatpush1.msra.mxu0 %v4199
        %v4201 = vand.u32 %v500, 4294901760
        %v4202 = vsub.f32 %v500, %v4201
        %v4203 = vand.u32 %v4202, 4294901760
        %4204 = vmatprep.subr.mxu0 %v4203
        %v4205 = vand.u32 %v499, 4294901760
        %v4206 = vsub.f32 %v499, %v4205
        %v4207 = vand.u32 %v4206, 4294901760
        %4208 = vmatpush1.msra.mxu0 %v4207
        %v4209 = vand.u32 %v508, 4294901760
        %v4210 = vsub.f32 %v508, %v4209
        %v4211 = vand.u32 %v4210, 4294901760
        %4212 = vmatprep.subr.mxu0 %v4211
        %v4213 = vand.u32 %v507, 4294901760
        %v4214 = vsub.f32 %v507, %v4213
        %v4215 = vand.u32 %v4214, 4294901760
        %4216 = vmatpush1.msra.mxu0 %v4215
        %v4217 = vand.u32 %v516, 4294901760
        %v4218 = vsub.f32 %v516, %v4217
        %v4219 = vand.u32 %v4218, 4294901760
        %4220 = vmatprep.subr.mxu0 %v4219
        %v4221 = vand.u32 %v515, 4294901760
        %v4222 = vsub.f32 %v515, %v4221
        %v4223 = vand.u32 %v4222, 4294901760
        %4224 = vmatpush1.msra.mxu0 %v4223
        %v4225 = vand.u32 %v524, 4294901760
        %v4226 = vsub.f32 %v524, %v4225
        %v4227 = vand.u32 %v4226, 4294901760
        %4228 = vmatprep.subr.mxu0 %v4227
        %v4229 = vand.u32 %v523, 4294901760
        %v4230 = vsub.f32 %v523, %v4229
        %v4231 = vand.u32 %v4230, 4294901760
        %4232 = vmatpush1.msra.mxu0 %v4231
        %v4233 = vand.u32 %v532, 4294901760
        %v4234 = vsub.f32 %v532, %v4233
        %v4235 = vand.u32 %v4234, 4294901760
        %4236 = vmatprep.subr.mxu0 %v4235
        %v4237 = vand.u32 %v531, 4294901760
        %v4238 = vsub.f32 %v531, %v4237
        %v4239 = vand.u32 %v4238, 4294901760
        %4240 = vmatpush1.msra.mxu0 %v4239
        %v4241 = vand.u32 %v540, 4294901760
        %v4242 = vsub.f32 %v540, %v4241
        %v4243 = vand.u32 %v4242, 4294901760
        %4244 = vmatprep.subr.mxu0 %v4243
        %v4245 = vand.u32 %v539, 4294901760
        %v4246 = vsub.f32 %v539, %v4245
        %v4247 = vand.u32 %v4246, 4294901760
        %4248 = vmatpush1.msra.mxu0 %v4247
        %v4249 = vand.u32 %v548, 4294901760
        %v4250 = vsub.f32 %v548, %v4249
        %v4251 = vand.u32 %v4250, 4294901760
        %4252 = vmatprep.subr.mxu0 %v4251
        %v4253 = vand.u32 %v547, 4294901760
        %v4254 = vsub.f32 %v547, %v4253
        %v4255 = vand.u32 %v4254, 4294901760
        %4256 = vmatpush1.msra.mxu0 %v4255
        %v4257 = vand.u32 %v556, 4294901760
        %v4258 = vsub.f32 %v556, %v4257
        %v4259 = vand.u32 %v4258, 4294901760
        %4260 = vmatprep.subr.mxu0 %v4259
        %v4261 = vand.u32 %v555, 4294901760
        %v4262 = vsub.f32 %v555, %v4261
        %v4263 = vand.u32 %v4262, 4294901760
        %4264 = vmatpush1.msra.mxu0 %v4263
        %v4265 = vand.u32 %v564, 4294901760
        %v4266 = vsub.f32 %v564, %v4265
        %v4267 = vand.u32 %v4266, 4294901760
        %4268 = vmatprep.subr.mxu0 %v4267
        %v4269 = vand.u32 %v563, 4294901760
        %v4270 = vsub.f32 %v563, %v4269
        %v4271 = vand.u32 %v4270, 4294901760
        %4272 = vmatpush1.msra.mxu0 %v4271
        %v4273 = vand.u32 %v572, 4294901760
        %v4274 = vsub.f32 %v572, %v4273
        %v4275 = vand.u32 %v4274, 4294901760
        %4276 = vmatprep.subr.mxu0 %v4275
        %v4277 = vand.u32 %v571, 4294901760
        %v4278 = vsub.f32 %v571, %v4277
        %v4279 = vand.u32 %v4278, 4294901760
        %4280 = vmatpush1.msra.mxu0 %v4279
        %v4281 = vand.u32 %v580, 4294901760
        %v4282 = vsub.f32 %v580, %v4281
        %v4283 = vand.u32 %v4282, 4294901760
        %4284 = vmatprep.subr.mxu0 %v4283
        %v4285 = vand.u32 %v579, 4294901760
        %v4286 = vsub.f32 %v579, %v4285
        %v4287 = vand.u32 %v4286, 4294901760
        %4288 = vmatpush1.msra.mxu0 %v4287
        %v4289 = vand.u32 %v588, 4294901760
        %v4290 = vsub.f32 %v588, %v4289
        %v4291 = vand.u32 %v4290, 4294901760
        %4292 = vmatprep.subr.mxu0 %v4291
        %v4293 = vand.u32 %v587, 4294901760
        %v4294 = vsub.f32 %v587, %v4293
        %v4295 = vand.u32 %v4294, 4294901760
        %4296 = vmatpush1.msra.mxu0 %v4295
        %v4297 = vand.u32 %v596, 4294901760
        %v4298 = vsub.f32 %v596, %v4297
        %v4299 = vand.u32 %v4298, 4294901760
        %4300 = vmatprep.subr.mxu0 %v4299
        %v4301 = vand.u32 %v595, 4294901760
        %v4302 = vsub.f32 %v595, %v4301
        %v4303 = vand.u32 %v4302, 4294901760
        %4304 = vmatpush1.msra.mxu0 %v4303
        %v4305 = vand.u32 %v604, 4294901760
        %v4306 = vsub.f32 %v604, %v4305
        %v4307 = vand.u32 %v4306, 4294901760
        %4308 = vmatprep.subr.mxu0 %v4307
        %v4309 = vand.u32 %v603, 4294901760
        %v4310 = vsub.f32 %v603, %v4309
        %v4311 = vand.u32 %v4310, 4294901760
        %4312 = vmatpush1.msra.mxu0 %v4311
        %v4313 = vand.u32 %v612, 4294901760
        %v4314 = vsub.f32 %v612, %v4313
        %v4315 = vand.u32 %v4314, 4294901760
        %4316 = vmatprep.subr.mxu0 %v4315
        %v4317 = vand.u32 %v611, 4294901760
        %v4318 = vsub.f32 %v611, %v4317
        %v4319 = vand.u32 %v4318, 4294901760
        %4320 = vmatpush1.msra.mxu0 %v4319
        %v4321 = vand.u32 %v620, 4294901760
        %v4322 = vsub.f32 %v620, %v4321
        %v4323 = vand.u32 %v4322, 4294901760
        %4324 = vmatprep.subr.mxu0 %v4323
        %v4325 = vand.u32 %v619, 4294901760
        %v4326 = vsub.f32 %v619, %v4325
        %v4327 = vand.u32 %v4326, 4294901760
        %4328 = vmatpush1.msra.mxu0 %v4327
        %v4329 = vand.u32 %v628, 4294901760
        %v4330 = vsub.f32 %v628, %v4329
        %v4331 = vand.u32 %v4330, 4294901760
        %4332 = vmatprep.subr.mxu0 %v4331
        %v4333 = vand.u32 %v627, 4294901760
        %v4334 = vsub.f32 %v627, %v4333
        %v4335 = vand.u32 %v4334, 4294901760
        %4336 = vmatpush1.msra.mxu0 %v4335
        %v4337 = vand.u32 %v636, 4294901760
        %v4338 = vsub.f32 %v636, %v4337
        %v4339 = vand.u32 %v4338, 4294901760
        %4340 = vmatprep.subr.mxu0 %v4339
        %v4341 = vand.u32 %v635, 4294901760
        %v4342 = vsub.f32 %v635, %v4341
        %v4343 = vand.u32 %v4342, 4294901760
        %4344 = vmatpush1.msra.mxu0 %v4343
        %v4345 = vand.u32 %v644, 4294901760
        %v4346 = vsub.f32 %v644, %v4345
        %v4347 = vand.u32 %v4346, 4294901760
        %4348 = vmatprep.subr.mxu0 %v4347
        %v4349 = vand.u32 %v643, 4294901760
        %v4350 = vsub.f32 %v643, %v4349
        %v4351 = vand.u32 %v4350, 4294901760
        %4352 = vmatpush1.msra.mxu0 %v4351
        %v4353 = vand.u32 %v652, 4294901760
        %v4354 = vsub.f32 %v652, %v4353
        %v4355 = vand.u32 %v4354, 4294901760
        %4356 = vmatprep.subr.mxu0 %v4355
        %v4357 = vand.u32 %v651, 4294901760
        %v4358 = vsub.f32 %v651, %v4357
        %v4359 = vand.u32 %v4358, 4294901760
        %4360 = vmatpush1.msra.mxu0 %v4359
        %v4361 = vand.u32 %v660, 4294901760
        %v4362 = vsub.f32 %v660, %v4361
        %v4363 = vand.u32 %v4362, 4294901760
        %4364 = vmatprep.subr.mxu0 %v4363
        %v4365 = vand.u32 %v659, 4294901760
        %v4366 = vsub.f32 %v659, %v4365
        %v4367 = vand.u32 %v4366, 4294901760
        %4368 = vmatpush1.msra.mxu0 %v4367
        %v4369 = vand.u32 %v668, 4294901760
        %v4370 = vsub.f32 %v668, %v4369
        %v4371 = vand.u32 %v4370, 4294901760
        %4372 = vmatprep.subr.mxu0 %v4371
        %v4373 = vand.u32 %v667, 4294901760
        %v4374 = vsub.f32 %v667, %v4373
        %v4375 = vand.u32 %v4374, 4294901760
        %4376 = vmatpush1.msra.mxu0 %v4375
        %v4377 = vand.u32 %v414, 4294901760
        %4378 = vmatprep.mubr.f32.mxu0 %v4377
        %v4379 = vand.u32 %v413, 4294901760
        %4380 = vmatmul.mubr.f32.gmra.mrb[0].mxu0 %v4379
        %v4381 = vpop.f32.mrb[0].mxu0
        %v4382 = vadd.f32 %v4117, %v4381
        %v4383 = vpop.f32.mrb[0].mxu0
        %v4384 = vadd.f32 %v4119, %v4383
        %4385 = vdwg.mxu0
        %v4386 = vand.u32 %v420, 4294901760
        %4387 = vmatprep.subr.mxu0 %v4386
        %v4388 = vand.u32 %v419, 4294901760
        %4389 = vmatpush1.msra.mxu0 %v4388
        %v4390 = vand.u32 %v428, 4294901760
        %4391 = vmatprep.subr.mxu0 %v4390
        %v4392 = vand.u32 %v427, 4294901760
        %4393 = vmatpush1.msra.mxu0 %v4392
        %v4394 = vand.u32 %v436, 4294901760
        %4395 = vmatprep.subr.mxu0 %v4394
        %v4396 = vand.u32 %v435, 4294901760
        %4397 = vmatpush1.msra.mxu0 %v4396
        %v4398 = vand.u32 %v444, 4294901760
        %4399 = vmatprep.subr.mxu0 %v4398
        %v4400 = vand.u32 %v443, 4294901760
        %4401 = vmatpush1.msra.mxu0 %v4400
        %v4402 = vand.u32 %v452, 4294901760
        %4403 = vmatprep.subr.mxu0 %v4402
        %v4404 = vand.u32 %v451, 4294901760
        %4405 = vmatpush1.msra.mxu0 %v4404
        %v4406 = vand.u32 %v460, 4294901760
        %4407 = vmatprep.subr.mxu0 %v4406
        %v4408 = vand.u32 %v459, 4294901760
        %4409 = vmatpush1.msra.mxu0 %v4408
        %v4410 = vand.u32 %v468, 4294901760
        %4411 = vmatprep.subr.mxu0 %v4410
        %v4412 = vand.u32 %v467, 4294901760
        %4413 = vmatpush1.msra.mxu0 %v4412
        %v4414 = vand.u32 %v476, 4294901760
        %4415 = vmatprep.subr.mxu0 %v4414
        %v4416 = vand.u32 %v475, 4294901760
        %4417 = vmatpush1.msra.mxu0 %v4416
        %v4418 = vand.u32 %v484, 4294901760
        %4419 = vmatprep.subr.mxu0 %v4418
        %v4420 = vand.u32 %v483, 4294901760
        %4421 = vmatpush1.msra.mxu0 %v4420
        %v4422 = vand.u32 %v492, 4294901760
        %4423 = vmatprep.subr.mxu0 %v4422
        %v4424 = vand.u32 %v491, 4294901760
        %4425 = vmatpush1.msra.mxu0 %v4424
        %v4426 = vand.u32 %v500, 4294901760
        %4427 = vmatprep.subr.mxu0 %v4426
        %v4428 = vand.u32 %v499, 4294901760
        %4429 = vmatpush1.msra.mxu0 %v4428
        %v4430 = vand.u32 %v508, 4294901760
        %4431 = vmatprep.subr.mxu0 %v4430
        %v4432 = vand.u32 %v507, 4294901760
        %4433 = vmatpush1.msra.mxu0 %v4432
        %v4434 = vand.u32 %v516, 4294901760
        %4435 = vmatprep.subr.mxu0 %v4434
        %v4436 = vand.u32 %v515, 4294901760
        %4437 = vmatpush1.msra.mxu0 %v4436
        %v4438 = vand.u32 %v524, 4294901760
        %4439 = vmatprep.subr.mxu0 %v4438
        %v4440 = vand.u32 %v523, 4294901760
        %4441 = vmatpush1.msra.mxu0 %v4440
        %v4442 = vand.u32 %v532, 4294901760
        %4443 = vmatprep.subr.mxu0 %v4442
        %v4444 = vand.u32 %v531, 4294901760
        %4445 = vmatpush1.msra.mxu0 %v4444
        %v4446 = vand.u32 %v540, 4294901760
        %4447 = vmatprep.subr.mxu0 %v4446
        %v4448 = vand.u32 %v539, 4294901760
        %4449 = vmatpush1.msra.mxu0 %v4448
        %v4450 = vand.u32 %v548, 4294901760
        %4451 = vmatprep.subr.mxu0 %v4450
        %v4452 = vand.u32 %v547, 4294901760
        %4453 = vmatpush1.msra.mxu0 %v4452
        %v4454 = vand.u32 %v556, 4294901760
        %4455 = vmatprep.subr.mxu0 %v4454
        %v4456 = vand.u32 %v555, 4294901760
        %4457 = vmatpush1.msra.mxu0 %v4456
        %v4458 = vand.u32 %v564, 4294901760
        %4459 = vmatprep.subr.mxu0 %v4458
        %v4460 = vand.u32 %v563, 4294901760
        %4461 = vmatpush1.msra.mxu0 %v4460
        %v4462 = vand.u32 %v572, 4294901760
        %4463 = vmatprep.subr.mxu0 %v4462
        %v4464 = vand.u32 %v571, 4294901760
        %4465 = vmatpush1.msra.mxu0 %v4464
        %v4466 = vand.u32 %v580, 4294901760
        %4467 = vmatprep.subr.mxu0 %v4466
        %v4468 = vand.u32 %v579, 4294901760
        %4469 = vmatpush1.msra.mxu0 %v4468
        %v4470 = vand.u32 %v588, 4294901760
        %4471 = vmatprep.subr.mxu0 %v4470
        %v4472 = vand.u32 %v587, 4294901760
        %4473 = vmatpush1.msra.mxu0 %v4472
        %v4474 = vand.u32 %v596, 4294901760
        %4475 = vmatprep.subr.mxu0 %v4474
        %v4476 = vand.u32 %v595, 4294901760
        %4477 = vmatpush1.msra.mxu0 %v4476
        %v4478 = vand.u32 %v604, 4294901760
        %4479 = vmatprep.subr.mxu0 %v4478
        %v4480 = vand.u32 %v603, 4294901760
        %4481 = vmatpush1.msra.mxu0 %v4480
        %v4482 = vand.u32 %v612, 4294901760
        %4483 = vmatprep.subr.mxu0 %v4482
        %v4484 = vand.u32 %v611, 4294901760
        %4485 = vmatpush1.msra.mxu0 %v4484
        %v4486 = vand.u32 %v620, 4294901760
        %4487 = vmatprep.subr.mxu0 %v4486
        %v4488 = vand.u32 %v619, 4294901760
        %4489 = vmatpush1.msra.mxu0 %v4488
        %v4490 = vand.u32 %v628, 4294901760
        %4491 = vmatprep.subr.mxu0 %v4490
        %v4492 = vand.u32 %v627, 4294901760
        %4493 = vmatpush1.msra.mxu0 %v4492
        %v4494 = vand.u32 %v636, 4294901760
        %4495 = vmatprep.subr.mxu0 %v4494
        %v4496 = vand.u32 %v635, 4294901760
        %4497 = vmatpush1.msra.mxu0 %v4496
        %v4498 = vand.u32 %v644, 4294901760
        %4499 = vmatprep.subr.mxu0 %v4498
        %v4500 = vand.u32 %v643, 4294901760
        %4501 = vmatpush1.msra.mxu0 %v4500
        %v4502 = vand.u32 %v652, 4294901760
        %4503 = vmatprep.subr.mxu0 %v4502
        %v4504 = vand.u32 %v651, 4294901760
        %4505 = vmatpush1.msra.mxu0 %v4504
        %v4506 = vand.u32 %v660, 4294901760
        %4507 = vmatprep.subr.mxu0 %v4506
        %v4508 = vand.u32 %v659, 4294901760
        %4509 = vmatpush1.msra.mxu0 %v4508
        %v4510 = vand.u32 %v668, 4294901760
        %4511 = vmatprep.subr.mxu0 %v4510
        %v4512 = vand.u32 %v667, 4294901760
        %4513 = vmatpush1.msra.mxu0 %v4512
        %v4514 = vand.u32 %v414, 4294901760
        %4515 = vmatprep.mubr.f32.mxu0 %v4514
        %v4516 = vand.u32 %v413, 4294901760
        %4517 = vmatmul.mubr.f32.gmra.mrb[0].mxu0 %v4516
        %v4518 = vpop.f32.mrb[0].mxu0
        %v4519 = vadd.f32 %v4382, %v4518
        %v4520 = vpop.f32.mrb[0].mxu0
        %v4521 = vadd.f32 %v4384, %v4520
        %4522 = vdwg.mxu0
        %v4523 = vand.u32 %v422, 4294901760
        %4524 = vmatprep.subr.mxu0 %v4523
        %v4525 = vand.u32 %v421, 4294901760
        %4526 = vmatpush1.msra.mxu0 %v4525
        %v4527 = vand.u32 %v430, 4294901760
        %4528 = vmatprep.subr.mxu0 %v4527
        %v4529 = vand.u32 %v429, 4294901760
        %4530 = vmatpush1.msra.mxu0 %v4529
        %v4531 = vand.u32 %v438, 4294901760
        %4532 = vmatprep.subr.mxu0 %v4531
        %v4533 = vand.u32 %v437, 4294901760
        %4534 = vmatpush1.msra.mxu0 %v4533
        %v4535 = vand.u32 %v446, 4294901760
        %4536 = vmatprep.subr.mxu0 %v4535
        %v4537 = vand.u32 %v445, 4294901760
        %4538 = vmatpush1.msra.mxu0 %v4537
        %v4539 = vand.u32 %v454, 4294901760
        %4540 = vmatprep.subr.mxu0 %v4539
        %v4541 = vand.u32 %v453, 4294901760
        %4542 = vmatpush1.msra.mxu0 %v4541
        %v4543 = vand.u32 %v462, 4294901760
        %4544 = vmatprep.subr.mxu0 %v4543
        %v4545 = vand.u32 %v461, 4294901760
        %4546 = vmatpush1.msra.mxu0 %v4545
        %v4547 = vand.u32 %v470, 4294901760
        %4548 = vmatprep.subr.mxu0 %v4547
        %v4549 = vand.u32 %v469, 4294901760
        %4550 = vmatpush1.msra.mxu0 %v4549
        %v4551 = vand.u32 %v478, 4294901760
        %4552 = vmatprep.subr.mxu0 %v4551
        %v4553 = vand.u32 %v477, 4294901760
        %4554 = vmatpush1.msra.mxu0 %v4553
        %v4555 = vand.u32 %v486, 4294901760
        %4556 = vmatprep.subr.mxu0 %v4555
        %v4557 = vand.u32 %v485, 4294901760
        %4558 = vmatpush1.msra.mxu0 %v4557
        %v4559 = vand.u32 %v494, 4294901760
        %4560 = vmatprep.subr.mxu0 %v4559
        %v4561 = vand.u32 %v493, 4294901760
        %4562 = vmatpush1.msra.mxu0 %v4561
        %v4563 = vand.u32 %v502, 4294901760
        %4564 = vmatprep.subr.mxu0 %v4563
        %v4565 = vand.u32 %v501, 4294901760
        %4566 = vmatpush1.msra.mxu0 %v4565
        %v4567 = vand.u32 %v510, 4294901760
        %4568 = vmatprep.subr.mxu0 %v4567
        %v4569 = vand.u32 %v509, 4294901760
        %4570 = vmatpush1.msra.mxu0 %v4569
        %v4571 = vand.u32 %v518, 4294901760
        %4572 = vmatprep.subr.mxu0 %v4571
        %v4573 = vand.u32 %v517, 4294901760
        %4574 = vmatpush1.msra.mxu0 %v4573
        %v4575 = vand.u32 %v526, 4294901760
        %4576 = vmatprep.subr.mxu0 %v4575
        %v4577 = vand.u32 %v525, 4294901760
        %4578 = vmatpush1.msra.mxu0 %v4577
        %v4579 = vand.u32 %v534, 4294901760
        %4580 = vmatprep.subr.mxu0 %v4579
        %v4581 = vand.u32 %v533, 4294901760
        %4582 = vmatpush1.msra.mxu0 %v4581
        %v4583 = vand.u32 %v542, 4294901760
        %4584 = vmatprep.subr.mxu0 %v4583
        %v4585 = vand.u32 %v541, 4294901760
        %4586 = vmatpush1.msra.mxu0 %v4585
        %v4587 = vand.u32 %v550, 4294901760
        %4588 = vmatprep.subr.mxu0 %v4587
        %v4589 = vand.u32 %v549, 4294901760
        %4590 = vmatpush1.msra.mxu0 %v4589
        %v4591 = vand.u32 %v558, 4294901760
        %4592 = vmatprep.subr.mxu0 %v4591
        %v4593 = vand.u32 %v557, 4294901760
        %4594 = vmatpush1.msra.mxu0 %v4593
        %v4595 = vand.u32 %v566, 4294901760
        %4596 = vmatprep.subr.mxu0 %v4595
        %v4597 = vand.u32 %v565, 4294901760
        %4598 = vmatpush1.msra.mxu0 %v4597
        %v4599 = vand.u32 %v574, 4294901760
        %4600 = vmatprep.subr.mxu0 %v4599
        %v4601 = vand.u32 %v573, 4294901760
        %4602 = vmatpush1.msra.mxu0 %v4601
        %v4603 = vand.u32 %v582, 4294901760
        %4604 = vmatprep.subr.mxu0 %v4603
        %v4605 = vand.u32 %v581, 4294901760
        %4606 = vmatpush1.msra.mxu0 %v4605
        %v4607 = vand.u32 %v590, 4294901760
        %4608 = vmatprep.subr.mxu0 %v4607
        %v4609 = vand.u32 %v589, 4294901760
        %4610 = vmatpush1.msra.mxu0 %v4609
        %v4611 = vand.u32 %v598, 4294901760
        %4612 = vmatprep.subr.mxu0 %v4611
        %v4613 = vand.u32 %v597, 4294901760
        %4614 = vmatpush1.msra.mxu0 %v4613
        %v4615 = vand.u32 %v606, 4294901760
        %4616 = vmatprep.subr.mxu0 %v4615
        %v4617 = vand.u32 %v605, 4294901760
        %4618 = vmatpush1.msra.mxu0 %v4617
        %v4619 = vand.u32 %v614, 4294901760
        %4620 = vmatprep.subr.mxu0 %v4619
        %v4621 = vand.u32 %v613, 4294901760
        %4622 = vmatpush1.msra.mxu0 %v4621
        %v4623 = vand.u32 %v622, 4294901760
        %4624 = vmatprep.subr.mxu0 %v4623
        %v4625 = vand.u32 %v621, 4294901760
        %4626 = vmatpush1.msra.mxu0 %v4625
        %v4627 = vand.u32 %v630, 4294901760
        %4628 = vmatprep.subr.mxu0 %v4627
        %v4629 = vand.u32 %v629, 4294901760
        %4630 = vmatpush1.msra.mxu0 %v4629
        %v4631 = vand.u32 %v638, 4294901760
        %4632 = vmatprep.subr.mxu0 %v4631
        %v4633 = vand.u32 %v637, 4294901760
        %4634 = vmatpush1.msra.mxu0 %v4633
        %v4635 = vand.u32 %v646, 4294901760
        %4636 = vmatprep.subr.mxu0 %v4635
        %v4637 = vand.u32 %v645, 4294901760
        %4638 = vmatpush1.msra.mxu0 %v4637
        %v4639 = vand.u32 %v654, 4294901760
        %4640 = vmatprep.subr.mxu0 %v4639
        %v4641 = vand.u32 %v653, 4294901760
        %4642 = vmatpush1.msra.mxu0 %v4641
        %v4643 = vand.u32 %v662, 4294901760
        %4644 = vmatprep.subr.mxu0 %v4643
        %v4645 = vand.u32 %v661, 4294901760
        %4646 = vmatpush1.msra.mxu0 %v4645
        %v4647 = vand.u32 %v670, 4294901760
        %4648 = vmatprep.subr.mxu0 %v4647
        %v4649 = vand.u32 %v669, 4294901760
        %4650 = vmatpush1.msra.mxu0 %v4649
        %v4651 = vand.u32 %v414, 4294901760
        %v4652 = vsub.f32 %v414, %v4651
        %v4653 = vand.u32 %v4652, 4294901760
        %v4654 = vsub.f32 %v4652, %v4653
        %v4655 = vand.u32 %v4654, 4294901760
        %4656 = vmatprep.mubr.f32.mxu0 %v4655
        %v4657 = vand.u32 %v413, 4294901760
        %v4658 = vsub.f32 %v413, %v4657
        %v4659 = vand.u32 %v4658, 4294901760
        %v4660 = vsub.f32 %v4658, %v4659
        %v4661 = vand.u32 %v4660, 4294901760
        %4662 = vmatmul.mubr.f32.gmra.mrb[0].mxu0 %v4661
        %v4663 = vpop.f32.mrb[0].mxu0
        %v4664 = vadd.f32 0.0, %v4663
        %v4665 = vpop.f32.mrb[0].mxu0
        %v4666 = vadd.f32 0.0, %v4665
        %4667 = vdwg.mxu0
        %v4668 = vand.u32 %v422, 4294901760
        %v4669 = vsub.f32 %v422, %v4668
        %v4670 = vand.u32 %v4669, 4294901760
        %v4671 = vsub.f32 %v4669, %v4670
        %v4672 = vand.u32 %v4671, 4294901760
        %4673 = vmatprep.subr.mxu0 %v4672
        %v4674 = vand.u32 %v421, 4294901760
        %v4675 = vsub.f32 %v421, %v4674
        %v4676 = vand.u32 %v4675, 4294901760
        %v4677 = vsub.f32 %v4675, %v4676
        %v4678 = vand.u32 %v4677, 4294901760
        %4679 = vmatpush1.msra.mxu0 %v4678
        %v4680 = vand.u32 %v430, 4294901760
        %v4681 = vsub.f32 %v430, %v4680
        %v4682 = vand.u32 %v4681, 4294901760
        %v4683 = vsub.f32 %v4681, %v4682
        %v4684 = vand.u32 %v4683, 4294901760
        %4685 = vmatprep.subr.mxu0 %v4684
        %v4686 = vand.u32 %v429, 4294901760
        %v4687 = vsub.f32 %v429, %v4686
        %v4688 = vand.u32 %v4687, 4294901760
        %v4689 = vsub.f32 %v4687, %v4688
        %v4690 = vand.u32 %v4689, 4294901760
        %4691 = vmatpush1.msra.mxu0 %v4690
        %v4692 = vand.u32 %v438, 4294901760
        %v4693 = vsub.f32 %v438, %v4692
        %v4694 = vand.u32 %v4693, 4294901760
        %v4695 = vsub.f32 %v4693, %v4694
        %v4696 = vand.u32 %v4695, 4294901760
        %4697 = vmatprep.subr.mxu0 %v4696
        %v4698 = vand.u32 %v437, 4294901760
        %v4699 = vsub.f32 %v437, %v4698
        %v4700 = vand.u32 %v4699, 4294901760
        %v4701 = vsub.f32 %v4699, %v4700
        %v4702 = vand.u32 %v4701, 4294901760
        %4703 = vmatpush1.msra.mxu0 %v4702
        %v4704 = vand.u32 %v446, 4294901760
        %v4705 = vsub.f32 %v446, %v4704
        %v4706 = vand.u32 %v4705, 4294901760
        %v4707 = vsub.f32 %v4705, %v4706
        %v4708 = vand.u32 %v4707, 4294901760
        %4709 = vmatprep.subr.mxu0 %v4708
        %v4710 = vand.u32 %v445, 4294901760
        %v4711 = vsub.f32 %v445, %v4710
        %v4712 = vand.u32 %v4711, 4294901760
        %v4713 = vsub.f32 %v4711, %v4712
        %v4714 = vand.u32 %v4713, 4294901760
        %4715 = vmatpush1.msra.mxu0 %v4714
        %v4716 = vand.u32 %v454, 4294901760
        %v4717 = vsub.f32 %v454, %v4716
        %v4718 = vand.u32 %v4717, 4294901760
        %v4719 = vsub.f32 %v4717, %v4718
        %v4720 = vand.u32 %v4719, 4294901760
        %4721 = vmatprep.subr.mxu0 %v4720
        %v4722 = vand.u32 %v453, 4294901760
        %v4723 = vsub.f32 %v453, %v4722
        %v4724 = vand.u32 %v4723, 4294901760
        %v4725 = vsub.f32 %v4723, %v4724
        %v4726 = vand.u32 %v4725, 4294901760
        %4727 = vmatpush1.msra.mxu0 %v4726
        %v4728 = vand.u32 %v462, 4294901760
        %v4729 = vsub.f32 %v462, %v4728
        %v4730 = vand.u32 %v4729, 4294901760
        %v4731 = vsub.f32 %v4729, %v4730
        %v4732 = vand.u32 %v4731, 4294901760
        %4733 = vmatprep.subr.mxu0 %v4732
        %v4734 = vand.u32 %v461, 4294901760
        %v4735 = vsub.f32 %v461, %v4734
        %v4736 = vand.u32 %v4735, 4294901760
        %v4737 = vsub.f32 %v4735, %v4736
        %v4738 = vand.u32 %v4737, 4294901760
        %4739 = vmatpush1.msra.mxu0 %v4738
        %v4740 = vand.u32 %v470, 4294901760
        %v4741 = vsub.f32 %v470, %v4740
        %v4742 = vand.u32 %v4741, 4294901760
        %v4743 = vsub.f32 %v4741, %v4742
        %v4744 = vand.u32 %v4743, 4294901760
        %4745 = vmatprep.subr.mxu0 %v4744
        %v4746 = vand.u32 %v469, 4294901760
        %v4747 = vsub.f32 %v469, %v4746
        %v4748 = vand.u32 %v4747, 4294901760
        %v4749 = vsub.f32 %v4747, %v4748
        %v4750 = vand.u32 %v4749, 4294901760
        %4751 = vmatpush1.msra.mxu0 %v4750
        %v4752 = vand.u32 %v478, 4294901760
        %v4753 = vsub.f32 %v478, %v4752
        %v4754 = vand.u32 %v4753, 4294901760
        %v4755 = vsub.f32 %v4753, %v4754
        %v4756 = vand.u32 %v4755, 4294901760
        %4757 = vmatprep.subr.mxu0 %v4756
        %v4758 = vand.u32 %v477, 4294901760
        %v4759 = vsub.f32 %v477, %v4758
        %v4760 = vand.u32 %v4759, 4294901760
        %v4761 = vsub.f32 %v4759, %v4760
        %v4762 = vand.u32 %v4761, 4294901760
        %4763 = vmatpush1.msra.mxu0 %v4762
        %v4764 = vand.u32 %v486, 4294901760
        %v4765 = vsub.f32 %v486, %v4764
        %v4766 = vand.u32 %v4765, 4294901760
        %v4767 = vsub.f32 %v4765, %v4766
        %v4768 = vand.u32 %v4767, 4294901760
        %4769 = vmatprep.subr.mxu0 %v4768
        %v4770 = vand.u32 %v485, 4294901760
        %v4771 = vsub.f32 %v485, %v4770
        %v4772 = vand.u32 %v4771, 4294901760
        %v4773 = vsub.f32 %v4771, %v4772
        %v4774 = vand.u32 %v4773, 4294901760
        %4775 = vmatpush1.msra.mxu0 %v4774
        %v4776 = vand.u32 %v494, 4294901760
        %v4777 = vsub.f32 %v494, %v4776
        %v4778 = vand.u32 %v4777, 4294901760
        %v4779 = vsub.f32 %v4777, %v4778
        %v4780 = vand.u32 %v4779, 4294901760
        %4781 = vmatprep.subr.mxu0 %v4780
        %v4782 = vand.u32 %v493, 4294901760
        %v4783 = vsub.f32 %v493, %v4782
        %v4784 = vand.u32 %v4783, 4294901760
        %v4785 = vsub.f32 %v4783, %v4784
        %v4786 = vand.u32 %v4785, 4294901760
        %4787 = vmatpush1.msra.mxu0 %v4786
        %v4788 = vand.u32 %v502, 4294901760
        %v4789 = vsub.f32 %v502, %v4788
        %v4790 = vand.u32 %v4789, 4294901760
        %v4791 = vsub.f32 %v4789, %v4790
        %v4792 = vand.u32 %v4791, 4294901760
        %4793 = vmatprep.subr.mxu0 %v4792
        %v4794 = vand.u32 %v501, 4294901760
        %v4795 = vsub.f32 %v501, %v4794
        %v4796 = vand.u32 %v4795, 4294901760
        %v4797 = vsub.f32 %v4795, %v4796
        %v4798 = vand.u32 %v4797, 4294901760
        %4799 = vmatpush1.msra.mxu0 %v4798
        %v4800 = vand.u32 %v510, 4294901760
        %v4801 = vsub.f32 %v510, %v4800
        %v4802 = vand.u32 %v4801, 4294901760
        %v4803 = vsub.f32 %v4801, %v4802
        %v4804 = vand.u32 %v4803, 4294901760
        %4805 = vmatprep.subr.mxu0 %v4804
        %v4806 = vand.u32 %v509, 4294901760
        %v4807 = vsub.f32 %v509, %v4806
        %v4808 = vand.u32 %v4807, 4294901760
        %v4809 = vsub.f32 %v4807, %v4808
        %v4810 = vand.u32 %v4809, 4294901760
        %4811 = vmatpush1.msra.mxu0 %v4810
        %v4812 = vand.u32 %v518, 4294901760
        %v4813 = vsub.f32 %v518, %v4812
        %v4814 = vand.u32 %v4813, 4294901760
        %v4815 = vsub.f32 %v4813, %v4814
        %v4816 = vand.u32 %v4815, 4294901760
        %4817 = vmatprep.subr.mxu0 %v4816
        %v4818 = vand.u32 %v517, 4294901760
        %v4819 = vsub.f32 %v517, %v4818
        %v4820 = vand.u32 %v4819, 4294901760
        %v4821 = vsub.f32 %v4819, %v4820
        %v4822 = vand.u32 %v4821, 4294901760
        %4823 = vmatpush1.msra.mxu0 %v4822
        %v4824 = vand.u32 %v526, 4294901760
        %v4825 = vsub.f32 %v526, %v4824
        %v4826 = vand.u32 %v4825, 4294901760
        %v4827 = vsub.f32 %v4825, %v4826
        %v4828 = vand.u32 %v4827, 4294901760
        %4829 = vmatprep.subr.mxu0 %v4828
        %v4830 = vand.u32 %v525, 4294901760
        %v4831 = vsub.f32 %v525, %v4830
        %v4832 = vand.u32 %v4831, 4294901760
        %v4833 = vsub.f32 %v4831, %v4832
        %v4834 = vand.u32 %v4833, 4294901760
        %4835 = vmatpush1.msra.mxu0 %v4834
        %v4836 = vand.u32 %v534, 4294901760
        %v4837 = vsub.f32 %v534, %v4836
        %v4838 = vand.u32 %v4837, 4294901760
        %v4839 = vsub.f32 %v4837, %v4838
        %v4840 = vand.u32 %v4839, 4294901760
        %4841 = vmatprep.subr.mxu0 %v4840
        %v4842 = vand.u32 %v533, 4294901760
        %v4843 = vsub.f32 %v533, %v4842
        %v4844 = vand.u32 %v4843, 4294901760
        %v4845 = vsub.f32 %v4843, %v4844
        %v4846 = vand.u32 %v4845, 4294901760
        %4847 = vmatpush1.msra.mxu0 %v4846
        %v4848 = vand.u32 %v542, 4294901760
        %v4849 = vsub.f32 %v542, %v4848
        %v4850 = vand.u32 %v4849, 4294901760
        %v4851 = vsub.f32 %v4849, %v4850
        %v4852 = vand.u32 %v4851, 4294901760
        %4853 = vmatprep.subr.mxu0 %v4852
        %v4854 = vand.u32 %v541, 4294901760
        %v4855 = vsub.f32 %v541, %v4854
        %v4856 = vand.u32 %v4855, 4294901760
        %v4857 = vsub.f32 %v4855, %v4856
        %v4858 = vand.u32 %v4857, 4294901760
        %4859 = vmatpush1.msra.mxu0 %v4858
        %v4860 = vand.u32 %v550, 4294901760
        %v4861 = vsub.f32 %v550, %v4860
        %v4862 = vand.u32 %v4861, 4294901760
        %v4863 = vsub.f32 %v4861, %v4862
        %v4864 = vand.u32 %v4863, 4294901760
        %4865 = vmatprep.subr.mxu0 %v4864
        %v4866 = vand.u32 %v549, 4294901760
        %v4867 = vsub.f32 %v549, %v4866
        %v4868 = vand.u32 %v4867, 4294901760
        %v4869 = vsub.f32 %v4867, %v4868
        %v4870 = vand.u32 %v4869, 4294901760
        %4871 = vmatpush1.msra.mxu0 %v4870
        %v4872 = vand.u32 %v558, 4294901760
        %v4873 = vsub.f32 %v558, %v4872
        %v4874 = vand.u32 %v4873, 4294901760
        %v4875 = vsub.f32 %v4873, %v4874
        %v4876 = vand.u32 %v4875, 4294901760
        %4877 = vmatprep.subr.mxu0 %v4876
        %v4878 = vand.u32 %v557, 4294901760
        %v4879 = vsub.f32 %v557, %v4878
        %v4880 = vand.u32 %v4879, 4294901760
        %v4881 = vsub.f32 %v4879, %v4880
        %v4882 = vand.u32 %v4881, 4294901760
        %4883 = vmatpush1.msra.mxu0 %v4882
        %v4884 = vand.u32 %v566, 4294901760
        %v4885 = vsub.f32 %v566, %v4884
        %v4886 = vand.u32 %v4885, 4294901760
        %v4887 = vsub.f32 %v4885, %v4886
        %v4888 = vand.u32 %v4887, 4294901760
        %4889 = vmatprep.subr.mxu0 %v4888
        %v4890 = vand.u32 %v565, 4294901760
        %v4891 = vsub.f32 %v565, %v4890
        %v4892 = vand.u32 %v4891, 4294901760
        %v4893 = vsub.f32 %v4891, %v4892
        %v4894 = vand.u32 %v4893, 4294901760
        %4895 = vmatpush1.msra.mxu0 %v4894
        %v4896 = vand.u32 %v574, 4294901760
        %v4897 = vsub.f32 %v574, %v4896
        %v4898 = vand.u32 %v4897, 4294901760
        %v4899 = vsub.f32 %v4897, %v4898
        %v4900 = vand.u32 %v4899, 4294901760
        %4901 = vmatprep.subr.mxu0 %v4900
        %v4902 = vand.u32 %v573, 4294901760
        %v4903 = vsub.f32 %v573, %v4902
        %v4904 = vand.u32 %v4903, 4294901760
        %v4905 = vsub.f32 %v4903, %v4904
        %v4906 = vand.u32 %v4905, 4294901760
        %4907 = vmatpush1.msra.mxu0 %v4906
        %v4908 = vand.u32 %v582, 4294901760
        %v4909 = vsub.f32 %v582, %v4908
        %v4910 = vand.u32 %v4909, 4294901760
        %v4911 = vsub.f32 %v4909, %v4910
        %v4912 = vand.u32 %v4911, 4294901760
        %4913 = vmatprep.subr.mxu0 %v4912
        %v4914 = vand.u32 %v581, 4294901760
        %v4915 = vsub.f32 %v581, %v4914
        %v4916 = vand.u32 %v4915, 4294901760
        %v4917 = vsub.f32 %v4915, %v4916
        %v4918 = vand.u32 %v4917, 4294901760
        %4919 = vmatpush1.msra.mxu0 %v4918
        %v4920 = vand.u32 %v590, 4294901760
        %v4921 = vsub.f32 %v590, %v4920
        %v4922 = vand.u32 %v4921, 4294901760
        %v4923 = vsub.f32 %v4921, %v4922
        %v4924 = vand.u32 %v4923, 4294901760
        %4925 = vmatprep.subr.mxu0 %v4924
        %v4926 = vand.u32 %v589, 4294901760
        %v4927 = vsub.f32 %v589, %v4926
        %v4928 = vand.u32 %v4927, 4294901760
        %v4929 = vsub.f32 %v4927, %v4928
        %v4930 = vand.u32 %v4929, 4294901760
        %4931 = vmatpush1.msra.mxu0 %v4930
        %v4932 = vand.u32 %v598, 4294901760
        %v4933 = vsub.f32 %v598, %v4932
        %v4934 = vand.u32 %v4933, 4294901760
        %v4935 = vsub.f32 %v4933, %v4934
        %v4936 = vand.u32 %v4935, 4294901760
        %4937 = vmatprep.subr.mxu0 %v4936
        %v4938 = vand.u32 %v597, 4294901760
        %v4939 = vsub.f32 %v597, %v4938
        %v4940 = vand.u32 %v4939, 4294901760
        %v4941 = vsub.f32 %v4939, %v4940
        %v4942 = vand.u32 %v4941, 4294901760
        %4943 = vmatpush1.msra.mxu0 %v4942
        %v4944 = vand.u32 %v606, 4294901760
        %v4945 = vsub.f32 %v606, %v4944
        %v4946 = vand.u32 %v4945, 4294901760
        %v4947 = vsub.f32 %v4945, %v4946
        %v4948 = vand.u32 %v4947, 4294901760
        %4949 = vmatprep.subr.mxu0 %v4948
        %v4950 = vand.u32 %v605, 4294901760
        %v4951 = vsub.f32 %v605, %v4950
        %v4952 = vand.u32 %v4951, 4294901760
        %v4953 = vsub.f32 %v4951, %v4952
        %v4954 = vand.u32 %v4953, 4294901760
        %4955 = vmatpush1.msra.mxu0 %v4954
        %v4956 = vand.u32 %v614, 4294901760
        %v4957 = vsub.f32 %v614, %v4956
        %v4958 = vand.u32 %v4957, 4294901760
        %v4959 = vsub.f32 %v4957, %v4958
        %v4960 = vand.u32 %v4959, 4294901760
        %4961 = vmatprep.subr.mxu0 %v4960
        %v4962 = vand.u32 %v613, 4294901760
        %v4963 = vsub.f32 %v613, %v4962
        %v4964 = vand.u32 %v4963, 4294901760
        %v4965 = vsub.f32 %v4963, %v4964
        %v4966 = vand.u32 %v4965, 4294901760
        %4967 = vmatpush1.msra.mxu0 %v4966
        %v4968 = vand.u32 %v622, 4294901760
        %v4969 = vsub.f32 %v622, %v4968
        %v4970 = vand.u32 %v4969, 4294901760
        %v4971 = vsub.f32 %v4969, %v4970
        %v4972 = vand.u32 %v4971, 4294901760
        %4973 = vmatprep.subr.mxu0 %v4972
        %v4974 = vand.u32 %v621, 4294901760
        %v4975 = vsub.f32 %v621, %v4974
        %v4976 = vand.u32 %v4975, 4294901760
        %v4977 = vsub.f32 %v4975, %v4976
        %v4978 = vand.u32 %v4977, 4294901760
        %4979 = vmatpush1.msra.mxu0 %v4978
        %v4980 = vand.u32 %v630, 4294901760
        %v4981 = vsub.f32 %v630, %v4980
        %v4982 = vand.u32 %v4981, 4294901760
        %v4983 = vsub.f32 %v4981, %v4982
        %v4984 = vand.u32 %v4983, 4294901760
        %4985 = vmatprep.subr.mxu0 %v4984
        %v4986 = vand.u32 %v629, 4294901760
        %v4987 = vsub.f32 %v629, %v4986
        %v4988 = vand.u32 %v4987, 4294901760
        %v4989 = vsub.f32 %v4987, %v4988
        %v4990 = vand.u32 %v4989, 4294901760
        %4991 = vmatpush1.msra.mxu0 %v4990
        %v4992 = vand.u32 %v638, 4294901760
        %v4993 = vsub.f32 %v638, %v4992
        %v4994 = vand.u32 %v4993, 4294901760
        %v4995 = vsub.f32 %v4993, %v4994
        %v4996 = vand.u32 %v4995, 4294901760
        %4997 = vmatprep.subr.mxu0 %v4996
        %v4998 = vand.u32 %v637, 4294901760
        %v4999 = vsub.f32 %v637, %v4998
        %v5000 = vand.u32 %v4999, 4294901760
        %v5001 = vsub.f32 %v4999, %v5000
        %v5002 = vand.u32 %v5001, 4294901760
        %5003 = vmatpush1.msra.mxu0 %v5002
        %v5004 = vand.u32 %v646, 4294901760
        %v5005 = vsub.f32 %v646, %v5004
        %v5006 = vand.u32 %v5005, 4294901760
        %v5007 = vsub.f32 %v5005, %v5006
        %v5008 = vand.u32 %v5007, 4294901760
        %5009 = vmatprep.subr.mxu0 %v5008
        %v5010 = vand.u32 %v645, 4294901760
        %v5011 = vsub.f32 %v645, %v5010
        %v5012 = vand.u32 %v5011, 4294901760
        %v5013 = vsub.f32 %v5011, %v5012
        %v5014 = vand.u32 %v5013, 4294901760
        %5015 = vmatpush1.msra.mxu0 %v5014
        %v5016 = vand.u32 %v654, 4294901760
        %v5017 = vsub.f32 %v654, %v5016
        %v5018 = vand.u32 %v5017, 4294901760
        %v5019 = vsub.f32 %v5017, %v5018
        %v5020 = vand.u32 %v5019, 4294901760
        %5021 = vmatprep.subr.mxu0 %v5020
        %v5022 = vand.u32 %v653, 4294901760
        %v5023 = vsub.f32 %v653, %v5022
        %v5024 = vand.u32 %v5023, 4294901760
        %v5025 = vsub.f32 %v5023, %v5024
        %v5026 = vand.u32 %v5025, 4294901760
        %5027 = vmatpush1.msra.mxu0 %v5026
        %v5028 = vand.u32 %v662, 4294901760
        %v5029 = vsub.f32 %v662, %v5028
        %v5030 = vand.u32 %v5029, 4294901760
        %v5031 = vsub.f32 %v5029, %v5030
        %v5032 = vand.u32 %v5031, 4294901760
        %5033 = vmatprep.subr.mxu0 %v5032
        %v5034 = vand.u32 %v661, 4294901760
        %v5035 = vsub.f32 %v661, %v5034
        %v5036 = vand.u32 %v5035, 4294901760
        %v5037 = vsub.f32 %v5035, %v5036
        %v5038 = vand.u32 %v5037, 4294901760
        %5039 = vmatpush1.msra.mxu0 %v5038
        %v5040 = vand.u32 %v670, 4294901760
        %v5041 = vsub.f32 %v670, %v5040
        %v5042 = vand.u32 %v5041, 4294901760
        %v5043 = vsub.f32 %v5041, %v5042
        %v5044 = vand.u32 %v5043, 4294901760
        %5045 = vmatprep.subr.mxu0 %v5044
        %v5046 = vand.u32 %v669, 4294901760
        %v5047 = vsub.f32 %v669, %v5046
        %v5048 = vand.u32 %v5047, 4294901760
        %v5049 = vsub.f32 %v5047, %v5048
        %v5050 = vand.u32 %v5049, 4294901760
        %5051 = vmatpush1.msra.mxu0 %v5050
        %v5052 = vand.u32 %v414, 4294901760
        %5053 = vmatprep.mubr.f32.mxu0 %v5052
        %v5054 = vand.u32 %v413, 4294901760
        %5055 = vmatmul.mubr.f32.gmra.mrb[0].mxu0 %v5054
        %v5056 = vpop.f32.mrb[0].mxu0
        %v5057 = vadd.f32 %v4664, %v5056
        %v5058 = vpop.f32.mrb[0].mxu0
        %v5059 = vadd.f32 %v4666, %v5058
        %5060 = vdwg.mxu0
        %v5061 = vand.u32 %v422, 4294901760
        %v5062 = vsub.f32 %v422, %v5061
        %5063 = vmatprep.subr.mxu0 %v5062
        %v5064 = vand.u32 %v421, 4294901760
        %v5065 = vsub.f32 %v421, %v5064
        %5066 = vmatpush1.msra.mxu0 %v5065
        %v5067 = vand.u32 %v430, 4294901760
        %v5068 = vsub.f32 %v430, %v5067
        %5069 = vmatprep.subr.mxu0 %v5068
        %v5070 = vand.u32 %v429, 4294901760
        %v5071 = vsub.f32 %v429, %v5070
        %5072 = vmatpush1.msra.mxu0 %v5071
        %v5073 = vand.u32 %v438, 4294901760
        %v5074 = vsub.f32 %v438, %v5073
        %5075 = vmatprep.subr.mxu0 %v5074
        %v5076 = vand.u32 %v437, 4294901760
        %v5077 = vsub.f32 %v437, %v5076
        %5078 = vmatpush1.msra.mxu0 %v5077
        %v5079 = vand.u32 %v446, 4294901760
        %v5080 = vsub.f32 %v446, %v5079
        %5081 = vmatprep.subr.mxu0 %v5080
        %v5082 = vand.u32 %v445, 4294901760
        %v5083 = vsub.f32 %v445, %v5082
        %5084 = vmatpush1.msra.mxu0 %v5083
        %v5085 = vand.u32 %v454, 4294901760
        %v5086 = vsub.f32 %v454, %v5085
        %5087 = vmatprep.subr.mxu0 %v5086
        %v5088 = vand.u32 %v453, 4294901760
        %v5089 = vsub.f32 %v453, %v5088
        %5090 = vmatpush1.msra.mxu0 %v5089
        %v5091 = vand.u32 %v462, 4294901760
        %v5092 = vsub.f32 %v462, %v5091
        %5093 = vmatprep.subr.mxu0 %v5092
        %v5094 = vand.u32 %v461, 4294901760
        %v5095 = vsub.f32 %v461, %v5094
        %5096 = vmatpush1.msra.mxu0 %v5095
        %v5097 = vand.u32 %v470, 4294901760
        %v5098 = vsub.f32 %v470, %v5097
        %5099 = vmatprep.subr.mxu0 %v5098
        %v5100 = vand.u32 %v469, 4294901760
        %v5101 = vsub.f32 %v469, %v5100
        %5102 = vmatpush1.msra.mxu0 %v5101
        %v5103 = vand.u32 %v478, 4294901760
        %v5104 = vsub.f32 %v478, %v5103
        %5105 = vmatprep.subr.mxu0 %v5104
        %v5106 = vand.u32 %v477, 4294901760
        %v5107 = vsub.f32 %v477, %v5106
        %5108 = vmatpush1.msra.mxu0 %v5107
        %v5109 = vand.u32 %v486, 4294901760
        %v5110 = vsub.f32 %v486, %v5109
        %5111 = vmatprep.subr.mxu0 %v5110
        %v5112 = vand.u32 %v485, 4294901760
        %v5113 = vsub.f32 %v485, %v5112
        %5114 = vmatpush1.msra.mxu0 %v5113
        %v5115 = vand.u32 %v494, 4294901760
        %v5116 = vsub.f32 %v494, %v5115
        %5117 = vmatprep.subr.mxu0 %v5116
        %v5118 = vand.u32 %v493, 4294901760
        %v5119 = vsub.f32 %v493, %v5118
        %5120 = vmatpush1.msra.mxu0 %v5119
        %v5121 = vand.u32 %v502, 4294901760
        %v5122 = vsub.f32 %v502, %v5121
        %5123 = vmatprep.subr.mxu0 %v5122
        %v5124 = vand.u32 %v501, 4294901760
        %v5125 = vsub.f32 %v501, %v5124
        %5126 = vmatpush1.msra.mxu0 %v5125
        %v5127 = vand.u32 %v510, 4294901760
        %v5128 = vsub.f32 %v510, %v5127
        %5129 = vmatprep.subr.mxu0 %v5128
        %v5130 = vand.u32 %v509, 4294901760
        %v5131 = vsub.f32 %v509, %v5130
        %5132 = vmatpush1.msra.mxu0 %v5131
        %v5133 = vand.u32 %v518, 4294901760
        %v5134 = vsub.f32 %v518, %v5133
        %5135 = vmatprep.subr.mxu0 %v5134
        %v5136 = vand.u32 %v517, 4294901760
        %v5137 = vsub.f32 %v517, %v5136
        %5138 = vmatpush1.msra.mxu0 %v5137
        %v5139 = vand.u32 %v526, 4294901760
        %v5140 = vsub.f32 %v526, %v5139
        %5141 = vmatprep.subr.mxu0 %v5140
        %v5142 = vand.u32 %v525, 4294901760
        %v5143 = vsub.f32 %v525, %v5142
        %5144 = vmatpush1.msra.mxu0 %v5143
        %v5145 = vand.u32 %v534, 4294901760
        %v5146 = vsub.f32 %v534, %v5145
        %5147 = vmatprep.subr.mxu0 %v5146
        %v5148 = vand.u32 %v533, 4294901760
        %v5149 = vsub.f32 %v533, %v5148
        %5150 = vmatpush1.msra.mxu0 %v5149
        %v5151 = vand.u32 %v542, 4294901760
        %v5152 = vsub.f32 %v542, %v5151
        %5153 = vmatprep.subr.mxu0 %v5152
        %v5154 = vand.u32 %v541, 4294901760
        %v5155 = vsub.f32 %v541, %v5154
        %5156 = vmatpush1.msra.mxu0 %v5155
        %v5157 = vand.u32 %v550, 4294901760
        %v5158 = vsub.f32 %v550, %v5157
        %5159 = vmatprep.subr.mxu0 %v5158
        %v5160 = vand.u32 %v549, 4294901760
        %v5161 = vsub.f32 %v549, %v5160
        %5162 = vmatpush1.msra.mxu0 %v5161
        %v5163 = vand.u32 %v558, 4294901760
        %v5164 = vsub.f32 %v558, %v5163
        %5165 = vmatprep.subr.mxu0 %v5164
        %v5166 = vand.u32 %v557, 4294901760
        %v5167 = vsub.f32 %v557, %v5166
        %5168 = vmatpush1.msra.mxu0 %v5167
        %v5169 = vand.u32 %v566, 4294901760
        %v5170 = vsub.f32 %v566, %v5169
        %5171 = vmatprep.subr.mxu0 %v5170
        %v5172 = vand.u32 %v565, 4294901760
        %v5173 = vsub.f32 %v565, %v5172
        %5174 = vmatpush1.msra.mxu0 %v5173
        %v5175 = vand.u32 %v574, 4294901760
        %v5176 = vsub.f32 %v574, %v5175
        %5177 = vmatprep.subr.mxu0 %v5176
        %v5178 = vand.u32 %v573, 4294901760
        %v5179 = vsub.f32 %v573, %v5178
        %5180 = vmatpush1.msra.mxu0 %v5179
        %v5181 = vand.u32 %v582, 4294901760
        %v5182 = vsub.f32 %v582, %v5181
        %5183 = vmatprep.subr.mxu0 %v5182
        %v5184 = vand.u32 %v581, 4294901760
        %v5185 = vsub.f32 %v581, %v5184
        %5186 = vmatpush1.msra.mxu0 %v5185
        %v5187 = vand.u32 %v590, 4294901760
        %v5188 = vsub.f32 %v590, %v5187
        %5189 = vmatprep.subr.mxu0 %v5188
        %v5190 = vand.u32 %v589, 4294901760
        %v5191 = vsub.f32 %v589, %v5190
        %5192 = vmatpush1.msra.mxu0 %v5191
        %v5193 = vand.u32 %v598, 4294901760
        %v5194 = vsub.f32 %v598, %v5193
        %5195 = vmatprep.subr.mxu0 %v5194
        %v5196 = vand.u32 %v597, 4294901760
        %v5197 = vsub.f32 %v597, %v5196
        %5198 = vmatpush1.msra.mxu0 %v5197
        %v5199 = vand.u32 %v606, 4294901760
        %v5200 = vsub.f32 %v606, %v5199
        %5201 = vmatprep.subr.mxu0 %v5200
        %v5202 = vand.u32 %v605, 4294901760
        %v5203 = vsub.f32 %v605, %v5202
        %5204 = vmatpush1.msra.mxu0 %v5203
        %v5205 = vand.u32 %v614, 4294901760
        %v5206 = vsub.f32 %v614, %v5205
        %5207 = vmatprep.subr.mxu0 %v5206
        %v5208 = vand.u32 %v613, 4294901760
        %v5209 = vsub.f32 %v613, %v5208
        %5210 = vmatpush1.msra.mxu0 %v5209
        %v5211 = vand.u32 %v622, 4294901760
        %v5212 = vsub.f32 %v622, %v5211
        %5213 = vmatprep.subr.mxu0 %v5212
        %v5214 = vand.u32 %v621, 4294901760
        %v5215 = vsub.f32 %v621, %v5214
        %5216 = vmatpush1.msra.mxu0 %v5215
        %v5217 = vand.u32 %v630, 4294901760
        %v5218 = vsub.f32 %v630, %v5217
        %5219 = vmatprep.subr.mxu0 %v5218
        %v5220 = vand.u32 %v629, 4294901760
        %v5221 = vsub.f32 %v629, %v5220
        %5222 = vmatpush1.msra.mxu0 %v5221
        %v5223 = vand.u32 %v638, 4294901760
        %v5224 = vsub.f32 %v638, %v5223
        %5225 = vmatprep.subr.mxu0 %v5224
        %v5226 = vand.u32 %v637, 4294901760
        %v5227 = vsub.f32 %v637, %v5226
        %5228 = vmatpush1.msra.mxu0 %v5227
        %v5229 = vand.u32 %v646, 4294901760
        %v5230 = vsub.f32 %v646, %v5229
        %5231 = vmatprep.subr.mxu0 %v5230
        %v5232 = vand.u32 %v645, 4294901760
        %v5233 = vsub.f32 %v645, %v5232
        %5234 = vmatpush1.msra.mxu0 %v5233
        %v5235 = vand.u32 %v654, 4294901760
        %v5236 = vsub.f32 %v654, %v5235
        %5237 = vmatprep.subr.mxu0 %v5236
        %v5238 = vand.u32 %v653, 4294901760
        %v5239 = vsub.f32 %v653, %v5238
        %5240 = vmatpush1.msra.mxu0 %v5239
        %v5241 = vand.u32 %v662, 4294901760
        %v5242 = vsub.f32 %v662, %v5241
        %5243 = vmatprep.subr.mxu0 %v5242
        %v5244 = vand.u32 %v661, 4294901760
        %v5245 = vsub.f32 %v661, %v5244
        %5246 = vmatpush1.msra.mxu0 %v5245
        %v5247 = vand.u32 %v670, 4294901760
        %v5248 = vsub.f32 %v670, %v5247
        %5249 = vmatprep.subr.mxu0 %v5248
        %v5250 = vand.u32 %v669, 4294901760
        %v5251 = vsub.f32 %v669, %v5250
        %5252 = vmatpush1.msra.mxu0 %v5251
        %v5253 = vand.u32 %v414, 4294901760
        %v5254 = vsub.f32 %v414, %v5253
        %5255 = vmatprep.mubr.f32.mxu0 %v5254
        %v5256 = vand.u32 %v413, 4294901760
        %v5257 = vsub.f32 %v413, %v5256
        %5258 = vmatmul.mubr.f32.gmra.mrb[0].mxu0 %v5257
        %v5259 = vpop.f32.mrb[0].mxu0
        %v5260 = vadd.f32 %v5057, %v5259
        %v5261 = vpop.f32.mrb[0].mxu0
        %v5262 = vadd.f32 %v5059, %v5261
        %5263 = vdwg.mxu0
        %v5264 = vand.u32 %v422, 4294901760
        %5265 = vmatprep.subr.mxu0 %v5264
        %v5266 = vand.u32 %v421, 4294901760
        %5267 = vmatpush1.msra.mxu0 %v5266
        %v5268 = vand.u32 %v430, 4294901760
        %5269 = vmatprep.subr.mxu0 %v5268
        %v5270 = vand.u32 %v429, 4294901760
        %5271 = vmatpush1.msra.mxu0 %v5270
        %v5272 = vand.u32 %v438, 4294901760
        %5273 = vmatprep.subr.mxu0 %v5272
        %v5274 = vand.u32 %v437, 4294901760
        %5275 = vmatpush1.msra.mxu0 %v5274
        %v5276 = vand.u32 %v446, 4294901760
        %5277 = vmatprep.subr.mxu0 %v5276
        %v5278 = vand.u32 %v445, 4294901760
        %5279 = vmatpush1.msra.mxu0 %v5278
        %v5280 = vand.u32 %v454, 4294901760
        %5281 = vmatprep.subr.mxu0 %v5280
        %v5282 = vand.u32 %v453, 4294901760
        %5283 = vmatpush1.msra.mxu0 %v5282
        %v5284 = vand.u32 %v462, 4294901760
        %5285 = vmatprep.subr.mxu0 %v5284
        %v5286 = vand.u32 %v461, 4294901760
        %5287 = vmatpush1.msra.mxu0 %v5286
        %v5288 = vand.u32 %v470, 4294901760
        %5289 = vmatprep.subr.mxu0 %v5288
        %v5290 = vand.u32 %v469, 4294901760
        %5291 = vmatpush1.msra.mxu0 %v5290
        %v5292 = vand.u32 %v478, 4294901760
        %5293 = vmatprep.subr.mxu0 %v5292
        %v5294 = vand.u32 %v477, 4294901760
        %5295 = vmatpush1.msra.mxu0 %v5294
        %v5296 = vand.u32 %v486, 4294901760
        %5297 = vmatprep.subr.mxu0 %v5296
        %v5298 = vand.u32 %v485, 4294901760
        %5299 = vmatpush1.msra.mxu0 %v5298
        %v5300 = vand.u32 %v494, 4294901760
        %5301 = vmatprep.subr.mxu0 %v5300
        %v5302 = vand.u32 %v493, 4294901760
        %5303 = vmatpush1.msra.mxu0 %v5302
        %v5304 = vand.u32 %v502, 4294901760
        %5305 = vmatprep.subr.mxu0 %v5304
        %v5306 = vand.u32 %v501, 4294901760
        %5307 = vmatpush1.msra.mxu0 %v5306
        %v5308 = vand.u32 %v510, 4294901760
        %5309 = vmatprep.subr.mxu0 %v5308
        %v5310 = vand.u32 %v509, 4294901760
        %5311 = vmatpush1.msra.mxu0 %v5310
        %v5312 = vand.u32 %v518, 4294901760
        %5313 = vmatprep.subr.mxu0 %v5312
        %v5314 = vand.u32 %v517, 4294901760
        %5315 = vmatpush1.msra.mxu0 %v5314
        %v5316 = vand.u32 %v526, 4294901760
        %5317 = vmatprep.subr.mxu0 %v5316
        %v5318 = vand.u32 %v525, 4294901760
        %5319 = vmatpush1.msra.mxu0 %v5318
        %v5320 = vand.u32 %v534, 4294901760
        %5321 = vmatprep.subr.mxu0 %v5320
        %v5322 = vand.u32 %v533, 4294901760
        %5323 = vmatpush1.msra.mxu0 %v5322
        %v5324 = vand.u32 %v542, 4294901760
        %5325 = vmatprep.subr.mxu0 %v5324
        %v5326 = vand.u32 %v541, 4294901760
        %5327 = vmatpush1.msra.mxu0 %v5326
        %v5328 = vand.u32 %v550, 4294901760
        %5329 = vmatprep.subr.mxu0 %v5328
        %v5330 = vand.u32 %v549, 4294901760
        %5331 = vmatpush1.msra.mxu0 %v5330
        %v5332 = vand.u32 %v558, 4294901760
        %5333 = vmatprep.subr.mxu0 %v5332
        %v5334 = vand.u32 %v557, 4294901760
        %5335 = vmatpush1.msra.mxu0 %v5334
        %v5336 = vand.u32 %v566, 4294901760
        %5337 = vmatprep.subr.mxu0 %v5336
        %v5338 = vand.u32 %v565, 4294901760
        %5339 = vmatpush1.msra.mxu0 %v5338
        %v5340 = vand.u32 %v574, 4294901760
        %5341 = vmatprep.subr.mxu0 %v5340
        %v5342 = vand.u32 %v573, 4294901760
        %5343 = vmatpush1.msra.mxu0 %v5342
        %v5344 = vand.u32 %v582, 4294901760
        %5345 = vmatprep.subr.mxu0 %v5344
        %v5346 = vand.u32 %v581, 4294901760
        %5347 = vmatpush1.msra.mxu0 %v5346
        %v5348 = vand.u32 %v590, 4294901760
        %5349 = vmatprep.subr.mxu0 %v5348
        %v5350 = vand.u32 %v589, 4294901760
        %5351 = vmatpush1.msra.mxu0 %v5350
        %v5352 = vand.u32 %v598, 4294901760
        %5353 = vmatprep.subr.mxu0 %v5352
        %v5354 = vand.u32 %v597, 4294901760
        %5355 = vmatpush1.msra.mxu0 %v5354
        %v5356 = vand.u32 %v606, 4294901760
        %5357 = vmatprep.subr.mxu0 %v5356
        %v5358 = vand.u32 %v605, 4294901760
        %5359 = vmatpush1.msra.mxu0 %v5358
        %v5360 = vand.u32 %v614, 4294901760
        %5361 = vmatprep.subr.mxu0 %v5360
        %v5362 = vand.u32 %v613, 4294901760
        %5363 = vmatpush1.msra.mxu0 %v5362
        %v5364 = vand.u32 %v622, 4294901760
        %5365 = vmatprep.subr.mxu0 %v5364
        %v5366 = vand.u32 %v621, 4294901760
        %5367 = vmatpush1.msra.mxu0 %v5366
        %v5368 = vand.u32 %v630, 4294901760
        %5369 = vmatprep.subr.mxu0 %v5368
        %v5370 = vand.u32 %v629, 4294901760
        %5371 = vmatpush1.msra.mxu0 %v5370
        %v5372 = vand.u32 %v638, 4294901760
        %5373 = vmatprep.subr.mxu0 %v5372
        %v5374 = vand.u32 %v637, 4294901760
        %5375 = vmatpush1.msra.mxu0 %v5374
        %v5376 = vand.u32 %v646, 4294901760
        %5377 = vmatprep.subr.mxu0 %v5376
        %v5378 = vand.u32 %v645, 4294901760
        %5379 = vmatpush1.msra.mxu0 %v5378
        %v5380 = vand.u32 %v654, 4294901760
        %5381 = vmatprep.subr.mxu0 %v5380
        %v5382 = vand.u32 %v653, 4294901760
        %5383 = vmatpush1.msra.mxu0 %v5382
        %v5384 = vand.u32 %v662, 4294901760
        %5385 = vmatprep.subr.mxu0 %v5384
        %v5386 = vand.u32 %v661, 4294901760
        %5387 = vmatpush1.msra.mxu0 %v5386
        %v5388 = vand.u32 %v670, 4294901760
        %5389 = vmatprep.subr.mxu0 %v5388
        %v5390 = vand.u32 %v669, 4294901760
        %5391 = vmatpush1.msra.mxu0 %v5390
        %v5392 = vand.u32 %v414, 4294901760
        %v5393 = vsub.f32 %v414, %v5392
        %v5394 = vand.u32 %v5393, 4294901760
        %5395 = vmatprep.mubr.f32.mxu0 %v5394
        %v5396 = vand.u32 %v413, 4294901760
        %v5397 = vsub.f32 %v413, %v5396
        %v5398 = vand.u32 %v5397, 4294901760
        %5399 = vmatmul.mubr.f32.gmra.mrb[0].mxu0 %v5398
        %v5400 = vpop.f32.mrb[0].mxu0
        %v5401 = vadd.f32 %v5260, %v5400
        %v5402 = vpop.f32.mrb[0].mxu0
        %v5403 = vadd.f32 %v5262, %v5402
        %5404 = vdwg.mxu0
        %v5405 = vand.u32 %v422, 4294901760
        %v5406 = vsub.f32 %v422, %v5405
        %v5407 = vand.u32 %v5406, 4294901760
        %5408 = vmatprep.subr.mxu0 %v5407
        %v5409 = vand.u32 %v421, 4294901760
        %v5410 = vsub.f32 %v421, %v5409
        %v5411 = vand.u32 %v5410, 4294901760
        %5412 = vmatpush1.msra.mxu0 %v5411
        %v5413 = vand.u32 %v430, 4294901760
        %v5414 = vsub.f32 %v430, %v5413
        %v5415 = vand.u32 %v5414, 4294901760
        %5416 = vmatprep.subr.mxu0 %v5415
        %v5417 = vand.u32 %v429, 4294901760
        %v5418 = vsub.f32 %v429, %v5417
        %v5419 = vand.u32 %v5418, 4294901760
        %5420 = vmatpush1.msra.mxu0 %v5419
        %v5421 = vand.u32 %v438, 4294901760
        %v5422 = vsub.f32 %v438, %v5421
        %v5423 = vand.u32 %v5422, 4294901760
        %5424 = vmatprep.subr.mxu0 %v5423
        %v5425 = vand.u32 %v437, 4294901760
        %v5426 = vsub.f32 %v437, %v5425
        %v5427 = vand.u32 %v5426, 4294901760
        %5428 = vmatpush1.msra.mxu0 %v5427
        %v5429 = vand.u32 %v446, 4294901760
        %v5430 = vsub.f32 %v446, %v5429
        %v5431 = vand.u32 %v5430, 4294901760
        %5432 = vmatprep.subr.mxu0 %v5431
        %v5433 = vand.u32 %v445, 4294901760
        %v5434 = vsub.f32 %v445, %v5433
        %v5435 = vand.u32 %v5434, 4294901760
        %5436 = vmatpush1.msra.mxu0 %v5435
        %v5437 = vand.u32 %v454, 4294901760
        %v5438 = vsub.f32 %v454, %v5437
        %v5439 = vand.u32 %v5438, 4294901760
        %5440 = vmatprep.subr.mxu0 %v5439
        %v5441 = vand.u32 %v453, 4294901760
        %v5442 = vsub.f32 %v453, %v5441
        %v5443 = vand.u32 %v5442, 4294901760
        %5444 = vmatpush1.msra.mxu0 %v5443
        %v5445 = vand.u32 %v462, 4294901760
        %v5446 = vsub.f32 %v462, %v5445
        %v5447 = vand.u32 %v5446, 4294901760
        %5448 = vmatprep.subr.mxu0 %v5447
        %v5449 = vand.u32 %v461, 4294901760
        %v5450 = vsub.f32 %v461, %v5449
        %v5451 = vand.u32 %v5450, 4294901760
        %5452 = vmatpush1.msra.mxu0 %v5451
        %v5453 = vand.u32 %v470, 4294901760
        %v5454 = vsub.f32 %v470, %v5453
        %v5455 = vand.u32 %v5454, 4294901760
        %5456 = vmatprep.subr.mxu0 %v5455
        %v5457 = vand.u32 %v469, 4294901760
        %v5458 = vsub.f32 %v469, %v5457
        %v5459 = vand.u32 %v5458, 4294901760
        %5460 = vmatpush1.msra.mxu0 %v5459
        %v5461 = vand.u32 %v478, 4294901760
        %v5462 = vsub.f32 %v478, %v5461
        %v5463 = vand.u32 %v5462, 4294901760
        %5464 = vmatprep.subr.mxu0 %v5463
        %v5465 = vand.u32 %v477, 4294901760
        %v5466 = vsub.f32 %v477, %v5465
        %v5467 = vand.u32 %v5466, 4294901760
        %5468 = vmatpush1.msra.mxu0 %v5467
        %v5469 = vand.u32 %v486, 4294901760
        %v5470 = vsub.f32 %v486, %v5469
        %v5471 = vand.u32 %v5470, 4294901760
        %5472 = vmatprep.subr.mxu0 %v5471
        %v5473 = vand.u32 %v485, 4294901760
        %v5474 = vsub.f32 %v485, %v5473
        %v5475 = vand.u32 %v5474, 4294901760
        %5476 = vmatpush1.msra.mxu0 %v5475
        %v5477 = vand.u32 %v494, 4294901760
        %v5478 = vsub.f32 %v494, %v5477
        %v5479 = vand.u32 %v5478, 4294901760
        %5480 = vmatprep.subr.mxu0 %v5479
        %v5481 = vand.u32 %v493, 4294901760
        %v5482 = vsub.f32 %v493, %v5481
        %v5483 = vand.u32 %v5482, 4294901760
        %5484 = vmatpush1.msra.mxu0 %v5483
        %v5485 = vand.u32 %v502, 4294901760
        %v5486 = vsub.f32 %v502, %v5485
        %v5487 = vand.u32 %v5486, 4294901760
        %5488 = vmatprep.subr.mxu0 %v5487
        %v5489 = vand.u32 %v501, 4294901760
        %v5490 = vsub.f32 %v501, %v5489
        %v5491 = vand.u32 %v5490, 4294901760
        %5492 = vmatpush1.msra.mxu0 %v5491
        %v5493 = vand.u32 %v510, 4294901760
        %v5494 = vsub.f32 %v510, %v5493
        %v5495 = vand.u32 %v5494, 4294901760
        %5496 = vmatprep.subr.mxu0 %v5495
        %v5497 = vand.u32 %v509, 4294901760
        %v5498 = vsub.f32 %v509, %v5497
        %v5499 = vand.u32 %v5498, 4294901760
        %5500 = vmatpush1.msra.mxu0 %v5499
        %v5501 = vand.u32 %v518, 4294901760
        %v5502 = vsub.f32 %v518, %v5501
        %v5503 = vand.u32 %v5502, 4294901760
        %5504 = vmatprep.subr.mxu0 %v5503
        %v5505 = vand.u32 %v517, 4294901760
        %v5506 = vsub.f32 %v517, %v5505
        %v5507 = vand.u32 %v5506, 4294901760
        %5508 = vmatpush1.msra.mxu0 %v5507
        %v5509 = vand.u32 %v526, 4294901760
        %v5510 = vsub.f32 %v526, %v5509
        %v5511 = vand.u32 %v5510, 4294901760
        %5512 = vmatprep.subr.mxu0 %v5511
        %v5513 = vand.u32 %v525, 4294901760
        %v5514 = vsub.f32 %v525, %v5513
        %v5515 = vand.u32 %v5514, 4294901760
        %5516 = vmatpush1.msra.mxu0 %v5515
        %v5517 = vand.u32 %v534, 4294901760
        %v5518 = vsub.f32 %v534, %v5517
        %v5519 = vand.u32 %v5518, 4294901760
        %5520 = vmatprep.subr.mxu0 %v5519
        %v5521 = vand.u32 %v533, 4294901760
        %v5522 = vsub.f32 %v533, %v5521
        %v5523 = vand.u32 %v5522, 4294901760
        %5524 = vmatpush1.msra.mxu0 %v5523
        %v5525 = vand.u32 %v542, 4294901760
        %v5526 = vsub.f32 %v542, %v5525
        %v5527 = vand.u32 %v5526, 4294901760
        %5528 = vmatprep.subr.mxu0 %v5527
        %v5529 = vand.u32 %v541, 4294901760
        %v5530 = vsub.f32 %v541, %v5529
        %v5531 = vand.u32 %v5530, 4294901760
        %5532 = vmatpush1.msra.mxu0 %v5531
        %v5533 = vand.u32 %v550, 4294901760
        %v5534 = vsub.f32 %v550, %v5533
        %v5535 = vand.u32 %v5534, 4294901760
        %5536 = vmatprep.subr.mxu0 %v5535
        %v5537 = vand.u32 %v549, 4294901760
        %v5538 = vsub.f32 %v549, %v5537
        %v5539 = vand.u32 %v5538, 4294901760
        %5540 = vmatpush1.msra.mxu0 %v5539
        %v5541 = vand.u32 %v558, 4294901760
        %v5542 = vsub.f32 %v558, %v5541
        %v5543 = vand.u32 %v5542, 4294901760
        %5544 = vmatprep.subr.mxu0 %v5543
        %v5545 = vand.u32 %v557, 4294901760
        %v5546 = vsub.f32 %v557, %v5545
        %v5547 = vand.u32 %v5546, 4294901760
        %5548 = vmatpush1.msra.mxu0 %v5547
        %v5549 = vand.u32 %v566, 4294901760
        %v5550 = vsub.f32 %v566, %v5549
        %v5551 = vand.u32 %v5550, 4294901760
        %5552 = vmatprep.subr.mxu0 %v5551
        %v5553 = vand.u32 %v565, 4294901760
        %v5554 = vsub.f32 %v565, %v5553
        %v5555 = vand.u32 %v5554, 4294901760
        %5556 = vmatpush1.msra.mxu0 %v5555
        %v5557 = vand.u32 %v574, 4294901760
        %v5558 = vsub.f32 %v574, %v5557
        %v5559 = vand.u32 %v5558, 4294901760
        %5560 = vmatprep.subr.mxu0 %v5559
        %v5561 = vand.u32 %v573, 4294901760
        %v5562 = vsub.f32 %v573, %v5561
        %v5563 = vand.u32 %v5562, 4294901760
        %5564 = vmatpush1.msra.mxu0 %v5563
        %v5565 = vand.u32 %v582, 4294901760
        %v5566 = vsub.f32 %v582, %v5565
        %v5567 = vand.u32 %v5566, 4294901760
        %5568 = vmatprep.subr.mxu0 %v5567
        %v5569 = vand.u32 %v581, 4294901760
        %v5570 = vsub.f32 %v581, %v5569
        %v5571 = vand.u32 %v5570, 4294901760
        %5572 = vmatpush1.msra.mxu0 %v5571
        %v5573 = vand.u32 %v590, 4294901760
        %v5574 = vsub.f32 %v590, %v5573
        %v5575 = vand.u32 %v5574, 4294901760
        %5576 = vmatprep.subr.mxu0 %v5575
        %v5577 = vand.u32 %v589, 4294901760
        %v5578 = vsub.f32 %v589, %v5577
        %v5579 = vand.u32 %v5578, 4294901760
        %5580 = vmatpush1.msra.mxu0 %v5579
        %v5581 = vand.u32 %v598, 4294901760
        %v5582 = vsub.f32 %v598, %v5581
        %v5583 = vand.u32 %v5582, 4294901760
        %5584 = vmatprep.subr.mxu0 %v5583
        %v5585 = vand.u32 %v597, 4294901760
        %v5586 = vsub.f32 %v597, %v5585
        %v5587 = vand.u32 %v5586, 4294901760
        %5588 = vmatpush1.msra.mxu0 %v5587
        %v5589 = vand.u32 %v606, 4294901760
        %v5590 = vsub.f32 %v606, %v5589
        %v5591 = vand.u32 %v5590, 4294901760
        %5592 = vmatprep.subr.mxu0 %v5591
        %v5593 = vand.u32 %v605, 4294901760
        %v5594 = vsub.f32 %v605, %v5593
        %v5595 = vand.u32 %v5594, 4294901760
        %5596 = vmatpush1.msra.mxu0 %v5595
        %v5597 = vand.u32 %v614, 4294901760
        %v5598 = vsub.f32 %v614, %v5597
        %v5599 = vand.u32 %v5598, 4294901760
        %5600 = vmatprep.subr.mxu0 %v5599
        %v5601 = vand.u32 %v613, 4294901760
        %v5602 = vsub.f32 %v613, %v5601
        %v5603 = vand.u32 %v5602, 4294901760
        %5604 = vmatpush1.msra.mxu0 %v5603
        %v5605 = vand.u32 %v622, 4294901760
        %v5606 = vsub.f32 %v622, %v5605
        %v5607 = vand.u32 %v5606, 4294901760
        %5608 = vmatprep.subr.mxu0 %v5607
        %v5609 = vand.u32 %v621, 4294901760
        %v5610 = vsub.f32 %v621, %v5609
        %v5611 = vand.u32 %v5610, 4294901760
        %5612 = vmatpush1.msra.mxu0 %v5611
        %v5613 = vand.u32 %v630, 4294901760
        %v5614 = vsub.f32 %v630, %v5613
        %v5615 = vand.u32 %v5614, 4294901760
        %5616 = vmatprep.subr.mxu0 %v5615
        %v5617 = vand.u32 %v629, 4294901760
        %v5618 = vsub.f32 %v629, %v5617
        %v5619 = vand.u32 %v5618, 4294901760
        %5620 = vmatpush1.msra.mxu0 %v5619
        %v5621 = vand.u32 %v638, 4294901760
        %v5622 = vsub.f32 %v638, %v5621
        %v5623 = vand.u32 %v5622, 4294901760
        %5624 = vmatprep.subr.mxu0 %v5623
        %v5625 = vand.u32 %v637, 4294901760
        %v5626 = vsub.f32 %v637, %v5625
        %v5627 = vand.u32 %v5626, 4294901760
        %5628 = vmatpush1.msra.mxu0 %v5627
        %v5629 = vand.u32 %v646, 4294901760
        %v5630 = vsub.f32 %v646, %v5629
        %v5631 = vand.u32 %v5630, 4294901760
        %5632 = vmatprep.subr.mxu0 %v5631
        %v5633 = vand.u32 %v645, 4294901760
        %v5634 = vsub.f32 %v645, %v5633
        %v5635 = vand.u32 %v5634, 4294901760
        %5636 = vmatpush1.msra.mxu0 %v5635
        %v5637 = vand.u32 %v654, 4294901760
        %v5638 = vsub.f32 %v654, %v5637
        %v5639 = vand.u32 %v5638, 4294901760
        %5640 = vmatprep.subr.mxu0 %v5639
        %v5641 = vand.u32 %v653, 4294901760
        %v5642 = vsub.f32 %v653, %v5641
        %v5643 = vand.u32 %v5642, 4294901760
        %5644 = vmatpush1.msra.mxu0 %v5643
        %v5645 = vand.u32 %v662, 4294901760
        %v5646 = vsub.f32 %v662, %v5645
        %v5647 = vand.u32 %v5646, 4294901760
        %5648 = vmatprep.subr.mxu0 %v5647
        %v5649 = vand.u32 %v661, 4294901760
        %v5650 = vsub.f32 %v661, %v5649
        %v5651 = vand.u32 %v5650, 4294901760
        %5652 = vmatpush1.msra.mxu0 %v5651
        %v5653 = vand.u32 %v670, 4294901760
        %v5654 = vsub.f32 %v670, %v5653
        %v5655 = vand.u32 %v5654, 4294901760
        %5656 = vmatprep.subr.mxu0 %v5655
        %v5657 = vand.u32 %v669, 4294901760
        %v5658 = vsub.f32 %v669, %v5657
        %v5659 = vand.u32 %v5658, 4294901760
        %5660 = vmatpush1.msra.mxu0 %v5659
        %v5661 = vand.u32 %v414, 4294901760
        %5662 = vmatprep.mubr.f32.mxu0 %v5661
        %v5663 = vand.u32 %v413, 4294901760
        %5664 = vmatmul.mubr.f32.gmra.mrb[0].mxu0 %v5663
        %v5665 = vpop.f32.mrb[0].mxu0
        %v5666 = vadd.f32 %v5401, %v5665
        %v5667 = vpop.f32.mrb[0].mxu0
        %v5668 = vadd.f32 %v5403, %v5667
        %5669 = vdwg.mxu0
        %v5670 = vand.u32 %v422, 4294901760
        %5671 = vmatprep.subr.mxu0 %v5670
        %v5672 = vand.u32 %v421, 4294901760
        %5673 = vmatpush1.msra.mxu0 %v5672
        %v5674 = vand.u32 %v430, 4294901760
        %5675 = vmatprep.subr.mxu0 %v5674
        %v5676 = vand.u32 %v429, 4294901760
        %5677 = vmatpush1.msra.mxu0 %v5676
        %v5678 = vand.u32 %v438, 4294901760
        %5679 = vmatprep.subr.mxu0 %v5678
        %v5680 = vand.u32 %v437, 4294901760
        %5681 = vmatpush1.msra.mxu0 %v5680
        %v5682 = vand.u32 %v446, 4294901760
        %5683 = vmatprep.subr.mxu0 %v5682
        %v5684 = vand.u32 %v445, 4294901760
        %5685 = vmatpush1.msra.mxu0 %v5684
        %v5686 = vand.u32 %v454, 4294901760
        %5687 = vmatprep.subr.mxu0 %v5686
        %v5688 = vand.u32 %v453, 4294901760
        %5689 = vmatpush1.msra.mxu0 %v5688
        %v5690 = vand.u32 %v462, 4294901760
        %5691 = vmatprep.subr.mxu0 %v5690
        %v5692 = vand.u32 %v461, 4294901760
        %5693 = vmatpush1.msra.mxu0 %v5692
        %v5694 = vand.u32 %v470, 4294901760
        %5695 = vmatprep.subr.mxu0 %v5694
        %v5696 = vand.u32 %v469, 4294901760
        %5697 = vmatpush1.msra.mxu0 %v5696
        %v5698 = vand.u32 %v478, 4294901760
        %5699 = vmatprep.subr.mxu0 %v5698
        %v5700 = vand.u32 %v477, 4294901760
        %5701 = vmatpush1.msra.mxu0 %v5700
        %v5702 = vand.u32 %v486, 4294901760
        %5703 = vmatprep.subr.mxu0 %v5702
        %v5704 = vand.u32 %v485, 4294901760
        %5705 = vmatpush1.msra.mxu0 %v5704
        %v5706 = vand.u32 %v494, 4294901760
        %5707 = vmatprep.subr.mxu0 %v5706
        %v5708 = vand.u32 %v493, 4294901760
        %5709 = vmatpush1.msra.mxu0 %v5708
        %v5710 = vand.u32 %v502, 4294901760
        %5711 = vmatprep.subr.mxu0 %v5710
        %v5712 = vand.u32 %v501, 4294901760
        %5713 = vmatpush1.msra.mxu0 %v5712
        %v5714 = vand.u32 %v510, 4294901760
        %5715 = vmatprep.subr.mxu0 %v5714
        %v5716 = vand.u32 %v509, 4294901760
        %5717 = vmatpush1.msra.mxu0 %v5716
        %v5718 = vand.u32 %v518, 4294901760
        %5719 = vmatprep.subr.mxu0 %v5718
        %v5720 = vand.u32 %v517, 4294901760
        %5721 = vmatpush1.msra.mxu0 %v5720
        %v5722 = vand.u32 %v526, 4294901760
        %5723 = vmatprep.subr.mxu0 %v5722
        %v5724 = vand.u32 %v525, 4294901760
        %5725 = vmatpush1.msra.mxu0 %v5724
        %v5726 = vand.u32 %v534, 4294901760
        %5727 = vmatprep.subr.mxu0 %v5726
        %v5728 = vand.u32 %v533, 4294901760
        %5729 = vmatpush1.msra.mxu0 %v5728
        %v5730 = vand.u32 %v542, 4294901760
        %5731 = vmatprep.subr.mxu0 %v5730
        %v5732 = vand.u32 %v541, 4294901760
        %5733 = vmatpush1.msra.mxu0 %v5732
        %v5734 = vand.u32 %v550, 4294901760
        %5735 = vmatprep.subr.mxu0 %v5734
        %v5736 = vand.u32 %v549, 4294901760
        %5737 = vmatpush1.msra.mxu0 %v5736
        %v5738 = vand.u32 %v558, 4294901760
        %5739 = vmatprep.subr.mxu0 %v5738
        %v5740 = vand.u32 %v557, 4294901760
        %5741 = vmatpush1.msra.mxu0 %v5740
        %v5742 = vand.u32 %v566, 4294901760
        %5743 = vmatprep.subr.mxu0 %v5742
        %v5744 = vand.u32 %v565, 4294901760
        %5745 = vmatpush1.msra.mxu0 %v5744
        %v5746 = vand.u32 %v574, 4294901760
        %5747 = vmatprep.subr.mxu0 %v5746
        %v5748 = vand.u32 %v573, 4294901760
        %5749 = vmatpush1.msra.mxu0 %v5748
        %v5750 = vand.u32 %v582, 4294901760
        %5751 = vmatprep.subr.mxu0 %v5750
        %v5752 = vand.u32 %v581, 4294901760
        %5753 = vmatpush1.msra.mxu0 %v5752
        %v5754 = vand.u32 %v590, 4294901760
        %5755 = vmatprep.subr.mxu0 %v5754
        %v5756 = vand.u32 %v589, 4294901760
        %5757 = vmatpush1.msra.mxu0 %v5756
        %v5758 = vand.u32 %v598, 4294901760
        %5759 = vmatprep.subr.mxu0 %v5758
        %v5760 = vand.u32 %v597, 4294901760
        %5761 = vmatpush1.msra.mxu0 %v5760
        %v5762 = vand.u32 %v606, 4294901760
        %5763 = vmatprep.subr.mxu0 %v5762
        %v5764 = vand.u32 %v605, 4294901760
        %5765 = vmatpush1.msra.mxu0 %v5764
        %v5766 = vand.u32 %v614, 4294901760
        %5767 = vmatprep.subr.mxu0 %v5766
        %v5768 = vand.u32 %v613, 4294901760
        %5769 = vmatpush1.msra.mxu0 %v5768
        %v5770 = vand.u32 %v622, 4294901760
        %5771 = vmatprep.subr.mxu0 %v5770
        %v5772 = vand.u32 %v621, 4294901760
        %5773 = vmatpush1.msra.mxu0 %v5772
        %v5774 = vand.u32 %v630, 4294901760
        %5775 = vmatprep.subr.mxu0 %v5774
        %v5776 = vand.u32 %v629, 4294901760
        %5777 = vmatpush1.msra.mxu0 %v5776
        %v5778 = vand.u32 %v638, 4294901760
        %5779 = vmatprep.subr.mxu0 %v5778
        %v5780 = vand.u32 %v637, 4294901760
        %5781 = vmatpush1.msra.mxu0 %v5780
        %v5782 = vand.u32 %v646, 4294901760
        %5783 = vmatprep.subr.mxu0 %v5782
        %v5784 = vand.u32 %v645, 4294901760
        %5785 = vmatpush1.msra.mxu0 %v5784
        %v5786 = vand.u32 %v654, 4294901760
        %5787 = vmatprep.subr.mxu0 %v5786
        %v5788 = vand.u32 %v653, 4294901760
        %5789 = vmatpush1.msra.mxu0 %v5788
        %v5790 = vand.u32 %v662, 4294901760
        %5791 = vmatprep.subr.mxu0 %v5790
        %v5792 = vand.u32 %v661, 4294901760
        %5793 = vmatpush1.msra.mxu0 %v5792
        %v5794 = vand.u32 %v670, 4294901760
        %5795 = vmatprep.subr.mxu0 %v5794
        %v5796 = vand.u32 %v669, 4294901760
        %5797 = vmatpush1.msra.mxu0 %v5796
        %v5798 = vand.u32 %v414, 4294901760
        %5799 = vmatprep.mubr.f32.mxu0 %v5798
        %v5800 = vand.u32 %v413, 4294901760
        %5801 = vmatmul.mubr.f32.gmra.mrb[0].mxu0 %v5800
        %v5802 = vpop.f32.mrb[0].mxu0
        %v5803 = vadd.f32 %v5666, %v5802
        %v5804 = vpop.f32.mrb[0].mxu0
        %v5805 = vadd.f32 %v5668, %v5804
        %5806 = vdwg.mxu0
        %v5815 = vcombine.low %v1951, %v1953
        %v5816 = vcombine.low %v3235, %v3237
        %v5817 = vcombine.low %v4519, %v4521
        %v5818 = vcombine.low %v5803, %v5805
        %5823 = vst [vmem:[%s325] sm:$0x33] %v5815
        %5824 = vst [vmem:[%s325 + $0x8] sm:$0x33] %v5816
        %5825 = vst [vmem:[%s325 + $0x10] sm:$0x33] %v5817
        %5826 = vst [vmem:[%s325 + $0x18] sm:$0x33] %v5818
        %v5827 = vld [vmem:[%s315] sm:$0xff]
        %v5828 = vld [vmem:[%s315 + $0x8] sm:$0xff]
        %v5831 = vcombine.low %v5827, %v5827
        %v5833 = vunpack.c.l.s4 1983009808
        %v5834 = vunpack.c.0.s8 %v5833
        %v5835 = vlaneseq
        %v5836 = vshrl.u32 %v5835, 7
        %v5837 = vsub.s32 %v5834, %v5836
        %v5838 = vrot.slane %v5831, %v5837
        %v5840 = vunpack.c.l.s4 1983009808
        %v5841 = vunpack.c.0.s8 %v5840
        %v5842 = vlaneseq
        %v5843 = vshrl.u32 %v5842, 7
        %v5844 = vsub.s32 %v5841, %v5843
        %v5845 = vrot.slane %v5827, %v5844
        %v5846 = vcombine.low %v5828, %v5828
        %v5848 = vunpack.c.l.s4 1983009808
        %v5849 = vunpack.c.0.s8 %v5848
        %v5850 = vlaneseq
        %v5851 = vshrl.u32 %v5850, 7
        %v5852 = vsub.s32 %v5849, %v5851
        %v5853 = vrot.slane %v5846, %v5852
        %v5855 = vunpack.c.l.s4 1983009808
        %v5856 = vunpack.c.0.s8 %v5855
        %v5857 = vlaneseq
        %v5858 = vshrl.u32 %v5857, 7
        %v5859 = vsub.s32 %v5856, %v5858
        %v5860 = vrot.slane %v5828, %v5859
        %5865 = vst [vmem:[%s325] sm:$0xcc] %v5838
        %5866 = vst [vmem:[%s325 + $0x8] sm:$0xcc] %v5845
        %5867 = vst [vmem:[%s325 + $0x10] sm:$0xcc] %v5853
        %5868 = vst [vmem:[%s325 + $0x18] sm:$0xcc] %v5860
        %s5869 = smul.u32 8, %s23
        %p5870 = scmp.lt.s32.totalorder %s22, 1
        %s5871 = scalar_select %p5870, %s22, 1
        %p5872 = scmp.lt.s32.totalorder %s5869, 7
        %s5873 = scalar_select %p5872, %s5869, 7
        %s5874 = smul.addr %s5871, 8
        %s5875 = sadd.s32 %s5873, %s5874
        %s5876 = smul.addr %s5875, 4
        %s5877 = scalar_lea.vmem %s5, %s5876
        // Predicated region
        $region49: #{upsample_forward.1} parent=39 // pred_check
          %p5878 = pneg %p169
        $region50: #{upsample_forward.1} parent=39 // pred_check_branch
          %5880 = sbr.rel (%p5878) target = $region52
        $region51: #{upsample_forward.1} parent=39 // pred_region
          %s5881 = smul.u32 8, %s23
        $region52: #{upsample_forward.1} parent=39 // pred_fallthru
          _
      $region40: #{upsample_forward.1} parent=5 // pred_fallthru
        _
      %p5882 = scmp.le.s32.totalorder 2, %s13
      // Predicated region
      $region53: #{upsample_forward.1} parent=5 // pred_check
        %p5883 = pneg %p5882
      $region54: #{upsample_forward.1} parent=5 // pred_check_branch
        %5885 = sbr.rel (%p5883) target = $region56
      $region55: #{upsample_forward.1} parent=5 // pred_region
        %s5886 = ssub.s32 %s13, 2
        // Predicated region
        $region57: #{upsample_forward.1} parent=55 // pred_check
          %p5887 = pneg %p175
        $region58: #{upsample_forward.1} parent=55 // pred_check_branch
          %5889 = sbr.rel (%p5887) target = $region60
        $region59: #{upsample_forward.1} parent=55 // pred_region
          %s5890 = smul.u32 8, %s25
          %p5891 = scmp.lt.s32.totalorder %s24, 1
          %s5892 = scalar_select %p5891, %s24, 1
          %p5893 = scmp.lt.s32.totalorder %s5890, 7
          %s5894 = scalar_select %p5893, %s5890, 7
          %s5895 = smul.addr %s5892, 8
          %s5896 = sadd.s32 %s5894, %s5895
          %s5897 = smul.addr %s5896, 4
          %s5898 = scalar_lea.vmem %s5, %s5897
        $region60: #{upsample_forward.1} parent=55 // pred_fallthru
          _
      $region56: #{upsample_forward.1} parent=5 // pred_fallthru
        _
    $region6: #{upsample_forward.1} parent=1 // loop_footer
      %s17 = sadd.s32 1, %s13
    $region7: #{upsample_forward.1} parent=1 // loop_footer_branch
      %12 = sbr.rel target = $region3
    $region8: #{upsample_forward.1} parent=1 // loop_exit
      _
    %5899 = vsyncpa [#allocation3], 1
    %s5900 = scalar_lea.sflag [#allocation3], 1
    %5901 = vsyncpa %s5900, 1
    %5902 = vsyncpa [#allocation5], 1

</llo_original>
